<compile_context>
chip_gen: v5e
topology: v5e:2x2
jax: 0.10.0
libtpu: 0.0.40
codegen_flags: <defaults>
</compile_context>

<pallas_src>
import jax
import jax.numpy as jnp
from jax import lax
from jax.experimental import pallas as pl
from jax.experimental.pallas import tpu as pltpu


MASK_QUANT_MAX = 127.0   # int8 transport scale for masks in [0, 1]


def _round_up(v, m):
    return ((v + m - 1) // m) * m


def _quantize_masks(masks_f32):
    """RISE masks live in [0, 1]; quantize to int8 levels 0..127 for HBM transport."""
    q = jnp.clip(jnp.round(masks_f32 * MASK_QUANT_MAX), 0.0, MASK_QUANT_MAX)
    return q.astype(jnp.int8)


def rise_kernel(masks_ref, weff_ref, sal_ref):
    """Grid: (core split c [parallel], cl tile j [parallel], mask tile i [reduction]).

    masks_ref: (TN, HWp)  int8   quantized mask rows (values 0..127)
    weff_ref:  (HWp, TCL) bf16   image-folded classifier weights
    sal_ref:   (TCL, HWp) f32    output block, resident across i
    The int8 scale (1/127) and the classifier bias are applied in the wrapper.
    """
    i = pl.program_id(2)

    # int8 -> bf16 is exact for 0..127; the VPU casts are free next to the MXU work.
    m_bf = masks_ref[...].astype(jnp.float32).astype(jnp.bfloat16)           # (TN, HWp)

    # model(stack) without bias, at raw int8 scale:
    #   p[n, cl] = sum_hw q[n, hw] * W_eff[hw, cl]
    p = jnp.dot(m_bf, weff_ref[...], preferred_element_type=jnp.float32)     # (TN, TCL)

    # partial sal[cl, hw] = sum_n p[n, cl] * q[n, hw]
    # (contraction on axis 0 of both operands -> (TCL, HWp); MXU-friendly shapes)
    contrib = lax.dot_general(
        p.astype(jnp.bfloat16), m_bf,
        dimension_numbers=(((0,), (0,)), ((), ())),
        preferred_element_type=jnp.float32)                                  # (TCL, HWp)

    @pl.when(i == 0)
    def _first():            # write directly on the first step: no zero-init RMW
        sal_ref[...] = contrib

    @pl.when(i > 0)
    def _accumulate():
        sal_ref[...] += contrib


def rise_forward(x, masks, w, b, *, p1=0.1, tile_n=None, tile_cl=None,
                 num_core_splits=None, vmem_budget_bytes=40 << 20):
    """x: (1,C,H,W)  masks: (N,1,H,W)  w: (C,H*W,CL)  b: (1,CL)  ->  sal: (CL,H,W)."""
    _, C, H, W = x.shape
    N = masks.shape[0]
    CL = w.shape[-1]
    HW = H * W
    hw_pad = _round_up(HW, 128)                      # lane-dense spatial axis

    # ---- one-time algebraic fold of the image into the classifier weights -----------
    x_flat = x.reshape(C, HW).astype(jnp.float32)
    w_eff = jnp.einsum('cs,csk->sk', x_flat, w.astype(jnp.float32))          # (HW, CL)

    # ---- tiling -----------------------------------------------------------------------
    if tile_cl is None:
        # 256 fills the v6e/v7x MXU when CL is large (e.g. 1000 classes); 128 otherwise
        # (128 is already optimal on v5e's 128x128 MXU).
        tile_cl = 256 if CL > 128 else 128
    cl_pad = _round_up(CL, tile_cl)
    num_cl_tiles = cl_pad // tile_cl

    # W_eff's index_map is constant across the reduction axis, so its second pipeline
    # buffer is never refilled; single-buffer it once the block is big enough for the
    # reclaimed VMEM to matter (large-HW / v7x regime). Keep default double-buffering
    # at small HW where the 2nd buffer costs nothing.
    weff_block_bytes = hw_pad * tile_cl * 2
    weff_single_buffer = weff_block_bytes >= (4 << 20)
    weff_bufs = 1 if weff_single_buffer else 2

    def step_vmem(tn):
        return (2 * tn * hw_pad * 1               # int8 mask tile, double-buffered
                + tn * hw_pad * 6                 # in-kernel f32+bf16 dequant temps
                + weff_bufs * hw_pad * tile_cl * 2
                + 2 * tile_cl * hw_pad * 4        # resident f32 output block
                + tile_cl * hw_pad * 4            # second-matmul result temp
                + tn * tile_cl * 8)               # p (f32 + bf16 copies)

    if tile_n is None:
        n_cap = max(128, _round_up(N, 128))
        tile_n = 128
        for cand in (1024, 512, 256, 128):        # biggest reduction tile that fits VMEM
            if cand <= n_cap and step_vmem(cand) <= vmem_budget_bytes:
                tile_n = cand
                break

    num_n_tiles = pl.cdiv(N, tile_n)
    if num_core_splits is None:
        # With CL padded into a single class tile the "parallel" class axis has extent 1;
        # split the mask tiles across a leading parallel axis instead so v7x's second
        # TensorCore gets work. Harmless (one extra slab add) on 1-TC chips.
        num_core_splits = 2 if (num_cl_tiles == 1 and num_n_tiles >= 2) else 1
    n_tiles_per_split = pl.cdiv(num_n_tiles, num_core_splits)
    n_pad = num_core_splits * n_tiles_per_split * tile_n

    # ---- host-side packing: int8 masks (dominant HBM stream), bf16 folded weights -----
    masks_f32 = masks.reshape(N, HW).astype(jnp.float32)
    colsum = jnp.sum(masks_f32, axis=0)                                      # (HW,)
    masks_q = jnp.pad(_quantize_masks(masks_f32),
                      ((0, n_pad - N), (0, hw_pad - HW)))    # zero rows/cols contribute 0
    w_eff_p = jnp.pad(w_eff, ((0, hw_pad - HW), (0, cl_pad - CL))).astype(jnp.bfloat16)

    # ---- pallas_call --------------------------------------------------------------------
    est = step_vmem(tile_n)
    vmem_limit = int(min(max(3 * est // 2 + (16 << 20), 32 << 20), 128 << 20))

    cost = pl.CostEstimate(
        flops=int(4 * N * HW * CL),               # true (unpadded) work of both matmuls
        transcendentals=0,
        bytes_accessed=int(N * HW * 1 * num_cl_tiles              # int8 masks (re-)stream
                           + hw_pad * cl_pad * 2                  # folded weights
                           + num_core_splits * cl_pad * hw_pad * 4))   # output slabs

    weff_spec_kwargs = {"pipeline_mode": pl.Buffered(1)} if weff_single_buffer else {}
    in_specs = [
        pl.BlockSpec((tile_n, hw_pad),
                     lambda c, j, i: (c * n_tiles_per_split + i, 0)),        # mask tile
        pl.BlockSpec((hw_pad, tile_cl), lambda c, j, i: (0, j),
                     **weff_spec_kwargs),                                    # folded weights
    ]
    out_spec = pl.BlockSpec((tile_cl, hw_pad),
                            lambda c, j, i: (c * num_cl_tiles + j, 0))       # resident acc

    partial_sal = pl.pallas_call(
        rise_kernel,
        out_shape=jax.ShapeDtypeStruct((num_core_splits * cl_pad, hw_pad), jnp.float32),
        grid=(num_core_splits, num_cl_tiles, n_tiles_per_split),
        in_specs=in_specs,
        out_specs=out_spec,
        compiler_params=pltpu.CompilerParams(
            dimension_semantics=("parallel", "parallel", "arbitrary"),
            vmem_limit_bytes=vmem_limit),
        cost_estimate=cost,
    )(masks_q, w_eff_p)

    # ---- combine core-split slabs, undo the int8 scale, add the hoisted bias -----------
    sal = partial_sal.reshape(num_core_splits, cl_pad, hw_pad).sum(axis=0)
    sal = sal[:CL, :HW] * (1.0 / (MASK_QUANT_MAX * MASK_QUANT_MAX))
    sal = sal + b.reshape(CL, 1).astype(jnp.float32) * colsum.reshape(1, HW)
    sal = sal * (1.0 / (N * p1))
    return sal.reshape(CL, H, W)


def rise_reference(x, masks, w, b, *, p1=0.1):
    """PyTorch-faithful full-precision reference."""
    _, C, H, W = x.shape
    N = masks.shape[0]
    CL = w.shape[-1]
    HW = H * W
    stack = masks * x                                                        # (N, C, H, W)
    p = stack.reshape(N, C * HW) @ w.reshape(C * HW, CL) + b.reshape(1, CL)
    sal = p.T @ masks.reshape(N, HW)
    return sal.reshape(CL, H, W) / N / p1


def rise_reference_matched(x, masks, w, b, *, p1=0.1):
    """Reference mirroring the kernel pipeline exactly: int8 mask transport, bf16 W_eff,
    bf16 re-cast of p at raw int8 scale, bias hoisted to a colsum term at the end."""
    _, C, H, W = x.shape
    N = masks.shape[0]
    CL = w.shape[-1]
    HW = H * W
    x_flat = x.reshape(C, HW).astype(jnp.float32)
    w_eff_q = jnp.einsum('cs,csk->sk', x_flat, w.astype(jnp.float32))
    w_eff_q = w_eff_q.astype(jnp.bfloat16).astype(jnp.float32)
    masks_f32 = masks.reshape(N, HW).astype(jnp.float32)
    q = _quantize_masks(masks_f32).astype(jnp.float32)        # raw 0..127 (exact in bf16)
    p_raw = (q @ w_eff_q).astype(jnp.bfloat16).astype(jnp.float32)
    sal = (p_raw.T @ q) * (1.0 / (MASK_QUANT_MAX * MASK_QUANT_MAX))
    colsum = jnp.sum(masks_f32, axis=0)
    sal = sal + b.reshape(CL, 1).astype(jnp.float32) * colsum.reshape(1, HW)
    sal = sal * (1.0 / (N * p1))
    return sal.reshape(CL, H, W)


if __name__ == "__main__":
    # Small, deterministic shapes. N=640 exercises the adaptive tile_n (512), the
    # core-split axis (2 splits x 1 mask tile) and zero-padding; CL=10 exercises the
    # lane padding to a single 128-wide class tile.
    N, C, H, W, CL = 640, 3, 32, 32, 10
    P1 = 0.1

    key = jax.random.PRNGKey(0)
    kx, km, kw, kb = jax.random.split(key, 4)

    x = jax.random.normal(kx, (1, C, H, W), dtype=jnp.float32)
    masks = jax.random.uniform(km, (N, 1, H, W), dtype=jnp.float32)  # synthetic RISE masks
    w = jax.random.normal(kw, (C, H * W, CL), dtype=jnp.float32) * 0.05
    b = jax.random.normal(kb, (1, CL), dtype=jnp.float32) * 0.1

    sal = jax.block_until_ready(rise_forward(x, masks, w, b, p1=P1))
    assert sal.shape == (CL, H, W)

    # Tight check against a reference that applies the exact same quantization pipeline
    # (validates kernel structure / indexing / accumulation).
    sal_ref_q = rise_reference_matched(x, masks, w, b, p1=P1)
    assert jnp.allclose(sal, sal_ref_q, atol=5e-3, rtol=5e-3), (
        float(jnp.max(jnp.abs(sal - sal_ref_q))))

    # Loose semantic check against the PyTorch-faithful full-precision reference
    # (tolerance accounts for intentional int8 mask transport + bf16 streaming).
    sal_ref = rise_reference(x, masks, w, b, p1=P1)
    rel_err = float(jnp.linalg.norm(sal - sal_ref) / jnp.linalg.norm(sal_ref))
    assert rel_err < 5e-2, rel_err

    print("KERNEL_OK")
</pallas_src>

<mosaic_0001>
module attributes {stable_mosaic.version = 11 : i64} {
  func.func @rise_kernel(%arg0: i32, %arg1: i32, %arg2: i32, %arg3: memref<512x1024xi8, #tpu.memory_space<vmem>>, %arg4: memref<1024x128xbf16, #tpu.memory_space<vmem>>, %arg5: memref<128x1024xf32, #tpu.memory_space<vmem>>) attributes {dimension_semantics = [#tpu.dimension_semantics<parallel>, #tpu.dimension_semantics<parallel>, #tpu.dimension_semantics<arbitrary>], iteration_bounds = array<i64: 2, 1, 1>, scalar_prefetch = 0 : i64, scratch_operands = 0 : i64, tpu.core_type = #tpu.core_type<tc>, window_params = [{transform_indices = @transform_0, window_bounds = array<i64: 512, 1024>}, {transform_indices = @transform_1, window_bounds = array<i64: 1024, 128>}, {transform_indices = @transform_2, window_bounds = array<i64: 128, 1024>}]} {
    %c0 = arith.constant 0 : index
    %c0_0 = arith.constant 0 : index
    %0 = vector.load %arg3[%c0, %c0_0] : memref<512x1024xi8, #tpu.memory_space<vmem>>, vector<512x1024xi8>
    %1 = arith.sitofp %0 : vector<512x1024xi8> to vector<512x1024xf32>
    %2 = arith.truncf %1 : vector<512x1024xf32> to vector<512x1024xbf16>
    %c0_1 = arith.constant 0 : index
    %c0_2 = arith.constant 0 : index
    %3 = vector.load %arg4[%c0_1, %c0_2] : memref<1024x128xbf16, #tpu.memory_space<vmem>>, vector<1024x128xbf16>
    %cst = arith.constant dense<0.000000e+00> : vector<512x128xf32>
    %4 = tpu.matmul %2, %3, %cst {dimension_numbers = #tpu.dot_dimension_numbers<[1], [0], [0], [1], [0, 0, 1, 1], [], []>} : vector<512x1024xbf16>, vector<1024x128xbf16>, vector<512x128xf32> -> vector<512x128xf32>
    %5 = arith.truncf %4 : vector<512x128xf32> to vector<512x128xbf16>
    %cst_3 = arith.constant dense<0.000000e+00> : vector<128x1024xf32>
    %6 = tpu.matmul %5, %2, %cst_3 {dimension_numbers = #tpu.dot_dimension_numbers<[0], [0], [1], [1], [0, 1, 1, 1], [], []>} : vector<512x128xbf16>, vector<512x1024xbf16>, vector<128x1024xf32> -> vector<128x1024xf32>
    %c0_i32 = arith.constant 0 : i32
    %7 = arith.cmpi eq, %arg2, %c0_i32 : i32
    %8 = arith.extui %7 : i1 to i32
    %c0_i32_4 = arith.constant 0 : i32
    %9 = arith.cmpi ne, %8, %c0_i32_4 : i32
    scf.if %9 {
      %c0_7 = arith.constant 0 : index
      %c0_8 = arith.constant 0 : index
      %13 = vector.load %arg5[%c0_7, %c0_8] : memref<128x1024xf32, #tpu.memory_space<vmem>>, vector<128x1024xf32>
      tpu.vector_store %arg5[%c0_7, %c0_8], %6 {strides = array<i32>} : memref<128x1024xf32, #tpu.memory_space<vmem>>, vector<128x1024xf32>,
    } else {
    }
    %c0_i32_5 = arith.constant 0 : i32
    %10 = arith.cmpi sgt, %arg2, %c0_i32_5 : i32
    %11 = arith.extui %10 : i1 to i32
    %c0_i32_6 = arith.constant 0 : i32
    %12 = arith.cmpi ne, %11, %c0_i32_6 : i32
    scf.if %12 {
      %c0_7 = arith.constant 0 : index
      %c0_8 = arith.constant 0 : index
      %13 = vector.load %arg5[%c0_7, %c0_8] : memref<128x1024xf32, #tpu.memory_space<vmem>>, vector<128x1024xf32>
      %14 = arith.addf %13, %6 : vector<128x1024xf32>
      %c0_9 = arith.constant 0 : index
      %c0_10 = arith.constant 0 : index
      %15 = vector.load %arg5[%c0_9, %c0_10] : memref<128x1024xf32, #tpu.memory_space<vmem>>, vector<128x1024xf32>
      tpu.vector_store %arg5[%c0_9, %c0_10], %14 {strides = array<i32>} : memref<128x1024xf32, #tpu.memory_space<vmem>>, vector<128x1024xf32>,
    } else {
    }
    return
  }
  func.func @transform_0(%arg0: i32, %arg1: i32, %arg2: i32) -> (i32, i32) {
    %c1_i32 = arith.constant 1 : i32
    %0 = arith.muli %arg0, %c1_i32 : i32
    %1 = arith.addi %0, %arg2 : i32
    %c0_i32 = arith.constant 0 : i32
    %c0_i32_0 = arith.constant 0 : i32
    return %1, %c0_i32 : i32, i32
  }
  func.func @transform_1(%arg0: i32, %arg1: i32, %arg2: i32) -> (i32, i32) {
    %c0_i32 = arith.constant 0 : i32
    %c0_i32_0 = arith.constant 0 : i32
    return %c0_i32, %arg1 : i32, i32
  }
  func.func @transform_2(%arg0: i32, %arg1: i32, %arg2: i32) -> (i32, i32) {
    %c1_i32 = arith.constant 1 : i32
    %0 = arith.muli %arg0, %c1_i32 : i32
    %1 = arith.addi %0, %arg1 : i32
    %c0_i32 = arith.constant 0 : i32
    %c0_i32_0 = arith.constant 0 : i32
    return %1, %c0_i32 : i32, i32
  }
}

</mosaic_0001>

<llo_original>
// kernel: tpu_custom_call.1
$region0: #{tpu_custom_call.1}
  #allocation0 [shape = 'u32[]', space=smem, size = 0x4, offset = 0x4, fixed_abs, tag = 'smem constant byte address 0x4 - core index']
  #allocation1 [shape = 'u32[72,128]{1,0:T(1,128)}', space=vmem, size = 0x9000, scoped, tag = 'internal scratch']
  %s0 = inlined_call_operand.hbm [shape: s8[1024,1024], index: 0, kind: input, shape index: {}]
  %s1 = inlined_call_operand.hbm [shape: bf16[1024,128], index: 1, kind: input, shape index: {}]
  %s2 = inlined_call_operand.hbm [shape: f32[256,1024], index: 2, kind: output, shape index: {}]
  %s3 = sld [smem:[#allocation0]]
  $region57: #{tpu_custom_call.1} parent=0
    _
  %s5 = ssub.s32 1, %s3
  %s6 = scalar_select 0, %s5, %s3
  $region1: #{tpu_custom_call.1} parent=0
    #allocation2 [shape = 'u8[1048576]{0}', space=vmem, size = 0x100000, scoped, tag = 'input window, operand 0']
    #allocation3 [shape = 's32[2]{0}', space=sflag, size = 0x8, scoped, tag = 'scoped memory for tpu_custom_call.1']
    #allocation4 [shape = 's32[2]{0}', space=sflag, size = 0x8, scoped, tag = 'scoped memory for tpu_custom_call.1']
    #allocation5 [shape = 'u8[262144]{0}', space=vmem, size = 0x40000, scoped, tag = 'input window, operand 1, single buffered']
    #allocation6 [shape = 's32[1]{0}', space=sflag, size = 0x4, scoped, tag = 'scoped memory for tpu_custom_call.1']
    #allocation7 [shape = 'u8[1048576]{0}', space=vmem, size = 0x100000, scoped, tag = 'output window, operand 0']
    %7 = vsyncpa [#allocation3], 0
    %s8 = scalar_lea.sflag [#allocation3], 1
    %9 = vsyncpa %s8, 0
    %10 = vsyncpa [#allocation6], 0
    %11 = vsyncpa [#allocation4], 0
    %s12 = scalar_lea.sflag [#allocation4], 1
    %13 = vsyncpa %s12, 0
    loop: start=0, step=1, limit=4
    $region2: #{tpu_custom_call.1} parent=1 // loop_pre_header
      _
    $region3: #{tpu_custom_call.1} parent=1 // loop_header
      %s15 = sphi 0, %s19
      %p16 = scmp.ge.s32.totalorder %s15, 4
      %s22 = sphi 0, %s41
      %s23 = sphi 0, %s37
      %s24 = sphi 0, %s33
      %s25 = sphi 0, %s22
      %s26 = sphi 0, %s23
      %s27 = sphi 0, %s24
      %s28 = sphi 0, %s25
      %s29 = sphi 0, %s26
      %s30 = sphi 0, %s27
      %s46 = sphi 0, %s48
      %s49 = sphi 0, %s46
      %s50 = sphi 0, %s49
      %s66 = sphi 0, %s50
      %s72 = sphi 0, %s74
      %s75 = sphi 0, %s72
      %s76 = sphi 0, %s75
      %s92 = sphi 0, %s76
      %s100 = sphi 0, %s102
      %s103 = sphi 0, %s100
      %s104 = sphi 0, %s103
      %s120 = sphi 0, %s104
    $region4: #{tpu_custom_call.1} parent=1 // loop_header_branch
      %18 = sbr.rel (%p16) target = $region8
    $region5: #{tpu_custom_call.1} parent=1 // loop_body
      %s20 = ssub.s32 %s15, 1
      %s21 = ssub.s32 %s15, 2
      %s31 = sadd.s32 1, %s24
      %p32 = scmp.ge.s32.totalorder %s31, 1
      %s33 = scalar_select %p32, 0, %s31
      %s34 = sadd.s32 1, %s23
      %s35 = scalar_select %p32, %s34, %s23
      %p36 = scmp.ge.s32.totalorder %s35, 1
      %s37 = scalar_select %p36, 0, %s35
      %s38 = sadd.s32 1, %s22
      %s39 = scalar_select %p36, %s38, %s22
      %p40 = scmp.ge.s32.totalorder %s39, 2
      %s41 = scalar_select %p40, 0, %s39
      %s42 = sadd.s32 %s22, %s24
      %s43 = sadd.s32 %s41, %s33
      %s44 = ssub.s32 %s42, %s43
      %p45 = scmp.eq.s32.totalorder %s44, 0
      %s47 = sadd.s32 %s46, 1
      %s48 = scalar_select %p45, %s46, %s47
      %p51 = pneg %p45
      %p52 = scmp.eq.s32.totalorder %s15, 1
      %p53 = por %p51, %p52
      %p54 = scmp.ne.s32.totalorder %s46, %s49
      %p55 = scmp.eq.s32.totalorder %s15, 0
      %p56 = por %p54, %p55
      %p57 = scmp.ne.s32.totalorder %s46, %s49
      %p58 = scmp.eq.s32.totalorder %s20, 1
      %p59 = por %p57, %p58
      %p60 = scmp.ne.s32.totalorder %s49, %s50
      %p61 = scmp.eq.s32.totalorder %s20, 0
      %p62 = por %p60, %p61
      %p63 = scmp.ne.s32.totalorder %s49, %s50
      %p64 = scmp.eq.s32.totalorder %s21, 1
      %p65 = por %p63, %p64
      %p67 = scmp.ne.s32.totalorder %s50, %s66
      %p68 = scmp.eq.s32.totalorder %s21, 0
      %p69 = por %p67, %p68
      %s70 = ssub.s32 %s23, %s37
      %p71 = scmp.eq.s32.totalorder %s70, 0
      %s73 = sadd.s32 %s72, 1
      %s74 = scalar_select %p71, %s72, %s73
      %p77 = pneg %p71
      %p78 = scmp.eq.s32.totalorder %s15, 1
      %p79 = por %p77, %p78
      %p80 = scmp.ne.s32.totalorder %s72, %s75
      %p81 = scmp.eq.s32.totalorder %s15, 0
      %p82 = por %p80, %p81
      %p83 = scmp.ne.s32.totalorder %s72, %s75
      %p84 = scmp.eq.s32.totalorder %s20, 1
      %p85 = por %p83, %p84
      %p86 = scmp.ne.s32.totalorder %s75, %s76
      %p87 = scmp.eq.s32.totalorder %s20, 0
      %p88 = por %p86, %p87
      %p89 = scmp.ne.s32.totalorder %s75, %s76
      %p90 = scmp.eq.s32.totalorder %s21, 1
      %p91 = por %p89, %p90
      %p93 = scmp.ne.s32.totalorder %s76, %s92
      %p94 = scmp.eq.s32.totalorder %s21, 0
      %p95 = por %p93, %p94
      %s96 = sadd.s32 %s22, %s23
      %s97 = sadd.s32 %s41, %s37
      %s98 = ssub.s32 %s96, %s97
      %p99 = scmp.eq.s32.totalorder %s98, 0
      %s101 = sadd.s32 %s100, 1
      %s102 = scalar_select %p99, %s100, %s101
      %p105 = pneg %p99
      %p106 = scmp.eq.s32.totalorder %s15, 1
      %p107 = por %p105, %p106
      %p108 = scmp.ne.s32.totalorder %s100, %s103
      %p109 = scmp.eq.s32.totalorder %s15, 0
      %p110 = por %p108, %p109
      %p111 = scmp.ne.s32.totalorder %s100, %s103
      %p112 = scmp.eq.s32.totalorder %s20, 1
      %p113 = por %p111, %p112
      %p114 = scmp.ne.s32.totalorder %s103, %s104
      %p115 = scmp.eq.s32.totalorder %s20, 0
      %p116 = por %p114, %p115
      %p117 = scmp.ne.s32.totalorder %s103, %s104
      %p118 = scmp.eq.s32.totalorder %s21, 1
      %p119 = por %p117, %p118
      %p121 = scmp.ne.s32.totalorder %s104, %s120
      %p122 = scmp.eq.s32.totalorder %s21, 0
      %p123 = por %p121, %p122
      %p124 = scmp.le.s32.totalorder 1, %s15
      %p125 = scmp.lt.s32.totalorder %s15, 3
      %p126 = pnand %p124, %p125
      %p127 = pneg %p126
      // Predicated region
      $region9: #{tpu_custom_call.1} parent=5 // pred_check
        _
      $region10: #{tpu_custom_call.1} parent=5 // pred_check_branch
        %129 = sbr.rel (%p126) target = $region12
      $region11: #{tpu_custom_call.1} parent=5 // pred_region
        %s130 = ssub.s32 %s15, 1
        // Predicated region
        $region13: #{tpu_custom_call.1} parent=11 // pred_check
          %p131 = pneg %p88
        $region14: #{tpu_custom_call.1} parent=11 // pred_check_branch
          %133 = sbr.rel (%p131) target = $region16
        $region15: #{tpu_custom_call.1} parent=11 // pred_region
          %135 = vsyncadd [#allocation6], 0
          %s136 = smul.addr %s26, 4
          %s137 = scalar_lea.hbm %s1, %s136
          %s138 = sshll.u32 %s137, 4
          %s139 = int_to_ptr.hbm [resolvable:$true] %s138
          %s140 = sshll.u32 [#allocation5], 4
          %s141 = int_to_ptr.vmem [resolvable:$true] %s140
          %146 = dma.hbm_to_vmem [thread:$0]  %s139, 8192, %s141, [#allocation6], 64, 64, 4
        $region16: #{tpu_custom_call.1} parent=11 // pred_fallthru
          _
      $region12: #{tpu_custom_call.1} parent=5 // pred_fallthru
        _
      %p147 = scmp.lt.s32.totalorder %s15, 2
      // Predicated region
      $region17: #{tpu_custom_call.1} parent=5 // pred_check
        %p148 = pneg %p147
      $region18: #{tpu_custom_call.1} parent=5 // pred_check_branch
        %150 = sbr.rel (%p148) target = $region20
      $region19: #{tpu_custom_call.1} parent=5 // pred_region
        // Predicated region
        $region21: #{tpu_custom_call.1} parent=19 // pred_check
          %p151 = pneg %p56
        $region22: #{tpu_custom_call.1} parent=19 // pred_check_branch
          %153 = sbr.rel (%p151) target = $region24
        $region23: #{tpu_custom_call.1} parent=19 // pred_region
          %s154 = sand.u32 %s46, 1
          %s155 = scalar_lea.sflag [#allocation3], %s154
          %s156 = sand.u32 %s46, 1
          %s157 = smul.addr %s156, 1024
          %s158 = scalar_lea.vmem [#allocation2], %s157
          %s159 = sadd.s32 %s22, %s24
          %s160 = smul.u32 16, %s159
          %162 = vsyncadd %s155, 0
          %s163 = smul.addr %s160, 8
          %s164 = smul.addr %s163, 8
          %s165 = scalar_lea.hbm %s0, %s164
          %s166 = sshll.u32 %s165, 4
          %s167 = int_to_ptr.hbm [resolvable:$true] %s166
          %s168 = sshll.u32 %s158, 4
          %s169 = int_to_ptr.vmem [resolvable:$true] %s168
          %174 = dma.hbm_to_vmem [thread:$0]  %s167, 16384, %s169, %s155, 1024, 1024, 64
        $region24: #{tpu_custom_call.1} parent=19 // pred_fallthru
          _
      $region20: #{tpu_custom_call.1} parent=5 // pred_fallthru
        _
      %p175 = scmp.le.s32.totalorder 1, %s15
      %p176 = scmp.lt.s32.totalorder %s15, 3
      %p177 = pnand %p175, %p176
      %p178 = pneg %p177
      // Predicated region
      $region25: #{tpu_custom_call.1} parent=5 // pred_check
        _
      $region26: #{tpu_custom_call.1} parent=5 // pred_check_branch
        %180 = sbr.rel (%p177) target = $region28
      $region27: #{tpu_custom_call.1} parent=5 // pred_region
        %s181 = ssub.s32 %s15, 1
        %s182 = sand.u32 %s49, 1
        %s183 = scalar_lea.sflag [#allocation3], %s182
        %s184 = sand.u32 %s49, 1
        %s185 = smul.addr %s184, 1024
        %s186 = scalar_lea.vmem [#allocation2], %s185
        // Predicated region
        $region29: #{tpu_custom_call.1} parent=27 // pred_check
          %p187 = pneg %p62
        $region30: #{tpu_custom_call.1} parent=27 // pred_check_branch
          %189 = sbr.rel (%p187) target = $region32
        $region31: #{tpu_custom_call.1} parent=27 // pred_region
          %191 = dma.done %s183, 16384
        $region32: #{tpu_custom_call.1} parent=27 // pred_fallthru
          _
        // Predicated region
        $region33: #{tpu_custom_call.1} parent=27 // pred_check
          %p192 = pneg %p88
        $region34: #{tpu_custom_call.1} parent=27 // pred_check_branch
          %194 = sbr.rel (%p192) target = $region36
        $region35: #{tpu_custom_call.1} parent=27 // pred_region
          %196 = dma.done [#allocation6], 8192
        $region36: #{tpu_custom_call.1} parent=27 // pred_fallthru
          _
        %s197 = sand.u32 %s49, 1
        %s198 = scalar_lea.sflag [#allocation3], %s197
        %s199 = sand.u32 %s49, 1
        %s200 = smul.addr %s199, 1024
        %s201 = scalar_lea.vmem [#allocation2], %s200
        %p202 = pneg %p62
        %p203 = pneg %p59
        %p204 = pneg %p88
        %p205 = pneg %p85
        %p206 = pneg %p116
        %p207 = pneg %p113
        %s208 = sand.u32 %s103, 1
        %s209 = scalar_lea.sflag [#allocation4], %s208
        %s210 = sand.u32 %s103, 1
        %s211 = smul.addr %s210, 1024
        %s212 = scalar_lea.vmem [#allocation7], %s211
        %s213 = sadd.s32 %s25, %s27
        %s214 = smul.u32 16, %s213
        %s215 = sadd.s32 %s25, %s26
        %s216 = smul.u32 16, %s215
        %v217 = vld [vmem:[%s186] sm:$0xff]
        %v218 = vld [vmem:[%s186 + $0x8] sm:$0xff]
        %v219 = vld [vmem:[%s186 + $0x10] sm:$0xff]
        %v220 = vld [vmem:[%s186 + $0x18] sm:$0xff]
        %v221 = vld [vmem:[%s186 + $0x20] sm:$0xff]
        %v222 = vld [vmem:[%s186 + $0x28] sm:$0xff]
        %v223 = vld [vmem:[%s186 + $0x30] sm:$0xff]
        %v224 = vld [vmem:[%s186 + $0x38] sm:$0xff]
        %v225 = vld [vmem:[%s186 + $0x40] sm:$0xff]
        %v226 = vld [vmem:[%s186 + $0x48] sm:$0xff]
        %v227 = vld [vmem:[%s186 + $0x50] sm:$0xff]
        %v228 = vld [vmem:[%s186 + $0x58] sm:$0xff]
        %v229 = vld [vmem:[%s186 + $0x60] sm:$0xff]
        %v230 = vld [vmem:[%s186 + $0x68] sm:$0xff]
        %v231 = vld [vmem:[%s186 + $0x70] sm:$0xff]
        %v232 = vld [vmem:[%s186 + $0x78] sm:$0xff]
        %v233 = vld [vmem:[%s186 + $0x80] sm:$0xff]
        %v234 = vld [vmem:[%s186 + $0x88] sm:$0xff]
        %v235 = vld [vmem:[%s186 + $0x90] sm:$0xff]
        %v236 = vld [vmem:[%s186 + $0x98] sm:$0xff]
        %v237 = vld [vmem:[%s186 + $0xa0] sm:$0xff]
        %v238 = vld [vmem:[%s186 + $0xa8] sm:$0xff]
        %v239 = vld [vmem:[%s186 + $0xb0] sm:$0xff]
        %v240 = vld [vmem:[%s186 + $0xb8] sm:$0xff]
        %v241 = vld [vmem:[%s186 + $0xc0] sm:$0xff]
        %v242 = vld [vmem:[%s186 + $0xc8] sm:$0xff]
        %v243 = vld [vmem:[%s186 + $0xd0] sm:$0xff]
        %v244 = vld [vmem:[%s186 + $0xd8] sm:$0xff]
        %v245 = vld [vmem:[%s186 + $0xe0] sm:$0xff]
        %v246 = vld [vmem:[%s186 + $0xe8] sm:$0xff]
        %v247 = vld [vmem:[%s186 + $0xf0] sm:$0xff]
        %v248 = vld [vmem:[%s186 + $0xf8] sm:$0xff]
        %v249 = vld [vmem:[%s186 + $0x100] sm:$0xff]
        %v250 = vld [vmem:[%s186 + $0x108] sm:$0xff]
        %v251 = vld [vmem:[%s186 + $0x110] sm:$0xff]
        %v252 = vld [vmem:[%s186 + $0x118] sm:$0xff]
        %v253 = vld [vmem:[%s186 + $0x120] sm:$0xff]
        %v254 = vld [vmem:[%s186 + $0x128] sm:$0xff]
        %v255 = vld [vmem:[%s186 + $0x130] sm:$0xff]
        %v256 = vld [vmem:[%s186 + $0x138] sm:$0xff]
        %v257 = vld [vmem:[%s186 + $0x140] sm:$0xff]
        %v258 = vld [vmem:[%s186 + $0x148] sm:$0xff]
        %v259 = vld [vmem:[%s186 + $0x150] sm:$0xff]
        %v260 = vld [vmem:[%s186 + $0x158] sm:$0xff]
        %v261 = vld [vmem:[%s186 + $0x160] sm:$0xff]
        %v262 = vld [vmem:[%s186 + $0x168] sm:$0xff]
        %v263 = vld [vmem:[%s186 + $0x170] sm:$0xff]
        %v264 = vld [vmem:[%s186 + $0x178] sm:$0xff]
        %v265 = vld [vmem:[%s186 + $0x180] sm:$0xff]
        %v266 = vld [vmem:[%s186 + $0x188] sm:$0xff]
        %v267 = vld [vmem:[%s186 + $0x190] sm:$0xff]
        %v268 = vld [vmem:[%s186 + $0x198] sm:$0xff]
        %v269 = vld [vmem:[%s186 + $0x1a0] sm:$0xff]
        %v270 = vld [vmem:[%s186 + $0x1a8] sm:$0xff]
        %v271 = vld [vmem:[%s186 + $0x1b0] sm:$0xff]
        %v272 = vld [vmem:[%s186 + $0x1b8] sm:$0xff]
        %v273 = vld [vmem:[%s186 + $0x1c0] sm:$0xff]
        %v274 = vld [vmem:[%s186 + $0x1c8] sm:$0xff]
        %v275 = vld [vmem:[%s186 + $0x1d0] sm:$0xff]
        %v276 = vld [vmem:[%s186 + $0x1d8] sm:$0xff]
        %v277 = vld [vmem:[%s186 + $0x1e0] sm:$0xff]
        %v278 = vld [vmem:[%s186 + $0x1e8] sm:$0xff]
        %v279 = vld [vmem:[%s186 + $0x1f0] sm:$0xff]
        %v280 = vld [vmem:[%s186 + $0x1f8] sm:$0xff]
        %v281 = vld [vmem:[%s186 + $0x200] sm:$0xff]
        %v282 = vld [vmem:[%s186 + $0x208] sm:$0xff]
        %v283 = vld [vmem:[%s186 + $0x210] sm:$0xff]
        %v284 = vld [vmem:[%s186 + $0x218] sm:$0xff]
        %v285 = vld [vmem:[%s186 + $0x220] sm:$0xff]
        %v286 = vld [vmem:[%s186 + $0x228] sm:$0xff]
        %v287 = vld [vmem:[%s186 + $0x230] sm:$0xff]
        %v288 = vld [vmem:[%s186 + $0x238] sm:$0xff]
        %v289 = vld [vmem:[%s186 + $0x240] sm:$0xff]
        %v290 = vld [vmem:[%s186 + $0x248] sm:$0xff]
        %v291 = vld [vmem:[%s186 + $0x250] sm:$0xff]
        %v292 = vld [vmem:[%s186 + $0x258] sm:$0xff]
        %v293 = vld [vmem:[%s186 + $0x260] sm:$0xff]
        %v294 = vld [vmem:[%s186 + $0x268] sm:$0xff]
        %v295 = vld [vmem:[%s186 + $0x270] sm:$0xff]
        %v296 = vld [vmem:[%s186 + $0x278] sm:$0xff]
        %v297 = vld [vmem:[%s186 + $0x280] sm:$0xff]
        %v298 = vld [vmem:[%s186 + $0x288] sm:$0xff]
        %v299 = vld [vmem:[%s186 + $0x290] sm:$0xff]
        %v300 = vld [vmem:[%s186 + $0x298] sm:$0xff]
        %v301 = vld [vmem:[%s186 + $0x2a0] sm:$0xff]
        %v302 = vld [vmem:[%s186 + $0x2a8] sm:$0xff]
        %v303 = vld [vmem:[%s186 + $0x2b0] sm:$0xff]
        %v304 = vld [vmem:[%s186 + $0x2b8] sm:$0xff]
        %v305 = vld [vmem:[%s186 + $0x2c0] sm:$0xff]
        %v306 = vld [vmem:[%s186 + $0x2c8] sm:$0xff]
        %v307 = vld [vmem:[%s186 + $0x2d0] sm:$0xff]
        %v308 = vld [vmem:[%s186 + $0x2d8] sm:$0xff]
        %v309 = vld [vmem:[%s186 + $0x2e0] sm:$0xff]
        %v310 = vld [vmem:[%s186 + $0x2e8] sm:$0xff]
        %v311 = vld [vmem:[%s186 + $0x2f0] sm:$0xff]
        %v312 = vld [vmem:[%s186 + $0x2f8] sm:$0xff]
        %v313 = vld [vmem:[%s186 + $0x300] sm:$0xff]
        %v314 = vld [vmem:[%s186 + $0x308] sm:$0xff]
        %v315 = vld [vmem:[%s186 + $0x310] sm:$0xff]
        %v316 = vld [vmem:[%s186 + $0x318] sm:$0xff]
        %v317 = vld [vmem:[%s186 + $0x320] sm:$0xff]
        %v318 = vld [vmem:[%s186 + $0x328] sm:$0xff]
        %v319 = vld [vmem:[%s186 + $0x330] sm:$0xff]
        %v320 = vld [vmem:[%s186 + $0x338] sm:$0xff]
        %v321 = vld [vmem:[%s186 + $0x340] sm:$0xff]
        %v322 = vld [vmem:[%s186 + $0x348] sm:$0xff]
        %v323 = vld [vmem:[%s186 + $0x350] sm:$0xff]
        %v324 = vld [vmem:[%s186 + $0x358] sm:$0xff]
        %v325 = vld [vmem:[%s186 + $0x360] sm:$0xff]
        %v326 = vld [vmem:[%s186 + $0x368] sm:$0xff]
        %v327 = vld [vmem:[%s186 + $0x370] sm:$0xff]
        %v328 = vld [vmem:[%s186 + $0x378] sm:$0xff]
        %v329 = vld [vmem:[%s186 + $0x380] sm:$0xff]
        %v330 = vld [vmem:[%s186 + $0x388] sm:$0xff]
        %v331 = vld [vmem:[%s186 + $0x390] sm:$0xff]
        %v332 = vld [vmem:[%s186 + $0x398] sm:$0xff]
        %v333 = vld [vmem:[%s186 + $0x3a0] sm:$0xff]
        %v334 = vld [vmem:[%s186 + $0x3a8] sm:$0xff]
        %v335 = vld [vmem:[%s186 + $0x3b0] sm:$0xff]
        %v336 = vld [vmem:[%s186 + $0x3b8] sm:$0xff]
        %v337 = vld [vmem:[%s186 + $0x3c0] sm:$0xff]
        %v338 = vld [vmem:[%s186 + $0x3c8] sm:$0xff]
        %v339 = vld [vmem:[%s186 + $0x3d0] sm:$0xff]
        %v340 = vld [vmem:[%s186 + $0x3d8] sm:$0xff]
        %v341 = vld [vmem:[%s186 + $0x3e0] sm:$0xff]
        %v342 = vld [vmem:[%s186 + $0x3e8] sm:$0xff]
        %v343 = vld [vmem:[%s186 + $0x3f0] sm:$0xff]
        %v344 = vld [vmem:[%s186 + $0x3f8] sm:$0xff]
        %v345 = vunpack.c.0.s8 %v217
        %v346 = vunpack.c.0.s8 %v218
        %v347 = vunpack.c.0.s8 %v219
        %v348 = vunpack.c.0.s8 %v220
        %v349 = vunpack.c.0.s8 %v221
        %v350 = vunpack.c.0.s8 %v222
        %v351 = vunpack.c.0.s8 %v223
        %v352 = vunpack.c.0.s8 %v224
        %v353 = vunpack.c.1.s8 %v217
        %v354 = vunpack.c.1.s8 %v218
        %v355 = vunpack.c.1.s8 %v219
        %v356 = vunpack.c.1.s8 %v220
        %v357 = vunpack.c.1.s8 %v221
        %v358 = vunpack.c.1.s8 %v222
        %v359 = vunpack.c.1.s8 %v223
        %v360 = vunpack.c.1.s8 %v224
        %v361 = vunpack.c.2.s8 %v217
        %v362 = vunpack.c.2.s8 %v218
        %v363 = vunpack.c.2.s8 %v219
        %v364 = vunpack.c.2.s8 %v220
        %v365 = vunpack.c.2.s8 %v221
        %v366 = vunpack.c.2.s8 %v222
        %v367 = vunpack.c.2.s8 %v223
        %v368 = vunpack.c.2.s8 %v224
        %v369 = vunpack.c.3.s8 %v217
        %v370 = vunpack.c.3.s8 %v218
        %v371 = vunpack.c.3.s8 %v219
        %v372 = vunpack.c.3.s8 %v220
        %v373 = vunpack.c.3.s8 %v221
        %v374 = vunpack.c.3.s8 %v222
        %v375 = vunpack.c.3.s8 %v223
        %v376 = vunpack.c.3.s8 %v224
        %v377 = vunpack.c.0.s8 %v225
        %v378 = vunpack.c.0.s8 %v226
        %v379 = vunpack.c.0.s8 %v227
        %v380 = vunpack.c.0.s8 %v228
        %v381 = vunpack.c.0.s8 %v229
        %v382 = vunpack.c.0.s8 %v230
        %v383 = vunpack.c.0.s8 %v231
        %v384 = vunpack.c.0.s8 %v232
        %v385 = vunpack.c.1.s8 %v225
        %v386 = vunpack.c.1.s8 %v226
        %v387 = vunpack.c.1.s8 %v227
        %v388 = vunpack.c.1.s8 %v228
        %v389 = vunpack.c.1.s8 %v229
        %v390 = vunpack.c.1.s8 %v230
        %v391 = vunpack.c.1.s8 %v231
        %v392 = vunpack.c.1.s8 %v232
        %v393 = vunpack.c.2.s8 %v225
        %v394 = vunpack.c.2.s8 %v226
        %v395 = vunpack.c.2.s8 %v227
        %v396 = vunpack.c.2.s8 %v228
        %v397 = vunpack.c.2.s8 %v229
        %v398 = vunpack.c.2.s8 %v230
        %v399 = vunpack.c.2.s8 %v231
        %v400 = vunpack.c.2.s8 %v232
        %v401 = vunpack.c.3.s8 %v225
        %v402 = vunpack.c.3.s8 %v226
        %v403 = vunpack.c.3.s8 %v227
        %v404 = vunpack.c.3.s8 %v228
        %v405 = vunpack.c.3.s8 %v229
        %v406 = vunpack.c.3.s8 %v230
        %v407 = vunpack.c.3.s8 %v231
        %v408 = vunpack.c.3.s8 %v232
        %v409 = vunpack.c.0.s8 %v233
        %v410 = vunpack.c.0.s8 %v234
        %v411 = vunpack.c.0.s8 %v235
        %v412 = vunpack.c.0.s8 %v236
        %v413 = vunpack.c.0.s8 %v237
        %v414 = vunpack.c.0.s8 %v238
        %v415 = vunpack.c.0.s8 %v239
        %v416 = vunpack.c.0.s8 %v240
        %v417 = vunpack.c.1.s8 %v233
        %v418 = vunpack.c.1.s8 %v234
        %v419 = vunpack.c.1.s8 %v235
        %v420 = vunpack.c.1.s8 %v236
        %v421 = vunpack.c.1.s8 %v237
        %v422 = vunpack.c.1.s8 %v238
        %v423 = vunpack.c.1.s8 %v239
        %v424 = vunpack.c.1.s8 %v240
        %v425 = vunpack.c.2.s8 %v233
        %v426 = vunpack.c.2.s8 %v234
        %v427 = vunpack.c.2.s8 %v235
        %v428 = vunpack.c.2.s8 %v236
        %v429 = vunpack.c.2.s8 %v237
        %v430 = vunpack.c.2.s8 %v238
        %v431 = vunpack.c.2.s8 %v239
        %v432 = vunpack.c.2.s8 %v240
        %v433 = vunpack.c.3.s8 %v233
        %v434 = vunpack.c.3.s8 %v234
        %v435 = vunpack.c.3.s8 %v235
        %v436 = vunpack.c.3.s8 %v236
        %v437 = vunpack.c.3.s8 %v237
        %v438 = vunpack.c.3.s8 %v238
        %v439 = vunpack.c.3.s8 %v239
        %v440 = vunpack.c.3.s8 %v240
        %v441 = vunpack.c.0.s8 %v241
        %v442 = vunpack.c.0.s8 %v242
        %v443 = vunpack.c.0.s8 %v243
        %v444 = vunpack.c.0.s8 %v244
        %v445 = vunpack.c.0.s8 %v245
        %v446 = vunpack.c.0.s8 %v246
        %v447 = vunpack.c.0.s8 %v247
        %v448 = vunpack.c.0.s8 %v248
        %v449 = vunpack.c.1.s8 %v241
        %v450 = vunpack.c.1.s8 %v242
        %v451 = vunpack.c.1.s8 %v243
        %v452 = vunpack.c.1.s8 %v244
        %v453 = vunpack.c.1.s8 %v245
        %v454 = vunpack.c.1.s8 %v246
        %v455 = vunpack.c.1.s8 %v247
        %v456 = vunpack.c.1.s8 %v248
        %v457 = vunpack.c.2.s8 %v241
        %v458 = vunpack.c.2.s8 %v242
        %v459 = vunpack.c.2.s8 %v243
        %v460 = vunpack.c.2.s8 %v244
        %v461 = vunpack.c.2.s8 %v245
        %v462 = vunpack.c.2.s8 %v246
        %v463 = vunpack.c.2.s8 %v247
        %v464 = vunpack.c.2.s8 %v248
        %v465 = vunpack.c.3.s8 %v241
        %v466 = vunpack.c.3.s8 %v242
        %v467 = vunpack.c.3.s8 %v243
        %v468 = vunpack.c.3.s8 %v244
        %v469 = vunpack.c.3.s8 %v245
        %v470 = vunpack.c.3.s8 %v246
        %v471 = vunpack.c.3.s8 %v247
        %v472 = vunpack.c.3.s8 %v248
        %v473 = vunpack.c.0.s8 %v249
        %v474 = vunpack.c.0.s8 %v250
        %v475 = vunpack.c.0.s8 %v251
        %v476 = vunpack.c.0.s8 %v252
        %v477 = vunpack.c.0.s8 %v253
        %v478 = vunpack.c.0.s8 %v254
        %v479 = vunpack.c.0.s8 %v255
        %v480 = vunpack.c.0.s8 %v256
        %v481 = vunpack.c.1.s8 %v249
        %v482 = vunpack.c.1.s8 %v250
        %v483 = vunpack.c.1.s8 %v251
        %v484 = vunpack.c.1.s8 %v252
        %v485 = vunpack.c.1.s8 %v253
        %v486 = vunpack.c.1.s8 %v254
        %v487 = vunpack.c.1.s8 %v255
        %v488 = vunpack.c.1.s8 %v256
        %v489 = vunpack.c.2.s8 %v249
        %v490 = vunpack.c.2.s8 %v250
        %v491 = vunpack.c.2.s8 %v251
        %v492 = vunpack.c.2.s8 %v252
        %v493 = vunpack.c.2.s8 %v253
        %v494 = vunpack.c.2.s8 %v254
        %v495 = vunpack.c.2.s8 %v255
        %v496 = vunpack.c.2.s8 %v256
        %v497 = vunpack.c.3.s8 %v249
        %v498 = vunpack.c.3.s8 %v250
        %v499 = vunpack.c.3.s8 %v251
        %v500 = vunpack.c.3.s8 %v252
        %v501 = vunpack.c.3.s8 %v253
        %v502 = vunpack.c.3.s8 %v254
        %v503 = vunpack.c.3.s8 %v255
        %v504 = vunpack.c.3.s8 %v256
        %v505 = vunpack.c.0.s8 %v257
        %v506 = vunpack.c.0.s8 %v258
        %v507 = vunpack.c.0.s8 %v259
        %v508 = vunpack.c.0.s8 %v260
        %v509 = vunpack.c.0.s8 %v261
        %v510 = vunpack.c.0.s8 %v262
        %v511 = vunpack.c.0.s8 %v263
        %v512 = vunpack.c.0.s8 %v264
        %v513 = vunpack.c.1.s8 %v257
        %v514 = vunpack.c.1.s8 %v258
        %v515 = vunpack.c.1.s8 %v259
        %v516 = vunpack.c.1.s8 %v260
        %v517 = vunpack.c.1.s8 %v261
        %v518 = vunpack.c.1.s8 %v262
        %v519 = vunpack.c.1.s8 %v263
        %v520 = vunpack.c.1.s8 %v264
        %v521 = vunpack.c.2.s8 %v257
        %v522 = vunpack.c.2.s8 %v258
        %v523 = vunpack.c.2.s8 %v259
        %v524 = vunpack.c.2.s8 %v260
        %v525 = vunpack.c.2.s8 %v261
        %v526 = vunpack.c.2.s8 %v262
        %v527 = vunpack.c.2.s8 %v263
        %v528 = vunpack.c.2.s8 %v264
        %v529 = vunpack.c.3.s8 %v257
        %v530 = vunpack.c.3.s8 %v258
        %v531 = vunpack.c.3.s8 %v259
        %v532 = vunpack.c.3.s8 %v260
        %v533 = vunpack.c.3.s8 %v261
        %v534 = vunpack.c.3.s8 %v262
        %v535 = vunpack.c.3.s8 %v263
        %v536 = vunpack.c.3.s8 %v264
        %v537 = vunpack.c.0.s8 %v265
        %v538 = vunpack.c.0.s8 %v266
        %v539 = vunpack.c.0.s8 %v267
        %v540 = vunpack.c.0.s8 %v268
        %v541 = vunpack.c.0.s8 %v269
        %v542 = vunpack.c.0.s8 %v270
        %v543 = vunpack.c.0.s8 %v271
        %v544 = vunpack.c.0.s8 %v272
        %v545 = vunpack.c.1.s8 %v265
        %v546 = vunpack.c.1.s8 %v266
        %v547 = vunpack.c.1.s8 %v267
        %v548 = vunpack.c.1.s8 %v268
        %v549 = vunpack.c.1.s8 %v269
        %v550 = vunpack.c.1.s8 %v270
        %v551 = vunpack.c.1.s8 %v271
        %v552 = vunpack.c.1.s8 %v272
        %v553 = vunpack.c.2.s8 %v265
        %v554 = vunpack.c.2.s8 %v266
        %v555 = vunpack.c.2.s8 %v267
        %v556 = vunpack.c.2.s8 %v268
        %v557 = vunpack.c.2.s8 %v269
        %v558 = vunpack.c.2.s8 %v270
        %v559 = vunpack.c.2.s8 %v271
        %v560 = vunpack.c.2.s8 %v272
        %v561 = vunpack.c.3.s8 %v265
        %v562 = vunpack.c.3.s8 %v266
        %v563 = vunpack.c.3.s8 %v267
        %v564 = vunpack.c.3.s8 %v268
        %v565 = vunpack.c.3.s8 %v269
        %v566 = vunpack.c.3.s8 %v270
        %v567 = vunpack.c.3.s8 %v271
        %v568 = vunpack.c.3.s8 %v272
        %v569 = vunpack.c.0.s8 %v273
        %v570 = vunpack.c.0.s8 %v274
        %v571 = vunpack.c.0.s8 %v275
        %v572 = vunpack.c.0.s8 %v276
        %v573 = vunpack.c.0.s8 %v277
        %v574 = vunpack.c.0.s8 %v278
        %v575 = vunpack.c.0.s8 %v279
        %v576 = vunpack.c.0.s8 %v280
        %v577 = vunpack.c.1.s8 %v273
        %v578 = vunpack.c.1.s8 %v274
        %v579 = vunpack.c.1.s8 %v275
        %v580 = vunpack.c.1.s8 %v276
        %v581 = vunpack.c.1.s8 %v277
        %v582 = vunpack.c.1.s8 %v278
        %v583 = vunpack.c.1.s8 %v279
        %v584 = vunpack.c.1.s8 %v280
        %v585 = vunpack.c.2.s8 %v273
        %v586 = vunpack.c.2.s8 %v274
        %v587 = vunpack.c.2.s8 %v275
        %v588 = vunpack.c.2.s8 %v276
        %v589 = vunpack.c.2.s8 %v277
        %v590 = vunpack.c.2.s8 %v278
        %v591 = vunpack.c.2.s8 %v279
        %v592 = vunpack.c.2.s8 %v280
        %v593 = vunpack.c.3.s8 %v273
        %v594 = vunpack.c.3.s8 %v274
        %v595 = vunpack.c.3.s8 %v275
        %v596 = vunpack.c.3.s8 %v276
        %v597 = vunpack.c.3.s8 %v277
        %v598 = vunpack.c.3.s8 %v278
        %v599 = vunpack.c.3.s8 %v279
        %v600 = vunpack.c.3.s8 %v280
        %v601 = vunpack.c.0.s8 %v281
        %v602 = vunpack.c.0.s8 %v282
        %v603 = vunpack.c.0.s8 %v283
        %v604 = vunpack.c.0.s8 %v284
        %v605 = vunpack.c.0.s8 %v285
        %v606 = vunpack.c.0.s8 %v286
        %v607 = vunpack.c.0.s8 %v287
        %v608 = vunpack.c.0.s8 %v288
        %v609 = vunpack.c.1.s8 %v281
        %v610 = vunpack.c.1.s8 %v282
        %v611 = vunpack.c.1.s8 %v283
        %v612 = vunpack.c.1.s8 %v284
        %v613 = vunpack.c.1.s8 %v285
        %v614 = vunpack.c.1.s8 %v286
        %v615 = vunpack.c.1.s8 %v287
        %v616 = vunpack.c.1.s8 %v288
        %v617 = vunpack.c.2.s8 %v281
        %v618 = vunpack.c.2.s8 %v282
        %v619 = vunpack.c.2.s8 %v283
        %v620 = vunpack.c.2.s8 %v284
        %v621 = vunpack.c.2.s8 %v285
        %v622 = vunpack.c.2.s8 %v286
        %v623 = vunpack.c.2.s8 %v287
        %v624 = vunpack.c.2.s8 %v288
        %v625 = vunpack.c.3.s8 %v281
        %v626 = vunpack.c.3.s8 %v282
        %v627 = vunpack.c.3.s8 %v283
        %v628 = vunpack.c.3.s8 %v284
        %v629 = vunpack.c.3.s8 %v285
        %v630 = vunpack.c.3.s8 %v286
        %v631 = vunpack.c.3.s8 %v287
        %v632 = vunpack.c.3.s8 %v288
        %v633 = vunpack.c.0.s8 %v289
        %v634 = vunpack.c.0.s8 %v290
        %v635 = vunpack.c.0.s8 %v291
        %v636 = vunpack.c.0.s8 %v292
        %v637 = vunpack.c.0.s8 %v293
        %v638 = vunpack.c.0.s8 %v294
        %v639 = vunpack.c.0.s8 %v295
        %v640 = vunpack.c.0.s8 %v296
        %v641 = vunpack.c.1.s8 %v289
        %v642 = vunpack.c.1.s8 %v290
        %v643 = vunpack.c.1.s8 %v291
        %v644 = vunpack.c.1.s8 %v292
        %v645 = vunpack.c.1.s8 %v293
        %v646 = vunpack.c.1.s8 %v294
        %v647 = vunpack.c.1.s8 %v295
        %v648 = vunpack.c.1.s8 %v296
        %v649 = vunpack.c.2.s8 %v289
        %v650 = vunpack.c.2.s8 %v290
        %v651 = vunpack.c.2.s8 %v291
        %v652 = vunpack.c.2.s8 %v292
        %v653 = vunpack.c.2.s8 %v293
        %v654 = vunpack.c.2.s8 %v294
        %v655 = vunpack.c.2.s8 %v295
        %v656 = vunpack.c.2.s8 %v296
        %v657 = vunpack.c.3.s8 %v289
        %v658 = vunpack.c.3.s8 %v290
        %v659 = vunpack.c.3.s8 %v291
        %v660 = vunpack.c.3.s8 %v292
        %v661 = vunpack.c.3.s8 %v293
        %v662 = vunpack.c.3.s8 %v294
        %v663 = vunpack.c.3.s8 %v295
        %v664 = vunpack.c.3.s8 %v296
        %v665 = vunpack.c.0.s8 %v297
        %v666 = vunpack.c.0.s8 %v298
        %v667 = vunpack.c.0.s8 %v299
        %v668 = vunpack.c.0.s8 %v300
        %v669 = vunpack.c.0.s8 %v301
        %v670 = vunpack.c.0.s8 %v302
        %v671 = vunpack.c.0.s8 %v303
        %v672 = vunpack.c.0.s8 %v304
        %v673 = vunpack.c.1.s8 %v297
        %v674 = vunpack.c.1.s8 %v298
        %v675 = vunpack.c.1.s8 %v299
        %v676 = vunpack.c.1.s8 %v300
        %v677 = vunpack.c.1.s8 %v301
        %v678 = vunpack.c.1.s8 %v302
        %v679 = vunpack.c.1.s8 %v303
        %v680 = vunpack.c.1.s8 %v304
        %v681 = vunpack.c.2.s8 %v297
        %v682 = vunpack.c.2.s8 %v298
        %v683 = vunpack.c.2.s8 %v299
        %v684 = vunpack.c.2.s8 %v300
        %v685 = vunpack.c.2.s8 %v301
        %v686 = vunpack.c.2.s8 %v302
        %v687 = vunpack.c.2.s8 %v303
        %v688 = vunpack.c.2.s8 %v304
        %v689 = vunpack.c.3.s8 %v297
        %v690 = vunpack.c.3.s8 %v298
        %v691 = vunpack.c.3.s8 %v299
        %v692 = vunpack.c.3.s8 %v300
        %v693 = vunpack.c.3.s8 %v301
        %v694 = vunpack.c.3.s8 %v302
        %v695 = vunpack.c.3.s8 %v303
        %v696 = vunpack.c.3.s8 %v304
        %v697 = vunpack.c.0.s8 %v305
        %v698 = vunpack.c.0.s8 %v306
        %v699 = vunpack.c.0.s8 %v307
        %v700 = vunpack.c.0.s8 %v308
        %v701 = vunpack.c.0.s8 %v309
        %v702 = vunpack.c.0.s8 %v310
        %v703 = vunpack.c.0.s8 %v311
        %v704 = vunpack.c.0.s8 %v312
        %v705 = vunpack.c.1.s8 %v305
        %v706 = vunpack.c.1.s8 %v306
        %v707 = vunpack.c.1.s8 %v307
        %v708 = vunpack.c.1.s8 %v308
        %v709 = vunpack.c.1.s8 %v309
        %v710 = vunpack.c.1.s8 %v310
        %v711 = vunpack.c.1.s8 %v311
        %v712 = vunpack.c.1.s8 %v312
        %v713 = vunpack.c.2.s8 %v305
        %v714 = vunpack.c.2.s8 %v306
        %v715 = vunpack.c.2.s8 %v307
        %v716 = vunpack.c.2.s8 %v308
        %v717 = vunpack.c.2.s8 %v309
        %v718 = vunpack.c.2.s8 %v310
        %v719 = vunpack.c.2.s8 %v311
        %v720 = vunpack.c.2.s8 %v312
        %v721 = vunpack.c.3.s8 %v305
        %v722 = vunpack.c.3.s8 %v306
        %v723 = vunpack.c.3.s8 %v307
        %v724 = vunpack.c.3.s8 %v308
        %v725 = vunpack.c.3.s8 %v309
        %v726 = vunpack.c.3.s8 %v310
        %v727 = vunpack.c.3.s8 %v311
        %v728 = vunpack.c.3.s8 %v312
        %v729 = vunpack.c.0.s8 %v313
        %v730 = vunpack.c.0.s8 %v314
        %v731 = vunpack.c.0.s8 %v315
        %v732 = vunpack.c.0.s8 %v316
        %v733 = vunpack.c.0.s8 %v317
        %v734 = vunpack.c.0.s8 %v318
        %v735 = vunpack.c.0.s8 %v319
        %v736 = vunpack.c.0.s8 %v320
        %v737 = vunpack.c.1.s8 %v313
        %v738 = vunpack.c.1.s8 %v314
        %v739 = vunpack.c.1.s8 %v315
        %v740 = vunpack.c.1.s8 %v316
        %v741 = vunpack.c.1.s8 %v317
        %v742 = vunpack.c.1.s8 %v318
        %v743 = vunpack.c.1.s8 %v319
        %v744 = vunpack.c.1.s8 %v320
        %v745 = vunpack.c.2.s8 %v313
        %v746 = vunpack.c.2.s8 %v314
        %v747 = vunpack.c.2.s8 %v315
        %v748 = vunpack.c.2.s8 %v316
        %v749 = vunpack.c.2.s8 %v317
        %v750 = vunpack.c.2.s8 %v318
        %v751 = vunpack.c.2.s8 %v319
        %v752 = vunpack.c.2.s8 %v320
        %v753 = vunpack.c.3.s8 %v313
        %v754 = vunpack.c.3.s8 %v314
        %v755 = vunpack.c.3.s8 %v315
        %v756 = vunpack.c.3.s8 %v316
        %v757 = vunpack.c.3.s8 %v317
        %v758 = vunpack.c.3.s8 %v318
        %v759 = vunpack.c.3.s8 %v319
        %v760 = vunpack.c.3.s8 %v320
        %v761 = vunpack.c.0.s8 %v321
        %v762 = vunpack.c.0.s8 %v322
        %v763 = vunpack.c.0.s8 %v323
        %v764 = vunpack.c.0.s8 %v324
        %v765 = vunpack.c.0.s8 %v325
        %v766 = vunpack.c.0.s8 %v326
        %v767 = vunpack.c.0.s8 %v327
        %v768 = vunpack.c.0.s8 %v328
        %v769 = vunpack.c.1.s8 %v321
        %v770 = vunpack.c.1.s8 %v322
        %v771 = vunpack.c.1.s8 %v323
        %v772 = vunpack.c.1.s8 %v324
        %v773 = vunpack.c.1.s8 %v325
        %v774 = vunpack.c.1.s8 %v326
        %v775 = vunpack.c.1.s8 %v327
        %v776 = vunpack.c.1.s8 %v328
        %v777 = vunpack.c.2.s8 %v321
        %v778 = vunpack.c.2.s8 %v322
        %v779 = vunpack.c.2.s8 %v323
        %v780 = vunpack.c.2.s8 %v324
        %v781 = vunpack.c.2.s8 %v325
        %v782 = vunpack.c.2.s8 %v326
        %v783 = vunpack.c.2.s8 %v327
        %v784 = vunpack.c.2.s8 %v328
        %v785 = vunpack.c.3.s8 %v321
        %v786 = vunpack.c.3.s8 %v322
        %v787 = vunpack.c.3.s8 %v323
        %v788 = vunpack.c.3.s8 %v324
        %v789 = vunpack.c.3.s8 %v325
        %v790 = vunpack.c.3.s8 %v326
        %v791 = vunpack.c.3.s8 %v327
        %v792 = vunpack.c.3.s8 %v328
        %v793 = vunpack.c.0.s8 %v329
        %v794 = vunpack.c.0.s8 %v330
        %v795 = vunpack.c.0.s8 %v331
        %v796 = vunpack.c.0.s8 %v332
        %v797 = vunpack.c.0.s8 %v333
        %v798 = vunpack.c.0.s8 %v334
        %v799 = vunpack.c.0.s8 %v335
        %v800 = vunpack.c.0.s8 %v336
        %v801 = vunpack.c.1.s8 %v329
        %v802 = vunpack.c.1.s8 %v330
        %v803 = vunpack.c.1.s8 %v331
        %v804 = vunpack.c.1.s8 %v332
        %v805 = vunpack.c.1.s8 %v333
        %v806 = vunpack.c.1.s8 %v334
        %v807 = vunpack.c.1.s8 %v335
        %v808 = vunpack.c.1.s8 %v336
        %v809 = vunpack.c.2.s8 %v329
        %v810 = vunpack.c.2.s8 %v330
        %v811 = vunpack.c.2.s8 %v331
        %v812 = vunpack.c.2.s8 %v332
        %v813 = vunpack.c.2.s8 %v333
        %v814 = vunpack.c.2.s8 %v334
        %v815 = vunpack.c.2.s8 %v335
        %v816 = vunpack.c.2.s8 %v336
        %v817 = vunpack.c.3.s8 %v329
        %v818 = vunpack.c.3.s8 %v330
        %v819 = vunpack.c.3.s8 %v331
        %v820 = vunpack.c.3.s8 %v332
        %v821 = vunpack.c.3.s8 %v333
        %v822 = vunpack.c.3.s8 %v334
        %v823 = vunpack.c.3.s8 %v335
        %v824 = vunpack.c.3.s8 %v336
        %v825 = vunpack.c.0.s8 %v337
        %v826 = vunpack.c.0.s8 %v338
        %v827 = vunpack.c.0.s8 %v339
        %v828 = vunpack.c.0.s8 %v340
        %v829 = vunpack.c.0.s8 %v341
        %v830 = vunpack.c.0.s8 %v342
        %v831 = vunpack.c.0.s8 %v343
        %v832 = vunpack.c.0.s8 %v344
        %v833 = vunpack.c.1.s8 %v337
        %v834 = vunpack.c.1.s8 %v338
        %v835 = vunpack.c.1.s8 %v339
        %v836 = vunpack.c.1.s8 %v340
        %v837 = vunpack.c.1.s8 %v341
        %v838 = vunpack.c.1.s8 %v342
        %v839 = vunpack.c.1.s8 %v343
        %v840 = vunpack.c.1.s8 %v344
        %v841 = vunpack.c.2.s8 %v337
        %v842 = vunpack.c.2.s8 %v338
        %v843 = vunpack.c.2.s8 %v339
        %v844 = vunpack.c.2.s8 %v340
        %v845 = vunpack.c.2.s8 %v341
        %v846 = vunpack.c.2.s8 %v342
        %v847 = vunpack.c.2.s8 %v343
        %v848 = vunpack.c.2.s8 %v344
        %v849 = vunpack.c.3.s8 %v337
        %v850 = vunpack.c.3.s8 %v338
        %v851 = vunpack.c.3.s8 %v339
        %v852 = vunpack.c.3.s8 %v340
        %v853 = vunpack.c.3.s8 %v341
        %v854 = vunpack.c.3.s8 %v342
        %v855 = vunpack.c.3.s8 %v343
        %v856 = vunpack.c.3.s8 %v344
        %v857 = vcvt.s32.f32 %v345
        %v858 = vcvt.s32.f32 %v346
        %v859 = vcvt.s32.f32 %v347
        %v860 = vcvt.s32.f32 %v348
        %v861 = vcvt.s32.f32 %v349
        %v862 = vcvt.s32.f32 %v350
        %v863 = vcvt.s32.f32 %v351
        %v864 = vcvt.s32.f32 %v352
        %v865 = vcvt.s32.f32 %v353
        %v866 = vcvt.s32.f32 %v354
        %v867 = vcvt.s32.f32 %v355
        %v868 = vcvt.s32.f32 %v356
        %v869 = vcvt.s32.f32 %v357
        %v870 = vcvt.s32.f32 %v358
        %v871 = vcvt.s32.f32 %v359
        %v872 = vcvt.s32.f32 %v360
        %v873 = vcvt.s32.f32 %v361
        %v874 = vcvt.s32.f32 %v362
        %v875 = vcvt.s32.f32 %v363
        %v876 = vcvt.s32.f32 %v364
        %v877 = vcvt.s32.f32 %v365
        %v878 = vcvt.s32.f32 %v366
        %v879 = vcvt.s32.f32 %v367
        %v880 = vcvt.s32.f32 %v368
        %v881 = vcvt.s32.f32 %v369
        %v882 = vcvt.s32.f32 %v370
        %v883 = vcvt.s32.f32 %v371
        %v884 = vcvt.s32.f32 %v372
        %v885 = vcvt.s32.f32 %v373
        %v886 = vcvt.s32.f32 %v374
        %v887 = vcvt.s32.f32 %v375
        %v888 = vcvt.s32.f32 %v376
        %v889 = vcvt.s32.f32 %v377
        %v890 = vcvt.s32.f32 %v378
        %v891 = vcvt.s32.f32 %v379
        %v892 = vcvt.s32.f32 %v380
        %v893 = vcvt.s32.f32 %v381
        %v894 = vcvt.s32.f32 %v382
        %v895 = vcvt.s32.f32 %v383
        %v896 = vcvt.s32.f32 %v384
        %v897 = vcvt.s32.f32 %v385
        %v898 = vcvt.s32.f32 %v386
        %v899 = vcvt.s32.f32 %v387
        %v900 = vcvt.s32.f32 %v388
        %v901 = vcvt.s32.f32 %v389
        %v902 = vcvt.s32.f32 %v390
        %v903 = vcvt.s32.f32 %v391
        %v904 = vcvt.s32.f32 %v392
        %v905 = vcvt.s32.f32 %v393
        %v906 = vcvt.s32.f32 %v394
        %v907 = vcvt.s32.f32 %v395
        %v908 = vcvt.s32.f32 %v396
        %v909 = vcvt.s32.f32 %v397
        %v910 = vcvt.s32.f32 %v398
        %v911 = vcvt.s32.f32 %v399
        %v912 = vcvt.s32.f32 %v400
        %v913 = vcvt.s32.f32 %v401
        %v914 = vcvt.s32.f32 %v402
        %v915 = vcvt.s32.f32 %v403
        %v916 = vcvt.s32.f32 %v404
        %v917 = vcvt.s32.f32 %v405
        %v918 = vcvt.s32.f32 %v406
        %v919 = vcvt.s32.f32 %v407
        %v920 = vcvt.s32.f32 %v408
        %v921 = vcvt.s32.f32 %v409
        %v922 = vcvt.s32.f32 %v410
        %v923 = vcvt.s32.f32 %v411
        %v924 = vcvt.s32.f32 %v412
        %v925 = vcvt.s32.f32 %v413
        %v926 = vcvt.s32.f32 %v414
        %v927 = vcvt.s32.f32 %v415
        %v928 = vcvt.s32.f32 %v416
        %v929 = vcvt.s32.f32 %v417
        %v930 = vcvt.s32.f32 %v418
        %v931 = vcvt.s32.f32 %v419
        %v932 = vcvt.s32.f32 %v420
        %v933 = vcvt.s32.f32 %v421
        %v934 = vcvt.s32.f32 %v422
        %v935 = vcvt.s32.f32 %v423
        %v936 = vcvt.s32.f32 %v424
        %v937 = vcvt.s32.f32 %v425
        %v938 = vcvt.s32.f32 %v426
        %v939 = vcvt.s32.f32 %v427
        %v940 = vcvt.s32.f32 %v428
        %v941 = vcvt.s32.f32 %v429
        %v942 = vcvt.s32.f32 %v430
        %v943 = vcvt.s32.f32 %v431
        %v944 = vcvt.s32.f32 %v432
        %v945 = vcvt.s32.f32 %v433
        %v946 = vcvt.s32.f32 %v434
        %v947 = vcvt.s32.f32 %v435
        %v948 = vcvt.s32.f32 %v436
        %v949 = vcvt.s32.f32 %v437
        %v950 = vcvt.s32.f32 %v438
        %v951 = vcvt.s32.f32 %v439
        %v952 = vcvt.s32.f32 %v440
        %v953 = vcvt.s32.f32 %v441
        %v954 = vcvt.s32.f32 %v442
        %v955 = vcvt.s32.f32 %v443
        %v956 = vcvt.s32.f32 %v444
        %v957 = vcvt.s32.f32 %v445
        %v958 = vcvt.s32.f32 %v446
        %v959 = vcvt.s32.f32 %v447
        %v960 = vcvt.s32.f32 %v448
        %v961 = vcvt.s32.f32 %v449
        %v962 = vcvt.s32.f32 %v450
        %v963 = vcvt.s32.f32 %v451
        %v964 = vcvt.s32.f32 %v452
        %v965 = vcvt.s32.f32 %v453
        %v966 = vcvt.s32.f32 %v454
        %v967 = vcvt.s32.f32 %v455
        %v968 = vcvt.s32.f32 %v456
        %v969 = vcvt.s32.f32 %v457
        %v970 = vcvt.s32.f32 %v458
        %v971 = vcvt.s32.f32 %v459
        %v972 = vcvt.s32.f32 %v460
        %v973 = vcvt.s32.f32 %v461
        %v974 = vcvt.s32.f32 %v462
        %v975 = vcvt.s32.f32 %v463
        %v976 = vcvt.s32.f32 %v464
        %v977 = vcvt.s32.f32 %v465
        %v978 = vcvt.s32.f32 %v466
        %v979 = vcvt.s32.f32 %v467
        %v980 = vcvt.s32.f32 %v468
        %v981 = vcvt.s32.f32 %v469
        %v982 = vcvt.s32.f32 %v470
        %v983 = vcvt.s32.f32 %v471
        %v984 = vcvt.s32.f32 %v472
        %v985 = vcvt.s32.f32 %v473
        %v986 = vcvt.s32.f32 %v474
        %v987 = vcvt.s32.f32 %v475
        %v988 = vcvt.s32.f32 %v476
        %v989 = vcvt.s32.f32 %v477
        %v990 = vcvt.s32.f32 %v478
        %v991 = vcvt.s32.f32 %v479
        %v992 = vcvt.s32.f32 %v480
        %v993 = vcvt.s32.f32 %v481
        %v994 = vcvt.s32.f32 %v482
        %v995 = vcvt.s32.f32 %v483
        %v996 = vcvt.s32.f32 %v484
        %v997 = vcvt.s32.f32 %v485
        %v998 = vcvt.s32.f32 %v486
        %v999 = vcvt.s32.f32 %v487
        %v1000 = vcvt.s32.f32 %v488
        %v1001 = vcvt.s32.f32 %v489
        %v1002 = vcvt.s32.f32 %v490
        %v1003 = vcvt.s32.f32 %v491
        %v1004 = vcvt.s32.f32 %v492
        %v1005 = vcvt.s32.f32 %v493
        %v1006 = vcvt.s32.f32 %v494
        %v1007 = vcvt.s32.f32 %v495
        %v1008 = vcvt.s32.f32 %v496
        %v1009 = vcvt.s32.f32 %v497
        %v1010 = vcvt.s32.f32 %v498
        %v1011 = vcvt.s32.f32 %v499
        %v1012 = vcvt.s32.f32 %v500
        %v1013 = vcvt.s32.f32 %v501
        %v1014 = vcvt.s32.f32 %v502
        %v1015 = vcvt.s32.f32 %v503
        %v1016 = vcvt.s32.f32 %v504
        %v1017 = vcvt.s32.f32 %v505
        %v1018 = vcvt.s32.f32 %v506
        %v1019 = vcvt.s32.f32 %v507
        %v1020 = vcvt.s32.f32 %v508
        %v1021 = vcvt.s32.f32 %v509
        %v1022 = vcvt.s32.f32 %v510
        %v1023 = vcvt.s32.f32 %v511
        %v1024 = vcvt.s32.f32 %v512
        %v1025 = vcvt.s32.f32 %v513
        %v1026 = vcvt.s32.f32 %v514
        %v1027 = vcvt.s32.f32 %v515
        %v1028 = vcvt.s32.f32 %v516
        %v1029 = vcvt.s32.f32 %v517
        %v1030 = vcvt.s32.f32 %v518
        %v1031 = vcvt.s32.f32 %v519
        %v1032 = vcvt.s32.f32 %v520
        %v1033 = vcvt.s32.f32 %v521
        %v1034 = vcvt.s32.f32 %v522
        %v1035 = vcvt.s32.f32 %v523
        %v1036 = vcvt.s32.f32 %v524
        %v1037 = vcvt.s32.f32 %v525
        %v1038 = vcvt.s32.f32 %v526
        %v1039 = vcvt.s32.f32 %v527
        %v1040 = vcvt.s32.f32 %v528
        %v1041 = vcvt.s32.f32 %v529
        %v1042 = vcvt.s32.f32 %v530
        %v1043 = vcvt.s32.f32 %v531
        %v1044 = vcvt.s32.f32 %v532
        %v1045 = vcvt.s32.f32 %v533
        %v1046 = vcvt.s32.f32 %v534
        %v1047 = vcvt.s32.f32 %v535
        %v1048 = vcvt.s32.f32 %v536
        %v1049 = vcvt.s32.f32 %v537
        %v1050 = vcvt.s32.f32 %v538
        %v1051 = vcvt.s32.f32 %v539
        %v1052 = vcvt.s32.f32 %v540
        %v1053 = vcvt.s32.f32 %v541
        %v1054 = vcvt.s32.f32 %v542
        %v1055 = vcvt.s32.f32 %v543
        %v1056 = vcvt.s32.f32 %v544
        %v1057 = vcvt.s32.f32 %v545
        %v1058 = vcvt.s32.f32 %v546
        %v1059 = vcvt.s32.f32 %v547
        %v1060 = vcvt.s32.f32 %v548
        %v1061 = vcvt.s32.f32 %v549
        %v1062 = vcvt.s32.f32 %v550
        %v1063 = vcvt.s32.f32 %v551
        %v1064 = vcvt.s32.f32 %v552
        %v1065 = vcvt.s32.f32 %v553
        %v1066 = vcvt.s32.f32 %v554
        %v1067 = vcvt.s32.f32 %v555
        %v1068 = vcvt.s32.f32 %v556
        %v1069 = vcvt.s32.f32 %v557
        %v1070 = vcvt.s32.f32 %v558
        %v1071 = vcvt.s32.f32 %v559
        %v1072 = vcvt.s32.f32 %v560
        %v1073 = vcvt.s32.f32 %v561
        %v1074 = vcvt.s32.f32 %v562
        %v1075 = vcvt.s32.f32 %v563
        %v1076 = vcvt.s32.f32 %v564
        %v1077 = vcvt.s32.f32 %v565
        %v1078 = vcvt.s32.f32 %v566
        %v1079 = vcvt.s32.f32 %v567
        %v1080 = vcvt.s32.f32 %v568
        %v1081 = vcvt.s32.f32 %v569
        %v1082 = vcvt.s32.f32 %v570
        %v1083 = vcvt.s32.f32 %v571
        %v1084 = vcvt.s32.f32 %v572
        %v1085 = vcvt.s32.f32 %v573
        %v1086 = vcvt.s32.f32 %v574
        %v1087 = vcvt.s32.f32 %v575
        %v1088 = vcvt.s32.f32 %v576
        %v1089 = vcvt.s32.f32 %v577
        %v1090 = vcvt.s32.f32 %v578
        %v1091 = vcvt.s32.f32 %v579
        %v1092 = vcvt.s32.f32 %v580
        %v1093 = vcvt.s32.f32 %v581
        %v1094 = vcvt.s32.f32 %v582
        %v1095 = vcvt.s32.f32 %v583
        %v1096 = vcvt.s32.f32 %v584
        %v1097 = vcvt.s32.f32 %v585
        %v1098 = vcvt.s32.f32 %v586
        %v1099 = vcvt.s32.f32 %v587
        %v1100 = vcvt.s32.f32 %v588
        %v1101 = vcvt.s32.f32 %v589
        %v1102 = vcvt.s32.f32 %v590
        %v1103 = vcvt.s32.f32 %v591
        %v1104 = vcvt.s32.f32 %v592
        %v1105 = vcvt.s32.f32 %v593
        %v1106 = vcvt.s32.f32 %v594
        %v1107 = vcvt.s32.f32 %v595
        %v1108 = vcvt.s32.f32 %v596
        %v1109 = vcvt.s32.f32 %v597
        %v1110 = vcvt.s32.f32 %v598
        %v1111 = vcvt.s32.f32 %v599
        %v1112 = vcvt.s32.f32 %v600
        %v1113 = vcvt.s32.f32 %v601
        %v1114 = vcvt.s32.f32 %v602
        %v1115 = vcvt.s32.f32 %v603
        %v1116 = vcvt.s32.f32 %v604
        %v1117 = vcvt.s32.f32 %v605
        %v1118 = vcvt.s32.f32 %v606
        %v1119 = vcvt.s32.f32 %v607
        %v1120 = vcvt.s32.f32 %v608
        %v1121 = vcvt.s32.f32 %v609
        %v1122 = vcvt.s32.f32 %v610
        %v1123 = vcvt.s32.f32 %v611
        %v1124 = vcvt.s32.f32 %v612
        %v1125 = vcvt.s32.f32 %v613
        %v1126 = vcvt.s32.f32 %v614
        %v1127 = vcvt.s32.f32 %v615
        %v1128 = vcvt.s32.f32 %v616
        %v1129 = vcvt.s32.f32 %v617
        %v1130 = vcvt.s32.f32 %v618
        %v1131 = vcvt.s32.f32 %v619
        %v1132 = vcvt.s32.f32 %v620
        %v1133 = vcvt.s32.f32 %v621
        %v1134 = vcvt.s32.f32 %v622
        %v1135 = vcvt.s32.f32 %v623
        %v1136 = vcvt.s32.f32 %v624
        %v1137 = vcvt.s32.f32 %v625
        %v1138 = vcvt.s32.f32 %v626
        %v1139 = vcvt.s32.f32 %v627
        %v1140 = vcvt.s32.f32 %v628
        %v1141 = vcvt.s32.f32 %v629
        %v1142 = vcvt.s32.f32 %v630
        %v1143 = vcvt.s32.f32 %v631
        %v1144 = vcvt.s32.f32 %v632
        %v1145 = vcvt.s32.f32 %v633
        %v1146 = vcvt.s32.f32 %v634
        %v1147 = vcvt.s32.f32 %v635
        %v1148 = vcvt.s32.f32 %v636
        %v1149 = vcvt.s32.f32 %v637
        %v1150 = vcvt.s32.f32 %v638
        %v1151 = vcvt.s32.f32 %v639
        %v1152 = vcvt.s32.f32 %v640
        %v1153 = vcvt.s32.f32 %v641
        %v1154 = vcvt.s32.f32 %v642
        %v1155 = vcvt.s32.f32 %v643
        %v1156 = vcvt.s32.f32 %v644
        %v1157 = vcvt.s32.f32 %v645
        %v1158 = vcvt.s32.f32 %v646
        %v1159 = vcvt.s32.f32 %v647
        %v1160 = vcvt.s32.f32 %v648
        %v1161 = vcvt.s32.f32 %v649
        %v1162 = vcvt.s32.f32 %v650
        %v1163 = vcvt.s32.f32 %v651
        %v1164 = vcvt.s32.f32 %v652
        %v1165 = vcvt.s32.f32 %v653
        %v1166 = vcvt.s32.f32 %v654
        %v1167 = vcvt.s32.f32 %v655
        %v1168 = vcvt.s32.f32 %v656
        %v1169 = vcvt.s32.f32 %v657
        %v1170 = vcvt.s32.f32 %v658
        %v1171 = vcvt.s32.f32 %v659
        %v1172 = vcvt.s32.f32 %v660
        %v1173 = vcvt.s32.f32 %v661
        %v1174 = vcvt.s32.f32 %v662
        %v1175 = vcvt.s32.f32 %v663
        %v1176 = vcvt.s32.f32 %v664
        %v1177 = vcvt.s32.f32 %v665
        %v1178 = vcvt.s32.f32 %v666
        %v1179 = vcvt.s32.f32 %v667
        %v1180 = vcvt.s32.f32 %v668
        %v1181 = vcvt.s32.f32 %v669
        %v1182 = vcvt.s32.f32 %v670
        %v1183 = vcvt.s32.f32 %v671
        %v1184 = vcvt.s32.f32 %v672
        %v1185 = vcvt.s32.f32 %v673
        %v1186 = vcvt.s32.f32 %v674
        %v1187 = vcvt.s32.f32 %v675
        %v1188 = vcvt.s32.f32 %v676
        %v1189 = vcvt.s32.f32 %v677
        %v1190 = vcvt.s32.f32 %v678
        %v1191 = vcvt.s32.f32 %v679
        %v1192 = vcvt.s32.f32 %v680
        %v1193 = vcvt.s32.f32 %v681
        %v1194 = vcvt.s32.f32 %v682
        %v1195 = vcvt.s32.f32 %v683
        %v1196 = vcvt.s32.f32 %v684
        %v1197 = vcvt.s32.f32 %v685
        %v1198 = vcvt.s32.f32 %v686
        %v1199 = vcvt.s32.f32 %v687
        %v1200 = vcvt.s32.f32 %v688
        %v1201 = vcvt.s32.f32 %v689
        %v1202 = vcvt.s32.f32 %v690
        %v1203 = vcvt.s32.f32 %v691
        %v1204 = vcvt.s32.f32 %v692
        %v1205 = vcvt.s32.f32 %v693
        %v1206 = vcvt.s32.f32 %v694
        %v1207 = vcvt.s32.f32 %v695
        %v1208 = vcvt.s32.f32 %v696
        %v1209 = vcvt.s32.f32 %v697
        %v1210 = vcvt.s32.f32 %v698
        %v1211 = vcvt.s32.f32 %v699
        %v1212 = vcvt.s32.f32 %v700
        %v1213 = vcvt.s32.f32 %v701
        %v1214 = vcvt.s32.f32 %v702
        %v1215 = vcvt.s32.f32 %v703
        %v1216 = vcvt.s32.f32 %v704
        %v1217 = vcvt.s32.f32 %v705
        %v1218 = vcvt.s32.f32 %v706
        %v1219 = vcvt.s32.f32 %v707
        %v1220 = vcvt.s32.f32 %v708
        %v1221 = vcvt.s32.f32 %v709
        %v1222 = vcvt.s32.f32 %v710
        %v1223 = vcvt.s32.f32 %v711
        %v1224 = vcvt.s32.f32 %v712
        %v1225 = vcvt.s32.f32 %v713
        %v1226 = vcvt.s32.f32 %v714
        %v1227 = vcvt.s32.f32 %v715
        %v1228 = vcvt.s32.f32 %v716
        %v1229 = vcvt.s32.f32 %v717
        %v1230 = vcvt.s32.f32 %v718
        %v1231 = vcvt.s32.f32 %v719
        %v1232 = vcvt.s32.f32 %v720
        %v1233 = vcvt.s32.f32 %v721
        %v1234 = vcvt.s32.f32 %v722
        %v1235 = vcvt.s32.f32 %v723
        %v1236 = vcvt.s32.f32 %v724
        %v1237 = vcvt.s32.f32 %v725
        %v1238 = vcvt.s32.f32 %v726
        %v1239 = vcvt.s32.f32 %v727
        %v1240 = vcvt.s32.f32 %v728
        %v1241 = vcvt.s32.f32 %v729
        %v1242 = vcvt.s32.f32 %v730
        %v1243 = vcvt.s32.f32 %v731
        %v1244 = vcvt.s32.f32 %v732
        %v1245 = vcvt.s32.f32 %v733
        %v1246 = vcvt.s32.f32 %v734
        %v1247 = vcvt.s32.f32 %v735
        %v1248 = vcvt.s32.f32 %v736
        %v1249 = vcvt.s32.f32 %v737
        %v1250 = vcvt.s32.f32 %v738
        %v1251 = vcvt.s32.f32 %v739
        %v1252 = vcvt.s32.f32 %v740
        %v1253 = vcvt.s32.f32 %v741
        %v1254 = vcvt.s32.f32 %v742
        %v1255 = vcvt.s32.f32 %v743
        %v1256 = vcvt.s32.f32 %v744
        %v1257 = vcvt.s32.f32 %v745
        %v1258 = vcvt.s32.f32 %v746
        %v1259 = vcvt.s32.f32 %v747
        %v1260 = vcvt.s32.f32 %v748
        %v1261 = vcvt.s32.f32 %v749
        %v1262 = vcvt.s32.f32 %v750
        %v1263 = vcvt.s32.f32 %v751
        %v1264 = vcvt.s32.f32 %v752
        %v1265 = vcvt.s32.f32 %v753
        %v1266 = vcvt.s32.f32 %v754
        %v1267 = vcvt.s32.f32 %v755
        %v1268 = vcvt.s32.f32 %v756
        %v1269 = vcvt.s32.f32 %v757
        %v1270 = vcvt.s32.f32 %v758
        %v1271 = vcvt.s32.f32 %v759
        %v1272 = vcvt.s32.f32 %v760
        %v1273 = vcvt.s32.f32 %v761
        %v1274 = vcvt.s32.f32 %v762
        %v1275 = vcvt.s32.f32 %v763
        %v1276 = vcvt.s32.f32 %v764
        %v1277 = vcvt.s32.f32 %v765
        %v1278 = vcvt.s32.f32 %v766
        %v1279 = vcvt.s32.f32 %v767
        %v1280 = vcvt.s32.f32 %v768
        %v1281 = vcvt.s32.f32 %v769
        %v1282 = vcvt.s32.f32 %v770
        %v1283 = vcvt.s32.f32 %v771
        %v1284 = vcvt.s32.f32 %v772
        %v1285 = vcvt.s32.f32 %v773
        %v1286 = vcvt.s32.f32 %v774
        %v1287 = vcvt.s32.f32 %v775
        %v1288 = vcvt.s32.f32 %v776
        %v1289 = vcvt.s32.f32 %v777
        %v1290 = vcvt.s32.f32 %v778
        %v1291 = vcvt.s32.f32 %v779
        %v1292 = vcvt.s32.f32 %v780
        %v1293 = vcvt.s32.f32 %v781
        %v1294 = vcvt.s32.f32 %v782
        %v1295 = vcvt.s32.f32 %v783
        %v1296 = vcvt.s32.f32 %v784
        %v1297 = vcvt.s32.f32 %v785
        %v1298 = vcvt.s32.f32 %v786
        %v1299 = vcvt.s32.f32 %v787
        %v1300 = vcvt.s32.f32 %v788
        %v1301 = vcvt.s32.f32 %v789
        %v1302 = vcvt.s32.f32 %v790
        %v1303 = vcvt.s32.f32 %v791
        %v1304 = vcvt.s32.f32 %v792
        %v1305 = vcvt.s32.f32 %v793
        %v1306 = vcvt.s32.f32 %v794
        %v1307 = vcvt.s32.f32 %v795
        %v1308 = vcvt.s32.f32 %v796
        %v1309 = vcvt.s32.f32 %v797
        %v1310 = vcvt.s32.f32 %v798
        %v1311 = vcvt.s32.f32 %v799
        %v1312 = vcvt.s32.f32 %v800
        %v1313 = vcvt.s32.f32 %v801
        %v1314 = vcvt.s32.f32 %v802
        %v1315 = vcvt.s32.f32 %v803
        %v1316 = vcvt.s32.f32 %v804
        %v1317 = vcvt.s32.f32 %v805
        %v1318 = vcvt.s32.f32 %v806
        %v1319 = vcvt.s32.f32 %v807
        %v1320 = vcvt.s32.f32 %v808
        %v1321 = vcvt.s32.f32 %v809
        %v1322 = vcvt.s32.f32 %v810
        %v1323 = vcvt.s32.f32 %v811
        %v1324 = vcvt.s32.f32 %v812
        %v1325 = vcvt.s32.f32 %v813
        %v1326 = vcvt.s32.f32 %v814
        %v1327 = vcvt.s32.f32 %v815
        %v1328 = vcvt.s32.f32 %v816
        %v1329 = vcvt.s32.f32 %v817
        %v1330 = vcvt.s32.f32 %v818
        %v1331 = vcvt.s32.f32 %v819
        %v1332 = vcvt.s32.f32 %v820
        %v1333 = vcvt.s32.f32 %v821
        %v1334 = vcvt.s32.f32 %v822
        %v1335 = vcvt.s32.f32 %v823
        %v1336 = vcvt.s32.f32 %v824
        %v1337 = vcvt.s32.f32 %v825
        %v1338 = vcvt.s32.f32 %v826
        %v1339 = vcvt.s32.f32 %v827
        %v1340 = vcvt.s32.f32 %v828
        %v1341 = vcvt.s32.f32 %v829
        %v1342 = vcvt.s32.f32 %v830
        %v1343 = vcvt.s32.f32 %v831
        %v1344 = vcvt.s32.f32 %v832
        %v1345 = vcvt.s32.f32 %v833
        %v1346 = vcvt.s32.f32 %v834
        %v1347 = vcvt.s32.f32 %v835
        %v1348 = vcvt.s32.f32 %v836
        %v1349 = vcvt.s32.f32 %v837
        %v1350 = vcvt.s32.f32 %v838
        %v1351 = vcvt.s32.f32 %v839
        %v1352 = vcvt.s32.f32 %v840
        %v1353 = vcvt.s32.f32 %v841
        %v1354 = vcvt.s32.f32 %v842
        %v1355 = vcvt.s32.f32 %v843
        %v1356 = vcvt.s32.f32 %v844
        %v1357 = vcvt.s32.f32 %v845
        %v1358 = vcvt.s32.f32 %v846
        %v1359 = vcvt.s32.f32 %v847
        %v1360 = vcvt.s32.f32 %v848
        %v1361 = vcvt.s32.f32 %v849
        %v1362 = vcvt.s32.f32 %v850
        %v1363 = vcvt.s32.f32 %v851
        %v1364 = vcvt.s32.f32 %v852
        %v1365 = vcvt.s32.f32 %v853
        %v1366 = vcvt.s32.f32 %v854
        %v1367 = vcvt.s32.f32 %v855
        %v1368 = vcvt.s32.f32 %v856
        %v1369 = vpack.c.bf16 %v865, %v857
        %v1370 = vpack.c.bf16 %v866, %v858
        %v1371 = vpack.c.bf16 %v867, %v859
        %v1372 = vpack.c.bf16 %v868, %v860
        %v1373 = vpack.c.bf16 %v869, %v861
        %v1374 = vpack.c.bf16 %v870, %v862
        %v1375 = vpack.c.bf16 %v871, %v863
        %v1376 = vpack.c.bf16 %v872, %v864
        %v1377 = vpack.c.bf16 %v881, %v873
        %v1378 = vpack.c.bf16 %v882, %v874
        %v1379 = vpack.c.bf16 %v883, %v875
        %v1380 = vpack.c.bf16 %v884, %v876
        %v1381 = vpack.c.bf16 %v885, %v877
        %v1382 = vpack.c.bf16 %v886, %v878
        %v1383 = vpack.c.bf16 %v887, %v879
        %v1384 = vpack.c.bf16 %v888, %v880
        %v1385 = vpack.c.bf16 %v897, %v889
        %v1386 = vpack.c.bf16 %v898, %v890
        %v1387 = vpack.c.bf16 %v899, %v891
        %v1388 = vpack.c.bf16 %v900, %v892
        %v1389 = vpack.c.bf16 %v901, %v893
        %v1390 = vpack.c.bf16 %v902, %v894
        %v1391 = vpack.c.bf16 %v903, %v895
        %v1392 = vpack.c.bf16 %v904, %v896
        %v1393 = vpack.c.bf16 %v913, %v905
        %v1394 = vpack.c.bf16 %v914, %v906
        %v1395 = vpack.c.bf16 %v915, %v907
        %v1396 = vpack.c.bf16 %v916, %v908
        %v1397 = vpack.c.bf16 %v917, %v909
        %v1398 = vpack.c.bf16 %v918, %v910
        %v1399 = vpack.c.bf16 %v919, %v911
        %v1400 = vpack.c.bf16 %v920, %v912
        %v1401 = vpack.c.bf16 %v929, %v921
        %v1402 = vpack.c.bf16 %v930, %v922
        %v1403 = vpack.c.bf16 %v931, %v923
        %v1404 = vpack.c.bf16 %v932, %v924
        %v1405 = vpack.c.bf16 %v933, %v925
        %v1406 = vpack.c.bf16 %v934, %v926
        %v1407 = vpack.c.bf16 %v935, %v927
        %v1408 = vpack.c.bf16 %v936, %v928
        %v1409 = vpack.c.bf16 %v945, %v937
        %v1410 = vpack.c.bf16 %v946, %v938
        %v1411 = vpack.c.bf16 %v947, %v939
        %v1412 = vpack.c.bf16 %v948, %v940
        %v1413 = vpack.c.bf16 %v949, %v941
        %v1414 = vpack.c.bf16 %v950, %v942
        %v1415 = vpack.c.bf16 %v951, %v943
        %v1416 = vpack.c.bf16 %v952, %v944
        %v1417 = vpack.c.bf16 %v961, %v953
        %v1418 = vpack.c.bf16 %v962, %v954
        %v1419 = vpack.c.bf16 %v963, %v955
        %v1420 = vpack.c.bf16 %v964, %v956
        %v1421 = vpack.c.bf16 %v965, %v957
        %v1422 = vpack.c.bf16 %v966, %v958
        %v1423 = vpack.c.bf16 %v967, %v959
        %v1424 = vpack.c.bf16 %v968, %v960
        %v1425 = vpack.c.bf16 %v977, %v969
        %v1426 = vpack.c.bf16 %v978, %v970
        %v1427 = vpack.c.bf16 %v979, %v971
        %v1428 = vpack.c.bf16 %v980, %v972
        %v1429 = vpack.c.bf16 %v981, %v973
        %v1430 = vpack.c.bf16 %v982, %v974
        %v1431 = vpack.c.bf16 %v983, %v975
        %v1432 = vpack.c.bf16 %v984, %v976
        %v1433 = vpack.c.bf16 %v993, %v985
        %v1434 = vpack.c.bf16 %v994, %v986
        %v1435 = vpack.c.bf16 %v995, %v987
        %v1436 = vpack.c.bf16 %v996, %v988
        %v1437 = vpack.c.bf16 %v997, %v989
        %v1438 = vpack.c.bf16 %v998, %v990
        %v1439 = vpack.c.bf16 %v999, %v991
        %v1440 = vpack.c.bf16 %v1000, %v992
        %v1441 = vpack.c.bf16 %v1009, %v1001
        %v1442 = vpack.c.bf16 %v1010, %v1002
        %v1443 = vpack.c.bf16 %v1011, %v1003
        %v1444 = vpack.c.bf16 %v1012, %v1004
        %v1445 = vpack.c.bf16 %v1013, %v1005
        %v1446 = vpack.c.bf16 %v1014, %v1006
        %v1447 = vpack.c.bf16 %v1015, %v1007
        %v1448 = vpack.c.bf16 %v1016, %v1008
        %v1449 = vpack.c.bf16 %v1025, %v1017
        %v1450 = vpack.c.bf16 %v1026, %v1018
        %v1451 = vpack.c.bf16 %v1027, %v1019
        %v1452 = vpack.c.bf16 %v1028, %v1020
        %v1453 = vpack.c.bf16 %v1029, %v1021
        %v1454 = vpack.c.bf16 %v1030, %v1022
        %v1455 = vpack.c.bf16 %v1031, %v1023
        %v1456 = vpack.c.bf16 %v1032, %v1024
        %v1457 = vpack.c.bf16 %v1041, %v1033
        %v1458 = vpack.c.bf16 %v1042, %v1034
        %v1459 = vpack.c.bf16 %v1043, %v1035
        %v1460 = vpack.c.bf16 %v1044, %v1036
        %v1461 = vpack.c.bf16 %v1045, %v1037
        %v1462 = vpack.c.bf16 %v1046, %v1038
        %v1463 = vpack.c.bf16 %v1047, %v1039
        %v1464 = vpack.c.bf16 %v1048, %v1040
        %v1465 = vpack.c.bf16 %v1057, %v1049
        %v1466 = vpack.c.bf16 %v1058, %v1050
        %v1467 = vpack.c.bf16 %v1059, %v1051
        %v1468 = vpack.c.bf16 %v1060, %v1052
        %v1469 = vpack.c.bf16 %v1061, %v1053
        %v1470 = vpack.c.bf16 %v1062, %v1054
        %v1471 = vpack.c.bf16 %v1063, %v1055
        %v1472 = vpack.c.bf16 %v1064, %v1056
        %v1473 = vpack.c.bf16 %v1073, %v1065
        %v1474 = vpack.c.bf16 %v1074, %v1066
        %v1475 = vpack.c.bf16 %v1075, %v1067
        %v1476 = vpack.c.bf16 %v1076, %v1068
        %v1477 = vpack.c.bf16 %v1077, %v1069
        %v1478 = vpack.c.bf16 %v1078, %v1070
        %v1479 = vpack.c.bf16 %v1079, %v1071
        %v1480 = vpack.c.bf16 %v1080, %v1072
        %v1481 = vpack.c.bf16 %v1089, %v1081
        %v1482 = vpack.c.bf16 %v1090, %v1082
        %v1483 = vpack.c.bf16 %v1091, %v1083
        %v1484 = vpack.c.bf16 %v1092, %v1084
        %v1485 = vpack.c.bf16 %v1093, %v1085
        %v1486 = vpack.c.bf16 %v1094, %v1086
        %v1487 = vpack.c.bf16 %v1095, %v1087
        %v1488 = vpack.c.bf16 %v1096, %v1088
        %v1489 = vpack.c.bf16 %v1105, %v1097
        %v1490 = vpack.c.bf16 %v1106, %v1098
        %v1491 = vpack.c.bf16 %v1107, %v1099
        %v1492 = vpack.c.bf16 %v1108, %v1100
        %v1493 = vpack.c.bf16 %v1109, %v1101
        %v1494 = vpack.c.bf16 %v1110, %v1102
        %v1495 = vpack.c.bf16 %v1111, %v1103
        %v1496 = vpack.c.bf16 %v1112, %v1104
        %v1497 = vpack.c.bf16 %v1121, %v1113
        %v1498 = vpack.c.bf16 %v1122, %v1114
        %v1499 = vpack.c.bf16 %v1123, %v1115
        %v1500 = vpack.c.bf16 %v1124, %v1116
        %v1501 = vpack.c.bf16 %v1125, %v1117
        %v1502 = vpack.c.bf16 %v1126, %v1118
        %v1503 = vpack.c.bf16 %v1127, %v1119
        %v1504 = vpack.c.bf16 %v1128, %v1120
        %v1505 = vpack.c.bf16 %v1137, %v1129
        %v1506 = vpack.c.bf16 %v1138, %v1130
        %v1507 = vpack.c.bf16 %v1139, %v1131
        %v1508 = vpack.c.bf16 %v1140, %v1132
        %v1509 = vpack.c.bf16 %v1141, %v1133
        %v1510 = vpack.c.bf16 %v1142, %v1134
        %v1511 = vpack.c.bf16 %v1143, %v1135
        %v1512 = vpack.c.bf16 %v1144, %v1136
        %v1513 = vpack.c.bf16 %v1153, %v1145
        %v1514 = vpack.c.bf16 %v1154, %v1146
        %v1515 = vpack.c.bf16 %v1155, %v1147
        %v1516 = vpack.c.bf16 %v1156, %v1148
        %v1517 = vpack.c.bf16 %v1157, %v1149
        %v1518 = vpack.c.bf16 %v1158, %v1150
        %v1519 = vpack.c.bf16 %v1159, %v1151
        %v1520 = vpack.c.bf16 %v1160, %v1152
        %v1521 = vpack.c.bf16 %v1169, %v1161
        %v1522 = vpack.c.bf16 %v1170, %v1162
        %v1523 = vpack.c.bf16 %v1171, %v1163
        %v1524 = vpack.c.bf16 %v1172, %v1164
        %v1525 = vpack.c.bf16 %v1173, %v1165
        %v1526 = vpack.c.bf16 %v1174, %v1166
        %v1527 = vpack.c.bf16 %v1175, %v1167
        %v1528 = vpack.c.bf16 %v1176, %v1168
        %v1529 = vpack.c.bf16 %v1185, %v1177
        %v1530 = vpack.c.bf16 %v1186, %v1178
        %v1531 = vpack.c.bf16 %v1187, %v1179
        %v1532 = vpack.c.bf16 %v1188, %v1180
        %v1533 = vpack.c.bf16 %v1189, %v1181
        %v1534 = vpack.c.bf16 %v1190, %v1182
        %v1535 = vpack.c.bf16 %v1191, %v1183
        %v1536 = vpack.c.bf16 %v1192, %v1184
        %v1537 = vpack.c.bf16 %v1201, %v1193
        %v1538 = vpack.c.bf16 %v1202, %v1194
        %v1539 = vpack.c.bf16 %v1203, %v1195
        %v1540 = vpack.c.bf16 %v1204, %v1196
        %v1541 = vpack.c.bf16 %v1205, %v1197
        %v1542 = vpack.c.bf16 %v1206, %v1198
        %v1543 = vpack.c.bf16 %v1207, %v1199
        %v1544 = vpack.c.bf16 %v1208, %v1200
        %v1545 = vpack.c.bf16 %v1217, %v1209
        %v1546 = vpack.c.bf16 %v1218, %v1210
        %v1547 = vpack.c.bf16 %v1219, %v1211
        %v1548 = vpack.c.bf16 %v1220, %v1212
        %v1549 = vpack.c.bf16 %v1221, %v1213
        %v1550 = vpack.c.bf16 %v1222, %v1214
        %v1551 = vpack.c.bf16 %v1223, %v1215
        %v1552 = vpack.c.bf16 %v1224, %v1216
        %v1553 = vpack.c.bf16 %v1233, %v1225
        %v1554 = vpack.c.bf16 %v1234, %v1226
        %v1555 = vpack.c.bf16 %v1235, %v1227
        %v1556 = vpack.c.bf16 %v1236, %v1228
        %v1557 = vpack.c.bf16 %v1237, %v1229
        %v1558 = vpack.c.bf16 %v1238, %v1230
        %v1559 = vpack.c.bf16 %v1239, %v1231
        %v1560 = vpack.c.bf16 %v1240, %v1232
        %v1561 = vpack.c.bf16 %v1249, %v1241
        %v1562 = vpack.c.bf16 %v1250, %v1242
        %v1563 = vpack.c.bf16 %v1251, %v1243
        %v1564 = vpack.c.bf16 %v1252, %v1244
        %v1565 = vpack.c.bf16 %v1253, %v1245
        %v1566 = vpack.c.bf16 %v1254, %v1246
        %v1567 = vpack.c.bf16 %v1255, %v1247
        %v1568 = vpack.c.bf16 %v1256, %v1248
        %v1569 = vpack.c.bf16 %v1265, %v1257
        %v1570 = vpack.c.bf16 %v1266, %v1258
        %v1571 = vpack.c.bf16 %v1267, %v1259
        %v1572 = vpack.c.bf16 %v1268, %v1260
        %v1573 = vpack.c.bf16 %v1269, %v1261
        %v1574 = vpack.c.bf16 %v1270, %v1262
        %v1575 = vpack.c.bf16 %v1271, %v1263
        %v1576 = vpack.c.bf16 %v1272, %v1264
        %v1577 = vpack.c.bf16 %v1281, %v1273
        %v1578 = vpack.c.bf16 %v1282, %v1274
        %v1579 = vpack.c.bf16 %v1283, %v1275
        %v1580 = vpack.c.bf16 %v1284, %v1276
        %v1581 = vpack.c.bf16 %v1285, %v1277
        %v1582 = vpack.c.bf16 %v1286, %v1278
        %v1583 = vpack.c.bf16 %v1287, %v1279
        %v1584 = vpack.c.bf16 %v1288, %v1280
        %v1585 = vpack.c.bf16 %v1297, %v1289
        %v1586 = vpack.c.bf16 %v1298, %v1290
        %v1587 = vpack.c.bf16 %v1299, %v1291
        %v1588 = vpack.c.bf16 %v1300, %v1292
        %v1589 = vpack.c.bf16 %v1301, %v1293
        %v1590 = vpack.c.bf16 %v1302, %v1294
        %v1591 = vpack.c.bf16 %v1303, %v1295
        %v1592 = vpack.c.bf16 %v1304, %v1296
        %v1593 = vpack.c.bf16 %v1313, %v1305
        %v1594 = vpack.c.bf16 %v1314, %v1306
        %v1595 = vpack.c.bf16 %v1315, %v1307
        %v1596 = vpack.c.bf16 %v1316, %v1308
        %v1597 = vpack.c.bf16 %v1317, %v1309
        %v1598 = vpack.c.bf16 %v1318, %v1310
        %v1599 = vpack.c.bf16 %v1319, %v1311
        %v1600 = vpack.c.bf16 %v1320, %v1312
        %v1601 = vpack.c.bf16 %v1329, %v1321
        %v1602 = vpack.c.bf16 %v1330, %v1322
        %v1603 = vpack.c.bf16 %v1331, %v1323
        %v1604 = vpack.c.bf16 %v1332, %v1324
        %v1605 = vpack.c.bf16 %v1333, %v1325
        %v1606 = vpack.c.bf16 %v1334, %v1326
        %v1607 = vpack.c.bf16 %v1335, %v1327
        %v1608 = vpack.c.bf16 %v1336, %v1328
        %v1609 = vpack.c.bf16 %v1345, %v1337
        %v1610 = vpack.c.bf16 %v1346, %v1338
        %v1611 = vpack.c.bf16 %v1347, %v1339
        %v1612 = vpack.c.bf16 %v1348, %v1340
        %v1613 = vpack.c.bf16 %v1349, %v1341
        %v1614 = vpack.c.bf16 %v1350, %v1342
        %v1615 = vpack.c.bf16 %v1351, %v1343
        %v1616 = vpack.c.bf16 %v1352, %v1344
        %v1617 = vpack.c.bf16 %v1361, %v1353
        %v1618 = vpack.c.bf16 %v1362, %v1354
        %v1619 = vpack.c.bf16 %v1363, %v1355
        %v1620 = vpack.c.bf16 %v1364, %v1356
        %v1621 = vpack.c.bf16 %v1365, %v1357
        %v1622 = vpack.c.bf16 %v1366, %v1358
        %v1623 = vpack.c.bf16 %v1367, %v1359
        %v1624 = vpack.c.bf16 %v1368, %v1360
        %v1625 = vld [vmem:[#allocation5] sm:$0xf]
        %v1626 = vld [vmem:[#allocation5 + $0x4] sm:$0xf]
        %v1627 = vld [vmem:[#allocation5 + $0x8] sm:$0xf]
        %v1628 = vld [vmem:[#allocation5 + $0xc] sm:$0xf]
        %v1629 = vld [vmem:[#allocation5 + $0x10] sm:$0xf]
        %v1630 = vld [vmem:[#allocation5 + $0x14] sm:$0xf]
        %v1631 = vld [vmem:[#allocation5 + $0x18] sm:$0xf]
        %v1632 = vld [vmem:[#allocation5 + $0x1c] sm:$0xf]
        %v1633 = vld [vmem:[#allocation5 + $0x20] sm:$0xf]
        %v1634 = vld [vmem:[#allocation5 + $0x24] sm:$0xf]
        %v1635 = vld [vmem:[#allocation5 + $0x28] sm:$0xf]
        %v1636 = vld [vmem:[#allocation5 + $0x2c] sm:$0xf]
        %v1637 = vld [vmem:[#allocation5 + $0x30] sm:$0xf]
        %v1638 = vld [vmem:[#allocation5 + $0x34] sm:$0xf]
        %v1639 = vld [vmem:[#allocation5 + $0x38] sm:$0xf]
        %v1640 = vld [vmem:[#allocation5 + $0x3c] sm:$0xf]
        %v1641 = vld [vmem:[#allocation5 + $0x40] sm:$0xf]
        %v1642 = vld [vmem:[#allocation5 + $0x44] sm:$0xf]
        %v1643 = vld [vmem:[#allocation5 + $0x48] sm:$0xf]
        %v1644 = vld [vmem:[#allocation5 + $0x4c] sm:$0xf]
        %v1645 = vld [vmem:[#allocation5 + $0x50] sm:$0xf]
        %v1646 = vld [vmem:[#allocation5 + $0x54] sm:$0xf]
        %v1647 = vld [vmem:[#allocation5 + $0x58] sm:$0xf]
        %v1648 = vld [vmem:[#allocation5 + $0x5c] sm:$0xf]
        %v1649 = vld [vmem:[#allocation5 + $0x60] sm:$0xf]
        %v1650 = vld [vmem:[#allocation5 + $0x64] sm:$0xf]
        %v1651 = vld [vmem:[#allocation5 + $0x68] sm:$0xf]
        %v1652 = vld [vmem:[#allocation5 + $0x6c] sm:$0xf]
        %v1653 = vld [vmem:[#allocation5 + $0x70] sm:$0xf]
        %v1654 = vld [vmem:[#allocation5 + $0x74] sm:$0xf]
        %v1655 = vld [vmem:[#allocation5 + $0x78] sm:$0xf]
        %v1656 = vld [vmem:[#allocation5 + $0x7c] sm:$0xf]
        %v1657 = vld [vmem:[#allocation5 + $0x80] sm:$0xf]
        %v1658 = vld [vmem:[#allocation5 + $0x84] sm:$0xf]
        %v1659 = vld [vmem:[#allocation5 + $0x88] sm:$0xf]
        %v1660 = vld [vmem:[#allocation5 + $0x8c] sm:$0xf]
        %v1661 = vld [vmem:[#allocation5 + $0x90] sm:$0xf]
        %v1662 = vld [vmem:[#allocation5 + $0x94] sm:$0xf]
        %v1663 = vld [vmem:[#allocation5 + $0x98] sm:$0xf]
        %v1664 = vld [vmem:[#allocation5 + $0x9c] sm:$0xf]
        %v1665 = vld [vmem:[#allocation5 + $0xa0] sm:$0xf]
        %v1666 = vld [vmem:[#allocation5 + $0xa4] sm:$0xf]
        %v1667 = vld [vmem:[#allocation5 + $0xa8] sm:$0xf]
        %v1668 = vld [vmem:[#allocation5 + $0xac] sm:$0xf]
        %v1669 = vld [vmem:[#allocation5 + $0xb0] sm:$0xf]
        %v1670 = vld [vmem:[#allocation5 + $0xb4] sm:$0xf]
        %v1671 = vld [vmem:[#allocation5 + $0xb8] sm:$0xf]
        %v1672 = vld [vmem:[#allocation5 + $0xbc] sm:$0xf]
        %v1673 = vld [vmem:[#allocation5 + $0xc0] sm:$0xf]
        %v1674 = vld [vmem:[#allocation5 + $0xc4] sm:$0xf]
        %v1675 = vld [vmem:[#allocation5 + $0xc8] sm:$0xf]
        %v1676 = vld [vmem:[#allocation5 + $0xcc] sm:$0xf]
        %v1677 = vld [vmem:[#allocation5 + $0xd0] sm:$0xf]
        %v1678 = vld [vmem:[#allocation5 + $0xd4] sm:$0xf]
        %v1679 = vld [vmem:[#allocation5 + $0xd8] sm:$0xf]
        %v1680 = vld [vmem:[#allocation5 + $0xdc] sm:$0xf]
        %v1681 = vld [vmem:[#allocation5 + $0xe0] sm:$0xf]
        %v1682 = vld [vmem:[#allocation5 + $0xe4] sm:$0xf]
        %v1683 = vld [vmem:[#allocation5 + $0xe8] sm:$0xf]
        %v1684 = vld [vmem:[#allocation5 + $0xec] sm:$0xf]
        %v1685 = vld [vmem:[#allocation5 + $0xf0] sm:$0xf]
        %v1686 = vld [vmem:[#allocation5 + $0xf4] sm:$0xf]
        %v1687 = vld [vmem:[#allocation5 + $0xf8] sm:$0xf]
        %v1688 = vld [vmem:[#allocation5 + $0xfc] sm:$0xf]
        %v1689 = vld [vmem:[#allocation5 + $0x100] sm:$0xf]
        %v1690 = vld [vmem:[#allocation5 + $0x104] sm:$0xf]
        %v1691 = vld [vmem:[#allocation5 + $0x108] sm:$0xf]
        %v1692 = vld [vmem:[#allocation5 + $0x10c] sm:$0xf]
        %v1693 = vld [vmem:[#allocation5 + $0x110] sm:$0xf]
        %v1694 = vld [vmem:[#allocation5 + $0x114] sm:$0xf]
        %v1695 = vld [vmem:[#allocation5 + $0x118] sm:$0xf]
        %v1696 = vld [vmem:[#allocation5 + $0x11c] sm:$0xf]
        %v1697 = vld [vmem:[#allocation5 + $0x120] sm:$0xf]
        %v1698 = vld [vmem:[#allocation5 + $0x124] sm:$0xf]
        %v1699 = vld [vmem:[#allocation5 + $0x128] sm:$0xf]
        %v1700 = vld [vmem:[#allocation5 + $0x12c] sm:$0xf]
        %v1701 = vld [vmem:[#allocation5 + $0x130] sm:$0xf]
        %v1702 = vld [vmem:[#allocation5 + $0x134] sm:$0xf]
        %v1703 = vld [vmem:[#allocation5 + $0x138] sm:$0xf]
        %v1704 = vld [vmem:[#allocation5 + $0x13c] sm:$0xf]
        %v1705 = vld [vmem:[#allocation5 + $0x140] sm:$0xf]
        %v1706 = vld [vmem:[#allocation5 + $0x144] sm:$0xf]
        %v1707 = vld [vmem:[#allocation5 + $0x148] sm:$0xf]
        %v1708 = vld [vmem:[#allocation5 + $0x14c] sm:$0xf]
        %v1709 = vld [vmem:[#allocation5 + $0x150] sm:$0xf]
        %v1710 = vld [vmem:[#allocation5 + $0x154] sm:$0xf]
        %v1711 = vld [vmem:[#allocation5 + $0x158] sm:$0xf]
        %v1712 = vld [vmem:[#allocation5 + $0x15c] sm:$0xf]
        %v1713 = vld [vmem:[#allocation5 + $0x160] sm:$0xf]
        %v1714 = vld [vmem:[#allocation5 + $0x164] sm:$0xf]
        %v1715 = vld [vmem:[#allocation5 + $0x168] sm:$0xf]
        %v1716 = vld [vmem:[#allocation5 + $0x16c] sm:$0xf]
        %v1717 = vld [vmem:[#allocation5 + $0x170] sm:$0xf]
        %v1718 = vld [vmem:[#allocation5 + $0x174] sm:$0xf]
        %v1719 = vld [vmem:[#allocation5 + $0x178] sm:$0xf]
        %v1720 = vld [vmem:[#allocation5 + $0x17c] sm:$0xf]
        %v1721 = vld [vmem:[#allocation5 + $0x180] sm:$0xf]
        %v1722 = vld [vmem:[#allocation5 + $0x184] sm:$0xf]
        %v1723 = vld [vmem:[#allocation5 + $0x188] sm:$0xf]
        %v1724 = vld [vmem:[#allocation5 + $0x18c] sm:$0xf]
        %v1725 = vld [vmem:[#allocation5 + $0x190] sm:$0xf]
        %v1726 = vld [vmem:[#allocation5 + $0x194] sm:$0xf]
        %v1727 = vld [vmem:[#allocation5 + $0x198] sm:$0xf]
        %v1728 = vld [vmem:[#allocation5 + $0x19c] sm:$0xf]
        %v1729 = vld [vmem:[#allocation5 + $0x1a0] sm:$0xf]
        %v1730 = vld [vmem:[#allocation5 + $0x1a4] sm:$0xf]
        %v1731 = vld [vmem:[#allocation5 + $0x1a8] sm:$0xf]
        %v1732 = vld [vmem:[#allocation5 + $0x1ac] sm:$0xf]
        %v1733 = vld [vmem:[#allocation5 + $0x1b0] sm:$0xf]
        %v1734 = vld [vmem:[#allocation5 + $0x1b4] sm:$0xf]
        %v1735 = vld [vmem:[#allocation5 + $0x1b8] sm:$0xf]
        %v1736 = vld [vmem:[#allocation5 + $0x1bc] sm:$0xf]
        %v1737 = vld [vmem:[#allocation5 + $0x1c0] sm:$0xf]
        %v1738 = vld [vmem:[#allocation5 + $0x1c4] sm:$0xf]
        %v1739 = vld [vmem:[#allocation5 + $0x1c8] sm:$0xf]
        %v1740 = vld [vmem:[#allocation5 + $0x1cc] sm:$0xf]
        %v1741 = vld [vmem:[#allocation5 + $0x1d0] sm:$0xf]
        %v1742 = vld [vmem:[#allocation5 + $0x1d4] sm:$0xf]
        %v1743 = vld [vmem:[#allocation5 + $0x1d8] sm:$0xf]
        %v1744 = vld [vmem:[#allocation5 + $0x1dc] sm:$0xf]
        %v1745 = vld [vmem:[#allocation5 + $0x1e0] sm:$0xf]
        %v1746 = vld [vmem:[#allocation5 + $0x1e4] sm:$0xf]
        %v1747 = vld [vmem:[#allocation5 + $0x1e8] sm:$0xf]
        %v1748 = vld [vmem:[#allocation5 + $0x1ec] sm:$0xf]
        %v1749 = vld [vmem:[#allocation5 + $0x1f0] sm:$0xf]
        %v1750 = vld [vmem:[#allocation5 + $0x1f4] sm:$0xf]
        %v1751 = vld [vmem:[#allocation5 + $0x1f8] sm:$0xf]
        %v1752 = vld [vmem:[#allocation5 + $0x1fc] sm:$0xf]
        %v1881 = vunpack.c.l.b16 %v1625
        %v1882 = vunpack.c.l.b16 %v1626
        %v1883 = vunpack.c.l.b16 %v1627
        %v1884 = vunpack.c.l.b16 %v1628
        %v1885 = vunpack.c.l.b16 %v1629
        %v1886 = vunpack.c.l.b16 %v1630
        %v1887 = vunpack.c.l.b16 %v1631
        %v1888 = vunpack.c.l.b16 %v1632
        %v1889 = vunpack.c.l.b16 %v1633
        %v1890 = vunpack.c.l.b16 %v1634
        %v1891 = vunpack.c.l.b16 %v1635
        %v1892 = vunpack.c.l.b16 %v1636
        %v1893 = vunpack.c.l.b16 %v1637
        %v1894 = vunpack.c.l.b16 %v1638
        %v1895 = vunpack.c.l.b16 %v1639
        %v1896 = vunpack.c.l.b16 %v1640
        %v1897 = vunpack.c.l.b16 %v1641
        %v1898 = vunpack.c.l.b16 %v1642
        %v1899 = vunpack.c.l.b16 %v1643
        %v1900 = vunpack.c.l.b16 %v1644
        %v1901 = vunpack.c.l.b16 %v1645
        %v1902 = vunpack.c.l.b16 %v1646
        %v1903 = vunpack.c.l.b16 %v1647
        %v1904 = vunpack.c.l.b16 %v1648
        %v1905 = vunpack.c.l.b16 %v1649
        %v1906 = vunpack.c.l.b16 %v1650
        %v1907 = vunpack.c.l.b16 %v1651
        %v1908 = vunpack.c.l.b16 %v1652
        %v1909 = vunpack.c.l.b16 %v1653
        %v1910 = vunpack.c.l.b16 %v1654
        %v1911 = vunpack.c.l.b16 %v1655
        %v1912 = vunpack.c.l.b16 %v1656
        %v1913 = vunpack.c.l.b16 %v1657
        %v1914 = vunpack.c.l.b16 %v1658
        %v1915 = vunpack.c.l.b16 %v1659
        %v1916 = vunpack.c.l.b16 %v1660
        %v1917 = vunpack.c.l.b16 %v1661
        %v1918 = vunpack.c.l.b16 %v1662
        %v1919 = vunpack.c.l.b16 %v1663
        %v1920 = vunpack.c.l.b16 %v1664
        %v1921 = vunpack.c.l.b16 %v1665
        %v1922 = vunpack.c.l.b16 %v1666
        %v1923 = vunpack.c.l.b16 %v1667
        %v1924 = vunpack.c.l.b16 %v1668
        %v1925 = vunpack.c.l.b16 %v1669
        %v1926 = vunpack.c.l.b16 %v1670
        %v1927 = vunpack.c.l.b16 %v1671
        %v1928 = vunpack.c.l.b16 %v1672
        %v1929 = vunpack.c.l.b16 %v1673
        %v1930 = vunpack.c.l.b16 %v1674
        %v1931 = vunpack.c.l.b16 %v1675
        %v1932 = vunpack.c.l.b16 %v1676
        %v1933 = vunpack.c.l.b16 %v1677
        %v1934 = vunpack.c.l.b16 %v1678
        %v1935 = vunpack.c.l.b16 %v1679
        %v1936 = vunpack.c.l.b16 %v1680
        %v1937 = vunpack.c.l.b16 %v1681
        %v1938 = vunpack.c.l.b16 %v1682
        %v1939 = vunpack.c.l.b16 %v1683
        %v1940 = vunpack.c.l.b16 %v1684
        %v1941 = vunpack.c.l.b16 %v1685
        %v1942 = vunpack.c.l.b16 %v1686
        %v1943 = vunpack.c.l.b16 %v1687
        %v1944 = vunpack.c.l.b16 %v1688
        %v1945 = vunpack.c.l.b16 %v1689
        %v1946 = vunpack.c.l.b16 %v1690
        %v1947 = vunpack.c.l.b16 %v1691
        %v1948 = vunpack.c.l.b16 %v1692
        %v1949 = vunpack.c.l.b16 %v1693
        %v1950 = vunpack.c.l.b16 %v1694
        %v1951 = vunpack.c.l.b16 %v1695
        %v1952 = vunpack.c.l.b16 %v1696
        %v1953 = vunpack.c.l.b16 %v1697
        %v1954 = vunpack.c.l.b16 %v1698
        %v1955 = vunpack.c.l.b16 %v1699
        %v1956 = vunpack.c.l.b16 %v1700
        %v1957 = vunpack.c.l.b16 %v1701
        %v1958 = vunpack.c.l.b16 %v1702
        %v1959 = vunpack.c.l.b16 %v1703
        %v1960 = vunpack.c.l.b16 %v1704
        %v1961 = vunpack.c.l.b16 %v1705
        %v1962 = vunpack.c.l.b16 %v1706
        %v1963 = vunpack.c.l.b16 %v1707
        %v1964 = vunpack.c.l.b16 %v1708
        %v1965 = vunpack.c.l.b16 %v1709
        %v1966 = vunpack.c.l.b16 %v1710
        %v1967 = vunpack.c.l.b16 %v1711
        %v1968 = vunpack.c.l.b16 %v1712
        %v1969 = vunpack.c.l.b16 %v1713
        %v1970 = vunpack.c.l.b16 %v1714
        %v1971 = vunpack.c.l.b16 %v1715
        %v1972 = vunpack.c.l.b16 %v1716
        %v1973 = vunpack.c.l.b16 %v1717
        %v1974 = vunpack.c.l.b16 %v1718
        %v1975 = vunpack.c.l.b16 %v1719
        %v1976 = vunpack.c.l.b16 %v1720
        %v1977 = vunpack.c.l.b16 %v1721
        %v1978 = vunpack.c.l.b16 %v1722
        %v1979 = vunpack.c.l.b16 %v1723
        %v1980 = vunpack.c.l.b16 %v1724
        %v1981 = vunpack.c.l.b16 %v1725
        %v1982 = vunpack.c.l.b16 %v1726
        %v1983 = vunpack.c.l.b16 %v1727
        %v1984 = vunpack.c.l.b16 %v1728
        %v1985 = vunpack.c.l.b16 %v1729
        %v1986 = vunpack.c.l.b16 %v1730
        %v1987 = vunpack.c.l.b16 %v1731
        %v1988 = vunpack.c.l.b16 %v1732
        %v1989 = vunpack.c.l.b16 %v1733
        %v1990 = vunpack.c.l.b16 %v1734
        %v1991 = vunpack.c.l.b16 %v1735
        %v1992 = vunpack.c.l.b16 %v1736
        %v1993 = vunpack.c.l.b16 %v1737
        %v1994 = vunpack.c.l.b16 %v1738
        %v1995 = vunpack.c.l.b16 %v1739
        %v1996 = vunpack.c.l.b16 %v1740
        %v1997 = vunpack.c.l.b16 %v1741
        %v1998 = vunpack.c.l.b16 %v1742
        %v1999 = vunpack.c.l.b16 %v1743
        %v2000 = vunpack.c.l.b16 %v1744
        %v2001 = vunpack.c.l.b16 %v1745
        %v2002 = vunpack.c.l.b16 %v1746
        %v2003 = vunpack.c.l.b16 %v1747
        %v2004 = vunpack.c.l.b16 %v1748
        %v2005 = vunpack.c.l.b16 %v1749
        %v2006 = vunpack.c.l.b16 %v1750
        %v2007 = vunpack.c.l.b16 %v1751
        %v2008 = vunpack.c.l.b16 %v1752
        %v2009 = vpack.c.b16 %v1882, %v1881
        %v2010 = vpack.c.b16 %v1884, %v1883
        %v2011 = vpack.c.b16 %v1886, %v1885
        %v2012 = vpack.c.b16 %v1888, %v1887
        %v2013 = vpack.c.b16 %v1890, %v1889
        %v2014 = vpack.c.b16 %v1892, %v1891
        %v2015 = vpack.c.b16 %v1894, %v1893
        %v2016 = vpack.c.b16 %v1896, %v1895
        %v2017 = vpack.c.b16 %v1898, %v1897
        %v2018 = vpack.c.b16 %v1900, %v1899
        %v2019 = vpack.c.b16 %v1902, %v1901
        %v2020 = vpack.c.b16 %v1904, %v1903
        %v2021 = vpack.c.b16 %v1906, %v1905
        %v2022 = vpack.c.b16 %v1908, %v1907
        %v2023 = vpack.c.b16 %v1910, %v1909
        %v2024 = vpack.c.b16 %v1912, %v1911
        %v2025 = vpack.c.b16 %v1914, %v1913
        %v2026 = vpack.c.b16 %v1916, %v1915
        %v2027 = vpack.c.b16 %v1918, %v1917
        %v2028 = vpack.c.b16 %v1920, %v1919
        %v2029 = vpack.c.b16 %v1922, %v1921
        %v2030 = vpack.c.b16 %v1924, %v1923
        %v2031 = vpack.c.b16 %v1926, %v1925
        %v2032 = vpack.c.b16 %v1928, %v1927
        %v2033 = vpack.c.b16 %v1930, %v1929
        %v2034 = vpack.c.b16 %v1932, %v1931
        %v2035 = vpack.c.b16 %v1934, %v1933
        %v2036 = vpack.c.b16 %v1936, %v1935
        %v2037 = vpack.c.b16 %v1938, %v1937
        %v2038 = vpack.c.b16 %v1940, %v1939
        %v2039 = vpack.c.b16 %v1942, %v1941
        %v2040 = vpack.c.b16 %v1944, %v1943
        %v2041 = vpack.c.b16 %v1946, %v1945
        %v2042 = vpack.c.b16 %v1948, %v1947
        %v2043 = vpack.c.b16 %v1950, %v1949
        %v2044 = vpack.c.b16 %v1952, %v1951
        %v2045 = vpack.c.b16 %v1954, %v1953
        %v2046 = vpack.c.b16 %v1956, %v1955
        %v2047 = vpack.c.b16 %v1958, %v1957
        %v2048 = vpack.c.b16 %v1960, %v1959
        %v2049 = vpack.c.b16 %v1962, %v1961
        %v2050 = vpack.c.b16 %v1964, %v1963
        %v2051 = vpack.c.b16 %v1966, %v1965
        %v2052 = vpack.c.b16 %v1968, %v1967
        %v2053 = vpack.c.b16 %v1970, %v1969
        %v2054 = vpack.c.b16 %v1972, %v1971
        %v2055 = vpack.c.b16 %v1974, %v1973
        %v2056 = vpack.c.b16 %v1976, %v1975
        %v2057 = vpack.c.b16 %v1978, %v1977
        %v2058 = vpack.c.b16 %v1980, %v1979
        %v2059 = vpack.c.b16 %v1982, %v1981
        %v2060 = vpack.c.b16 %v1984, %v1983
        %v2061 = vpack.c.b16 %v1986, %v1985
        %v2062 = vpack.c.b16 %v1988, %v1987
        %v2063 = vpack.c.b16 %v1990, %v1989
        %v2064 = vpack.c.b16 %v1992, %v1991
        %v2065 = vpack.c.b16 %v1994, %v1993
        %v2066 = vpack.c.b16 %v1996, %v1995
        %v2067 = vpack.c.b16 %v1998, %v1997
        %v2068 = vpack.c.b16 %v2000, %v1999
        %v2069 = vpack.c.b16 %v2002, %v2001
        %v2070 = vpack.c.b16 %v2004, %v2003
        %v2071 = vpack.c.b16 %v2006, %v2005
        %v2072 = vpack.c.b16 %v2008, %v2007
        %2137 = vmatpush.bf16.msra.mxu0 %v2016
        %2138 = vmatpush.bf16.msra.mxu0 %v2015
        %2139 = vmatpush.bf16.msra.mxu0 %v2014
        %2140 = vmatpush.bf16.msra.mxu0 %v2013
        %2141 = vmatpush.bf16.msra.mxu0 %v2012
        %2142 = vmatpush.bf16.msra.mxu0 %v2011
        %2143 = vmatpush.bf16.msra.mxu0 %v2010
        %2144 = vmatpush.bf16.msra.mxu0 %v2009
        %2145 = vmatmul.bf16.gmra.mxu0 %v1369
        %v2146 = vpop.f32.mrf.mxu0
        %v2147 = vadd.f32 0.0, %v2146
        %v2148 = vpop.f32.mrf.mxu0
        %v2149 = vadd.f32 0.0, %v2148
        %2150 = vmatmul.bf16.gmra.mxu0 %v1377
        %v2151 = vpop.f32.mrf.mxu0
        %v2152 = vadd.f32 0.0, %v2151
        %v2153 = vpop.f32.mrf.mxu0
        %v2154 = vadd.f32 0.0, %v2153
        %2155 = vmatmul.bf16.gmra.mxu0 %v1385
        %v2156 = vpop.f32.mrf.mxu0
        %v2157 = vadd.f32 0.0, %v2156
        %v2158 = vpop.f32.mrf.mxu0
        %v2159 = vadd.f32 0.0, %v2158
        %2160 = vmatmul.bf16.gmra.mxu0 %v1393
        %v2161 = vpop.f32.mrf.mxu0
        %v2162 = vadd.f32 0.0, %v2161
        %v2163 = vpop.f32.mrf.mxu0
        %v2164 = vadd.f32 0.0, %v2163
        %2165 = vmatmul.bf16.gmra.mxu0 %v1401
        %v2166 = vpop.f32.mrf.mxu0
        %v2167 = vadd.f32 0.0, %v2166
        %v2168 = vpop.f32.mrf.mxu0
        %v2169 = vadd.f32 0.0, %v2168
        %2170 = vmatmul.bf16.gmra.mxu0 %v1409
        %v2171 = vpop.f32.mrf.mxu0
        %v2172 = vadd.f32 0.0, %v2171
        %v2173 = vpop.f32.mrf.mxu0
        %v2174 = vadd.f32 0.0, %v2173
        %2175 = vmatmul.bf16.gmra.mxu0 %v1417
        %v2176 = vpop.f32.mrf.mxu0
        %v2177 = vadd.f32 0.0, %v2176
        %v2178 = vpop.f32.mrf.mxu0
        %v2179 = vadd.f32 0.0, %v2178
        %2180 = vmatmul.bf16.gmra.mxu0 %v1425
        %v2181 = vpop.f32.mrf.mxu0
        %v2182 = vadd.f32 0.0, %v2181
        %v2183 = vpop.f32.mrf.mxu0
        %v2184 = vadd.f32 0.0, %v2183
        %2185 = vmatmul.bf16.gmra.mxu0 %v1433
        %v2186 = vpop.f32.mrf.mxu0
        %v2187 = vadd.f32 0.0, %v2186
        %v2188 = vpop.f32.mrf.mxu0
        %v2189 = vadd.f32 0.0, %v2188
        %2190 = vmatmul.bf16.gmra.mxu0 %v1441
        %v2191 = vpop.f32.mrf.mxu0
        %v2192 = vadd.f32 0.0, %v2191
        %v2193 = vpop.f32.mrf.mxu0
        %v2194 = vadd.f32 0.0, %v2193
        %2195 = vmatmul.bf16.gmra.mxu0 %v1449
        %v2196 = vpop.f32.mrf.mxu0
        %v2197 = vadd.f32 0.0, %v2196
        %v2198 = vpop.f32.mrf.mxu0
        %v2199 = vadd.f32 0.0, %v2198
        %2200 = vmatmul.bf16.gmra.mxu0 %v1457
        %v2201 = vpop.f32.mrf.mxu0
        %v2202 = vadd.f32 0.0, %v2201
        %v2203 = vpop.f32.mrf.mxu0
        %v2204 = vadd.f32 0.0, %v2203
        %2205 = vmatmul.bf16.gmra.mxu0 %v1465
        %v2206 = vpop.f32.mrf.mxu0
        %v2207 = vadd.f32 0.0, %v2206
        %v2208 = vpop.f32.mrf.mxu0
        %v2209 = vadd.f32 0.0, %v2208
        %2210 = vmatmul.bf16.gmra.mxu0 %v1473
        %v2211 = vpop.f32.mrf.mxu0
        %v2212 = vadd.f32 0.0, %v2211
        %v2213 = vpop.f32.mrf.mxu0
        %v2214 = vadd.f32 0.0, %v2213
        %2215 = vmatmul.bf16.gmra.mxu0 %v1481
        %v2216 = vpop.f32.mrf.mxu0
        %v2217 = vadd.f32 0.0, %v2216
        %v2218 = vpop.f32.mrf.mxu0
        %v2219 = vadd.f32 0.0, %v2218
        %2220 = vmatmul.bf16.gmra.mxu0 %v1489
        %v2221 = vpop.f32.mrf.mxu0
        %v2222 = vadd.f32 0.0, %v2221
        %v2223 = vpop.f32.mrf.mxu0
        %v2224 = vadd.f32 0.0, %v2223
        %2225 = vmatmul.bf16.gmra.mxu0 %v1497
        %v2226 = vpop.f32.mrf.mxu0
        %v2227 = vadd.f32 0.0, %v2226
        %v2228 = vpop.f32.mrf.mxu0
        %v2229 = vadd.f32 0.0, %v2228
        %2230 = vmatmul.bf16.gmra.mxu0 %v1505
        %v2231 = vpop.f32.mrf.mxu0
        %v2232 = vadd.f32 0.0, %v2231
        %v2233 = vpop.f32.mrf.mxu0
        %v2234 = vadd.f32 0.0, %v2233
        %2235 = vmatmul.bf16.gmra.mxu0 %v1513
        %v2236 = vpop.f32.mrf.mxu0
        %v2237 = vadd.f32 0.0, %v2236
        %v2238 = vpop.f32.mrf.mxu0
        %v2239 = vadd.f32 0.0, %v2238
        %2240 = vmatmul.bf16.gmra.mxu0 %v1521
        %v2241 = vpop.f32.mrf.mxu0
        %v2242 = vadd.f32 0.0, %v2241
        %v2243 = vpop.f32.mrf.mxu0
        %v2244 = vadd.f32 0.0, %v2243
        %2245 = vmatmul.bf16.gmra.mxu0 %v1529
        %v2246 = vpop.f32.mrf.mxu0
        %v2247 = vadd.f32 0.0, %v2246
        %v2248 = vpop.f32.mrf.mxu0
        %v2249 = vadd.f32 0.0, %v2248
        %2250 = vmatmul.bf16.gmra.mxu0 %v1537
        %v2251 = vpop.f32.mrf.mxu0
        %v2252 = vadd.f32 0.0, %v2251
        %v2253 = vpop.f32.mrf.mxu0
        %v2254 = vadd.f32 0.0, %v2253
        %2255 = vmatmul.bf16.gmra.mxu0 %v1545
        %v2256 = vpop.f32.mrf.mxu0
        %v2257 = vadd.f32 0.0, %v2256
        %v2258 = vpop.f32.mrf.mxu0
        %v2259 = vadd.f32 0.0, %v2258
        %2260 = vmatmul.bf16.gmra.mxu0 %v1553
        %v2261 = vpop.f32.mrf.mxu0
        %v2262 = vadd.f32 0.0, %v2261
        %v2263 = vpop.f32.mrf.mxu0
        %v2264 = vadd.f32 0.0, %v2263
        %2265 = vmatmul.bf16.gmra.mxu0 %v1561
        %v2266 = vpop.f32.mrf.mxu0
        %v2267 = vadd.f32 0.0, %v2266
        %v2268 = vpop.f32.mrf.mxu0
        %v2269 = vadd.f32 0.0, %v2268
        %2270 = vmatmul.bf16.gmra.mxu0 %v1569
        %v2271 = vpop.f32.mrf.mxu0
        %v2272 = vadd.f32 0.0, %v2271
        %v2273 = vpop.f32.mrf.mxu0
        %v2274 = vadd.f32 0.0, %v2273
        %2275 = vmatmul.bf16.gmra.mxu0 %v1577
        %v2276 = vpop.f32.mrf.mxu0
        %v2277 = vadd.f32 0.0, %v2276
        %v2278 = vpop.f32.mrf.mxu0
        %v2279 = vadd.f32 0.0, %v2278
        %2280 = vmatmul.bf16.gmra.mxu0 %v1585
        %v2281 = vpop.f32.mrf.mxu0
        %v2282 = vadd.f32 0.0, %v2281
        %v2283 = vpop.f32.mrf.mxu0
        %v2284 = vadd.f32 0.0, %v2283
        %2285 = vmatmul.bf16.gmra.mxu0 %v1593
        %v2286 = vpop.f32.mrf.mxu0
        %v2287 = vadd.f32 0.0, %v2286
        %v2288 = vpop.f32.mrf.mxu0
        %v2289 = vadd.f32 0.0, %v2288
        %2290 = vmatmul.bf16.gmra.mxu0 %v1601
        %v2291 = vpop.f32.mrf.mxu0
        %v2292 = vadd.f32 0.0, %v2291
        %v2293 = vpop.f32.mrf.mxu0
        %v2294 = vadd.f32 0.0, %v2293
        %2295 = vmatmul.bf16.gmra.mxu0 %v1609
        %v2296 = vpop.f32.mrf.mxu0
        %v2297 = vadd.f32 0.0, %v2296
        %v2298 = vpop.f32.mrf.mxu0
        %v2299 = vadd.f32 0.0, %v2298
        %2300 = vmatmul.bf16.gmra.mxu0 %v1617
        %v2301 = vpop.f32.mrf.mxu0
        %v2302 = vadd.f32 0.0, %v2301
        %v2303 = vpop.f32.mrf.mxu0
        %v2304 = vadd.f32 0.0, %v2303
        %2305 = vdwg.mxu0
        %2306 = vmatpush.bf16.msra.mxu0 %v2024
        %2307 = vmatpush.bf16.msra.mxu0 %v2023
        %2308 = vmatpush.bf16.msra.mxu0 %v2022
        %2309 = vmatpush.bf16.msra.mxu0 %v2021
        %2310 = vmatpush.bf16.msra.mxu0 %v2020
        %2311 = vmatpush.bf16.msra.mxu0 %v2019
        %2312 = vmatpush.bf16.msra.mxu0 %v2018
        %2313 = vmatpush.bf16.msra.mxu0 %v2017
        %2314 = vmatmul.bf16.gmra.mxu0 %v1370
        %v2315 = vpop.f32.mrf.mxu0
        %v2316 = vadd.f32 %v2147, %v2315
        %v2317 = vpop.f32.mrf.mxu0
        %v2318 = vadd.f32 %v2149, %v2317
        %2319 = vmatmul.bf16.gmra.mxu0 %v1378
        %v2320 = vpop.f32.mrf.mxu0
        %v2321 = vadd.f32 %v2152, %v2320
        %v2322 = vpop.f32.mrf.mxu0
        %v2323 = vadd.f32 %v2154, %v2322
        %2324 = vmatmul.bf16.gmra.mxu0 %v1386
        %v2325 = vpop.f32.mrf.mxu0
        %v2326 = vadd.f32 %v2157, %v2325
        %v2327 = vpop.f32.mrf.mxu0
        %v2328 = vadd.f32 %v2159, %v2327
        %2329 = vmatmul.bf16.gmra.mxu0 %v1394
        %v2330 = vpop.f32.mrf.mxu0
        %v2331 = vadd.f32 %v2162, %v2330
        %v2332 = vpop.f32.mrf.mxu0
        %v2333 = vadd.f32 %v2164, %v2332
        %2334 = vmatmul.bf16.gmra.mxu0 %v1402
        %v2335 = vpop.f32.mrf.mxu0
        %v2336 = vadd.f32 %v2167, %v2335
        %v2337 = vpop.f32.mrf.mxu0
        %v2338 = vadd.f32 %v2169, %v2337
        %2339 = vmatmul.bf16.gmra.mxu0 %v1410
        %v2340 = vpop.f32.mrf.mxu0
        %v2341 = vadd.f32 %v2172, %v2340
        %v2342 = vpop.f32.mrf.mxu0
        %v2343 = vadd.f32 %v2174, %v2342
        %2344 = vmatmul.bf16.gmra.mxu0 %v1418
        %v2345 = vpop.f32.mrf.mxu0
        %v2346 = vadd.f32 %v2177, %v2345
        %v2347 = vpop.f32.mrf.mxu0
        %v2348 = vadd.f32 %v2179, %v2347
        %2349 = vmatmul.bf16.gmra.mxu0 %v1426
        %v2350 = vpop.f32.mrf.mxu0
        %v2351 = vadd.f32 %v2182, %v2350
        %v2352 = vpop.f32.mrf.mxu0
        %v2353 = vadd.f32 %v2184, %v2352
        %2354 = vmatmul.bf16.gmra.mxu0 %v1434
        %v2355 = vpop.f32.mrf.mxu0
        %v2356 = vadd.f32 %v2187, %v2355
        %v2357 = vpop.f32.mrf.mxu0
        %v2358 = vadd.f32 %v2189, %v2357
        %2359 = vmatmul.bf16.gmra.mxu0 %v1442
        %v2360 = vpop.f32.mrf.mxu0
        %v2361 = vadd.f32 %v2192, %v2360
        %v2362 = vpop.f32.mrf.mxu0
        %v2363 = vadd.f32 %v2194, %v2362
        %2364 = vmatmul.bf16.gmra.mxu0 %v1450
        %v2365 = vpop.f32.mrf.mxu0
        %v2366 = vadd.f32 %v2197, %v2365
        %v2367 = vpop.f32.mrf.mxu0
        %v2368 = vadd.f32 %v2199, %v2367
        %2369 = vmatmul.bf16.gmra.mxu0 %v1458
        %v2370 = vpop.f32.mrf.mxu0
        %v2371 = vadd.f32 %v2202, %v2370
        %v2372 = vpop.f32.mrf.mxu0
        %v2373 = vadd.f32 %v2204, %v2372
        %2374 = vmatmul.bf16.gmra.mxu0 %v1466
        %v2375 = vpop.f32.mrf.mxu0
        %v2376 = vadd.f32 %v2207, %v2375
        %v2377 = vpop.f32.mrf.mxu0
        %v2378 = vadd.f32 %v2209, %v2377
        %2379 = vmatmul.bf16.gmra.mxu0 %v1474
        %v2380 = vpop.f32.mrf.mxu0
        %v2381 = vadd.f32 %v2212, %v2380
        %v2382 = vpop.f32.mrf.mxu0
        %v2383 = vadd.f32 %v2214, %v2382
        %2384 = vmatmul.bf16.gmra.mxu0 %v1482
        %v2385 = vpop.f32.mrf.mxu0
        %v2386 = vadd.f32 %v2217, %v2385
        %v2387 = vpop.f32.mrf.mxu0
        %v2388 = vadd.f32 %v2219, %v2387
        %2389 = vmatmul.bf16.gmra.mxu0 %v1490
        %v2390 = vpop.f32.mrf.mxu0
        %v2391 = vadd.f32 %v2222, %v2390
        %v2392 = vpop.f32.mrf.mxu0
        %v2393 = vadd.f32 %v2224, %v2392
        %2394 = vmatmul.bf16.gmra.mxu0 %v1498
        %v2395 = vpop.f32.mrf.mxu0
        %v2396 = vadd.f32 %v2227, %v2395
        %v2397 = vpop.f32.mrf.mxu0
        %v2398 = vadd.f32 %v2229, %v2397
        %2399 = vmatmul.bf16.gmra.mxu0 %v1506
        %v2400 = vpop.f32.mrf.mxu0
        %v2401 = vadd.f32 %v2232, %v2400
        %v2402 = vpop.f32.mrf.mxu0
        %v2403 = vadd.f32 %v2234, %v2402
        %2404 = vmatmul.bf16.gmra.mxu0 %v1514
        %v2405 = vpop.f32.mrf.mxu0
        %v2406 = vadd.f32 %v2237, %v2405
        %v2407 = vpop.f32.mrf.mxu0
        %v2408 = vadd.f32 %v2239, %v2407
        %2409 = vmatmul.bf16.gmra.mxu0 %v1522
        %v2410 = vpop.f32.mrf.mxu0
        %v2411 = vadd.f32 %v2242, %v2410
        %v2412 = vpop.f32.mrf.mxu0
        %v2413 = vadd.f32 %v2244, %v2412
        %2414 = vmatmul.bf16.gmra.mxu0 %v1530
        %v2415 = vpop.f32.mrf.mxu0
        %v2416 = vadd.f32 %v2247, %v2415
        %v2417 = vpop.f32.mrf.mxu0
        %v2418 = vadd.f32 %v2249, %v2417
        %2419 = vmatmul.bf16.gmra.mxu0 %v1538
        %v2420 = vpop.f32.mrf.mxu0
        %v2421 = vadd.f32 %v2252, %v2420
        %v2422 = vpop.f32.mrf.mxu0
        %v2423 = vadd.f32 %v2254, %v2422
        %2424 = vmatmul.bf16.gmra.mxu0 %v1546
        %v2425 = vpop.f32.mrf.mxu0
        %v2426 = vadd.f32 %v2257, %v2425
        %v2427 = vpop.f32.mrf.mxu0
        %v2428 = vadd.f32 %v2259, %v2427
        %2429 = vmatmul.bf16.gmra.mxu0 %v1554
        %v2430 = vpop.f32.mrf.mxu0
        %v2431 = vadd.f32 %v2262, %v2430
        %v2432 = vpop.f32.mrf.mxu0
        %v2433 = vadd.f32 %v2264, %v2432
        %2434 = vmatmul.bf16.gmra.mxu0 %v1562
        %v2435 = vpop.f32.mrf.mxu0
        %v2436 = vadd.f32 %v2267, %v2435
        %v2437 = vpop.f32.mrf.mxu0
        %v2438 = vadd.f32 %v2269, %v2437
        %2439 = vmatmul.bf16.gmra.mxu0 %v1570
        %v2440 = vpop.f32.mrf.mxu0
        %v2441 = vadd.f32 %v2272, %v2440
        %v2442 = vpop.f32.mrf.mxu0
        %v2443 = vadd.f32 %v2274, %v2442
        %2444 = vmatmul.bf16.gmra.mxu0 %v1578
        %v2445 = vpop.f32.mrf.mxu0
        %v2446 = vadd.f32 %v2277, %v2445
        %v2447 = vpop.f32.mrf.mxu0
        %v2448 = vadd.f32 %v2279, %v2447
        %2449 = vmatmul.bf16.gmra.mxu0 %v1586
        %v2450 = vpop.f32.mrf.mxu0
        %v2451 = vadd.f32 %v2282, %v2450
        %v2452 = vpop.f32.mrf.mxu0
        %v2453 = vadd.f32 %v2284, %v2452
        %2454 = vmatmul.bf16.gmra.mxu0 %v1594
        %v2455 = vpop.f32.mrf.mxu0
        %v2456 = vadd.f32 %v2287, %v2455
        %v2457 = vpop.f32.mrf.mxu0
        %v2458 = vadd.f32 %v2289, %v2457
        %2459 = vmatmul.bf16.gmra.mxu0 %v1602
        %v2460 = vpop.f32.mrf.mxu0
        %v2461 = vadd.f32 %v2292, %v2460
        %v2462 = vpop.f32.mrf.mxu0
        %v2463 = vadd.f32 %v2294, %v2462
        %2464 = vmatmul.bf16.gmra.mxu0 %v1610
        %v2465 = vpop.f32.mrf.mxu0
        %v2466 = vadd.f32 %v2297, %v2465
        %v2467 = vpop.f32.mrf.mxu0
        %v2468 = vadd.f32 %v2299, %v2467
        %2469 = vmatmul.bf16.gmra.mxu0 %v1618
        %v2470 = vpop.f32.mrf.mxu0
        %v2471 = vadd.f32 %v2302, %v2470
        %v2472 = vpop.f32.mrf.mxu0
        %v2473 = vadd.f32 %v2304, %v2472
        %2474 = vdwg.mxu0
        %2475 = vmatpush.bf16.msra.mxu0 %v2032
        %2476 = vmatpush.bf16.msra.mxu0 %v2031
        %2477 = vmatpush.bf16.msra.mxu0 %v2030
        %2478 = vmatpush.bf16.msra.mxu0 %v2029
        %2479 = vmatpush.bf16.msra.mxu0 %v2028
        %2480 = vmatpush.bf16.msra.mxu0 %v2027
        %2481 = vmatpush.bf16.msra.mxu0 %v2026
        %2482 = vmatpush.bf16.msra.mxu0 %v2025
        %2483 = vmatmul.bf16.gmra.mxu0 %v1371
        %v2484 = vpop.f32.mrf.mxu0
        %v2485 = vadd.f32 %v2316, %v2484
        %v2486 = vpop.f32.mrf.mxu0
        %v2487 = vadd.f32 %v2318, %v2486
        %2488 = vmatmul.bf16.gmra.mxu0 %v1379
        %v2489 = vpop.f32.mrf.mxu0
        %v2490 = vadd.f32 %v2321, %v2489
        %v2491 = vpop.f32.mrf.mxu0
        %v2492 = vadd.f32 %v2323, %v2491
        %2493 = vmatmul.bf16.gmra.mxu0 %v1387
        %v2494 = vpop.f32.mrf.mxu0
        %v2495 = vadd.f32 %v2326, %v2494
        %v2496 = vpop.f32.mrf.mxu0
        %v2497 = vadd.f32 %v2328, %v2496
        %2498 = vmatmul.bf16.gmra.mxu0 %v1395
        %v2499 = vpop.f32.mrf.mxu0
        %v2500 = vadd.f32 %v2331, %v2499
        %v2501 = vpop.f32.mrf.mxu0
        %v2502 = vadd.f32 %v2333, %v2501
        %2503 = vmatmul.bf16.gmra.mxu0 %v1403
        %v2504 = vpop.f32.mrf.mxu0
        %v2505 = vadd.f32 %v2336, %v2504
        %v2506 = vpop.f32.mrf.mxu0
        %v2507 = vadd.f32 %v2338, %v2506
        %2508 = vmatmul.bf16.gmra.mxu0 %v1411
        %v2509 = vpop.f32.mrf.mxu0
        %v2510 = vadd.f32 %v2341, %v2509
        %v2511 = vpop.f32.mrf.mxu0
        %v2512 = vadd.f32 %v2343, %v2511
        %2513 = vmatmul.bf16.gmra.mxu0 %v1419
        %v2514 = vpop.f32.mrf.mxu0
        %v2515 = vadd.f32 %v2346, %v2514
        %v2516 = vpop.f32.mrf.mxu0
        %v2517 = vadd.f32 %v2348, %v2516
        %2518 = vmatmul.bf16.gmra.mxu0 %v1427
        %v2519 = vpop.f32.mrf.mxu0
        %v2520 = vadd.f32 %v2351, %v2519
        %v2521 = vpop.f32.mrf.mxu0
        %v2522 = vadd.f32 %v2353, %v2521
        %2523 = vmatmul.bf16.gmra.mxu0 %v1435
        %v2524 = vpop.f32.mrf.mxu0
        %v2525 = vadd.f32 %v2356, %v2524
        %v2526 = vpop.f32.mrf.mxu0
        %v2527 = vadd.f32 %v2358, %v2526
        %2528 = vmatmul.bf16.gmra.mxu0 %v1443
        %v2529 = vpop.f32.mrf.mxu0
        %v2530 = vadd.f32 %v2361, %v2529
        %v2531 = vpop.f32.mrf.mxu0
        %v2532 = vadd.f32 %v2363, %v2531
        %2533 = vmatmul.bf16.gmra.mxu0 %v1451
        %v2534 = vpop.f32.mrf.mxu0
        %v2535 = vadd.f32 %v2366, %v2534
        %v2536 = vpop.f32.mrf.mxu0
        %v2537 = vadd.f32 %v2368, %v2536
        %2538 = vmatmul.bf16.gmra.mxu0 %v1459
        %v2539 = vpop.f32.mrf.mxu0
        %v2540 = vadd.f32 %v2371, %v2539
        %v2541 = vpop.f32.mrf.mxu0
        %v2542 = vadd.f32 %v2373, %v2541
        %2543 = vmatmul.bf16.gmra.mxu0 %v1467
        %v2544 = vpop.f32.mrf.mxu0
        %v2545 = vadd.f32 %v2376, %v2544
        %v2546 = vpop.f32.mrf.mxu0
        %v2547 = vadd.f32 %v2378, %v2546
        %2548 = vmatmul.bf16.gmra.mxu0 %v1475
        %v2549 = vpop.f32.mrf.mxu0
        %v2550 = vadd.f32 %v2381, %v2549
        %v2551 = vpop.f32.mrf.mxu0
        %v2552 = vadd.f32 %v2383, %v2551
        %2553 = vmatmul.bf16.gmra.mxu0 %v1483
        %v2554 = vpop.f32.mrf.mxu0
        %v2555 = vadd.f32 %v2386, %v2554
        %v2556 = vpop.f32.mrf.mxu0
        %v2557 = vadd.f32 %v2388, %v2556
        %2558 = vmatmul.bf16.gmra.mxu0 %v1491
        %v2559 = vpop.f32.mrf.mxu0
        %v2560 = vadd.f32 %v2391, %v2559
        %v2561 = vpop.f32.mrf.mxu0
        %v2562 = vadd.f32 %v2393, %v2561
        %2563 = vmatmul.bf16.gmra.mxu0 %v1499
        %v2564 = vpop.f32.mrf.mxu0
        %v2565 = vadd.f32 %v2396, %v2564
        %v2566 = vpop.f32.mrf.mxu0
        %v2567 = vadd.f32 %v2398, %v2566
        %2568 = vmatmul.bf16.gmra.mxu0 %v1507
        %v2569 = vpop.f32.mrf.mxu0
        %v2570 = vadd.f32 %v2401, %v2569
        %v2571 = vpop.f32.mrf.mxu0
        %v2572 = vadd.f32 %v2403, %v2571
        %2573 = vmatmul.bf16.gmra.mxu0 %v1515
        %v2574 = vpop.f32.mrf.mxu0
        %v2575 = vadd.f32 %v2406, %v2574
        %v2576 = vpop.f32.mrf.mxu0
        %v2577 = vadd.f32 %v2408, %v2576
        %2578 = vmatmul.bf16.gmra.mxu0 %v1523
        %v2579 = vpop.f32.mrf.mxu0
        %v2580 = vadd.f32 %v2411, %v2579
        %v2581 = vpop.f32.mrf.mxu0
        %v2582 = vadd.f32 %v2413, %v2581
        %2583 = vmatmul.bf16.gmra.mxu0 %v1531
        %v2584 = vpop.f32.mrf.mxu0
        %v2585 = vadd.f32 %v2416, %v2584
        %v2586 = vpop.f32.mrf.mxu0
        %v2587 = vadd.f32 %v2418, %v2586
        %2588 = vmatmul.bf16.gmra.mxu0 %v1539
        %v2589 = vpop.f32.mrf.mxu0
        %v2590 = vadd.f32 %v2421, %v2589
        %v2591 = vpop.f32.mrf.mxu0
        %v2592 = vadd.f32 %v2423, %v2591
        %2593 = vmatmul.bf16.gmra.mxu0 %v1547
        %v2594 = vpop.f32.mrf.mxu0
        %v2595 = vadd.f32 %v2426, %v2594
        %v2596 = vpop.f32.mrf.mxu0
        %v2597 = vadd.f32 %v2428, %v2596
        %2598 = vmatmul.bf16.gmra.mxu0 %v1555
        %v2599 = vpop.f32.mrf.mxu0
        %v2600 = vadd.f32 %v2431, %v2599
        %v2601 = vpop.f32.mrf.mxu0
        %v2602 = vadd.f32 %v2433, %v2601
        %2603 = vmatmul.bf16.gmra.mxu0 %v1563
        %v2604 = vpop.f32.mrf.mxu0
        %v2605 = vadd.f32 %v2436, %v2604
        %v2606 = vpop.f32.mrf.mxu0
        %v2607 = vadd.f32 %v2438, %v2606
        %2608 = vmatmul.bf16.gmra.mxu0 %v1571
        %v2609 = vpop.f32.mrf.mxu0
        %v2610 = vadd.f32 %v2441, %v2609
        %v2611 = vpop.f32.mrf.mxu0
        %v2612 = vadd.f32 %v2443, %v2611
        %2613 = vmatmul.bf16.gmra.mxu0 %v1579
        %v2614 = vpop.f32.mrf.mxu0
        %v2615 = vadd.f32 %v2446, %v2614
        %v2616 = vpop.f32.mrf.mxu0
        %v2617 = vadd.f32 %v2448, %v2616
        %2618 = vmatmul.bf16.gmra.mxu0 %v1587
        %v2619 = vpop.f32.mrf.mxu0
        %v2620 = vadd.f32 %v2451, %v2619
        %v2621 = vpop.f32.mrf.mxu0
        %v2622 = vadd.f32 %v2453, %v2621
        %2623 = vmatmul.bf16.gmra.mxu0 %v1595
        %v2624 = vpop.f32.mrf.mxu0
        %v2625 = vadd.f32 %v2456, %v2624
        %v2626 = vpop.f32.mrf.mxu0
        %v2627 = vadd.f32 %v2458, %v2626
        %2628 = vmatmul.bf16.gmra.mxu0 %v1603
        %v2629 = vpop.f32.mrf.mxu0
        %v2630 = vadd.f32 %v2461, %v2629
        %v2631 = vpop.f32.mrf.mxu0
        %v2632 = vadd.f32 %v2463, %v2631
        %2633 = vmatmul.bf16.gmra.mxu0 %v1611
        %v2634 = vpop.f32.mrf.mxu0
        %v2635 = vadd.f32 %v2466, %v2634
        %v2636 = vpop.f32.mrf.mxu0
        %v2637 = vadd.f32 %v2468, %v2636
        %2638 = vmatmul.bf16.gmra.mxu0 %v1619
        %v2639 = vpop.f32.mrf.mxu0
        %v2640 = vadd.f32 %v2471, %v2639
        %v2641 = vpop.f32.mrf.mxu0
        %v2642 = vadd.f32 %v2473, %v2641
        %2643 = vdwg.mxu0
        %2644 = vmatpush.bf16.msra.mxu0 %v2040
        %2645 = vmatpush.bf16.msra.mxu0 %v2039
        %2646 = vmatpush.bf16.msra.mxu0 %v2038
        %2647 = vmatpush.bf16.msra.mxu0 %v2037
        %2648 = vmatpush.bf16.msra.mxu0 %v2036
        %2649 = vmatpush.bf16.msra.mxu0 %v2035
        %2650 = vmatpush.bf16.msra.mxu0 %v2034
        %2651 = vmatpush.bf16.msra.mxu0 %v2033
        %2652 = vmatmul.bf16.gmra.mxu0 %v1372
        %v2653 = vpop.f32.mrf.mxu0
        %v2654 = vadd.f32 %v2485, %v2653
        %v2655 = vpop.f32.mrf.mxu0
        %v2656 = vadd.f32 %v2487, %v2655
        %2657 = vmatmul.bf16.gmra.mxu0 %v1380
        %v2658 = vpop.f32.mrf.mxu0
        %v2659 = vadd.f32 %v2490, %v2658
        %v2660 = vpop.f32.mrf.mxu0
        %v2661 = vadd.f32 %v2492, %v2660
        %2662 = vmatmul.bf16.gmra.mxu0 %v1388
        %v2663 = vpop.f32.mrf.mxu0
        %v2664 = vadd.f32 %v2495, %v2663
        %v2665 = vpop.f32.mrf.mxu0
        %v2666 = vadd.f32 %v2497, %v2665
        %2667 = vmatmul.bf16.gmra.mxu0 %v1396
        %v2668 = vpop.f32.mrf.mxu0
        %v2669 = vadd.f32 %v2500, %v2668
        %v2670 = vpop.f32.mrf.mxu0
        %v2671 = vadd.f32 %v2502, %v2670
        %2672 = vmatmul.bf16.gmra.mxu0 %v1404
        %v2673 = vpop.f32.mrf.mxu0
        %v2674 = vadd.f32 %v2505, %v2673
        %v2675 = vpop.f32.mrf.mxu0
        %v2676 = vadd.f32 %v2507, %v2675
        %2677 = vmatmul.bf16.gmra.mxu0 %v1412
        %v2678 = vpop.f32.mrf.mxu0
        %v2679 = vadd.f32 %v2510, %v2678
        %v2680 = vpop.f32.mrf.mxu0
        %v2681 = vadd.f32 %v2512, %v2680
        %2682 = vmatmul.bf16.gmra.mxu0 %v1420
        %v2683 = vpop.f32.mrf.mxu0
        %v2684 = vadd.f32 %v2515, %v2683
        %v2685 = vpop.f32.mrf.mxu0
        %v2686 = vadd.f32 %v2517, %v2685
        %2687 = vmatmul.bf16.gmra.mxu0 %v1428
        %v2688 = vpop.f32.mrf.mxu0
        %v2689 = vadd.f32 %v2520, %v2688
        %v2690 = vpop.f32.mrf.mxu0
        %v2691 = vadd.f32 %v2522, %v2690
        %2692 = vmatmul.bf16.gmra.mxu0 %v1436
        %v2693 = vpop.f32.mrf.mxu0
        %v2694 = vadd.f32 %v2525, %v2693
        %v2695 = vpop.f32.mrf.mxu0
        %v2696 = vadd.f32 %v2527, %v2695
        %2697 = vmatmul.bf16.gmra.mxu0 %v1444
        %v2698 = vpop.f32.mrf.mxu0
        %v2699 = vadd.f32 %v2530, %v2698
        %v2700 = vpop.f32.mrf.mxu0
        %v2701 = vadd.f32 %v2532, %v2700
        %2702 = vmatmul.bf16.gmra.mxu0 %v1452
        %v2703 = vpop.f32.mrf.mxu0
        %v2704 = vadd.f32 %v2535, %v2703
        %v2705 = vpop.f32.mrf.mxu0
        %v2706 = vadd.f32 %v2537, %v2705
        %2707 = vmatmul.bf16.gmra.mxu0 %v1460
        %v2708 = vpop.f32.mrf.mxu0
        %v2709 = vadd.f32 %v2540, %v2708
        %v2710 = vpop.f32.mrf.mxu0
        %v2711 = vadd.f32 %v2542, %v2710
        %2712 = vmatmul.bf16.gmra.mxu0 %v1468
        %v2713 = vpop.f32.mrf.mxu0
        %v2714 = vadd.f32 %v2545, %v2713
        %v2715 = vpop.f32.mrf.mxu0
        %v2716 = vadd.f32 %v2547, %v2715
        %2717 = vmatmul.bf16.gmra.mxu0 %v1476
        %v2718 = vpop.f32.mrf.mxu0
        %v2719 = vadd.f32 %v2550, %v2718
        %v2720 = vpop.f32.mrf.mxu0
        %v2721 = vadd.f32 %v2552, %v2720
        %2722 = vmatmul.bf16.gmra.mxu0 %v1484
        %v2723 = vpop.f32.mrf.mxu0
        %v2724 = vadd.f32 %v2555, %v2723
        %v2725 = vpop.f32.mrf.mxu0
        %v2726 = vadd.f32 %v2557, %v2725
        %2727 = vmatmul.bf16.gmra.mxu0 %v1492
        %v2728 = vpop.f32.mrf.mxu0
        %v2729 = vadd.f32 %v2560, %v2728
        %v2730 = vpop.f32.mrf.mxu0
        %v2731 = vadd.f32 %v2562, %v2730
        %2732 = vmatmul.bf16.gmra.mxu0 %v1500
        %v2733 = vpop.f32.mrf.mxu0
        %v2734 = vadd.f32 %v2565, %v2733
        %v2735 = vpop.f32.mrf.mxu0
        %v2736 = vadd.f32 %v2567, %v2735
        %2737 = vmatmul.bf16.gmra.mxu0 %v1508
        %v2738 = vpop.f32.mrf.mxu0
        %v2739 = vadd.f32 %v2570, %v2738
        %v2740 = vpop.f32.mrf.mxu0
        %v2741 = vadd.f32 %v2572, %v2740
        %2742 = vmatmul.bf16.gmra.mxu0 %v1516
        %v2743 = vpop.f32.mrf.mxu0
        %v2744 = vadd.f32 %v2575, %v2743
        %v2745 = vpop.f32.mrf.mxu0
        %v2746 = vadd.f32 %v2577, %v2745
        %2747 = vmatmul.bf16.gmra.mxu0 %v1524
        %v2748 = vpop.f32.mrf.mxu0
        %v2749 = vadd.f32 %v2580, %v2748
        %v2750 = vpop.f32.mrf.mxu0
        %v2751 = vadd.f32 %v2582, %v2750
        %2752 = vmatmul.bf16.gmra.mxu0 %v1532
        %v2753 = vpop.f32.mrf.mxu0
        %v2754 = vadd.f32 %v2585, %v2753
        %v2755 = vpop.f32.mrf.mxu0
        %v2756 = vadd.f32 %v2587, %v2755
        %2757 = vmatmul.bf16.gmra.mxu0 %v1540
        %v2758 = vpop.f32.mrf.mxu0
        %v2759 = vadd.f32 %v2590, %v2758
        %v2760 = vpop.f32.mrf.mxu0
        %v2761 = vadd.f32 %v2592, %v2760
        %2762 = vmatmul.bf16.gmra.mxu0 %v1548
        %v2763 = vpop.f32.mrf.mxu0
        %v2764 = vadd.f32 %v2595, %v2763
        %v2765 = vpop.f32.mrf.mxu0
        %v2766 = vadd.f32 %v2597, %v2765
        %2767 = vmatmul.bf16.gmra.mxu0 %v1556
        %v2768 = vpop.f32.mrf.mxu0
        %v2769 = vadd.f32 %v2600, %v2768
        %v2770 = vpop.f32.mrf.mxu0
        %v2771 = vadd.f32 %v2602, %v2770
        %2772 = vmatmul.bf16.gmra.mxu0 %v1564
        %v2773 = vpop.f32.mrf.mxu0
        %v2774 = vadd.f32 %v2605, %v2773
        %v2775 = vpop.f32.mrf.mxu0
        %v2776 = vadd.f32 %v2607, %v2775
        %2777 = vmatmul.bf16.gmra.mxu0 %v1572
        %v2778 = vpop.f32.mrf.mxu0
        %v2779 = vadd.f32 %v2610, %v2778
        %v2780 = vpop.f32.mrf.mxu0
        %v2781 = vadd.f32 %v2612, %v2780
        %2782 = vmatmul.bf16.gmra.mxu0 %v1580
        %v2783 = vpop.f32.mrf.mxu0
        %v2784 = vadd.f32 %v2615, %v2783
        %v2785 = vpop.f32.mrf.mxu0
        %v2786 = vadd.f32 %v2617, %v2785
        %2787 = vmatmul.bf16.gmra.mxu0 %v1588
        %v2788 = vpop.f32.mrf.mxu0
        %v2789 = vadd.f32 %v2620, %v2788
        %v2790 = vpop.f32.mrf.mxu0
        %v2791 = vadd.f32 %v2622, %v2790
        %2792 = vmatmul.bf16.gmra.mxu0 %v1596
        %v2793 = vpop.f32.mrf.mxu0
        %v2794 = vadd.f32 %v2625, %v2793
        %v2795 = vpop.f32.mrf.mxu0
        %v2796 = vadd.f32 %v2627, %v2795
        %2797 = vmatmul.bf16.gmra.mxu0 %v1604
        %v2798 = vpop.f32.mrf.mxu0
        %v2799 = vadd.f32 %v2630, %v2798
        %v2800 = vpop.f32.mrf.mxu0
        %v2801 = vadd.f32 %v2632, %v2800
        %2802 = vmatmul.bf16.gmra.mxu0 %v1612
        %v2803 = vpop.f32.mrf.mxu0
        %v2804 = vadd.f32 %v2635, %v2803
        %v2805 = vpop.f32.mrf.mxu0
        %v2806 = vadd.f32 %v2637, %v2805
        %2807 = vmatmul.bf16.gmra.mxu0 %v1620
        %v2808 = vpop.f32.mrf.mxu0
        %v2809 = vadd.f32 %v2640, %v2808
        %v2810 = vpop.f32.mrf.mxu0
        %v2811 = vadd.f32 %v2642, %v2810
        %2812 = vdwg.mxu0
        %2813 = vmatpush.bf16.msra.mxu0 %v2048
        %2814 = vmatpush.bf16.msra.mxu0 %v2047
        %2815 = vmatpush.bf16.msra.mxu0 %v2046
        %2816 = vmatpush.bf16.msra.mxu0 %v2045
        %2817 = vmatpush.bf16.msra.mxu0 %v2044
        %2818 = vmatpush.bf16.msra.mxu0 %v2043
        %2819 = vmatpush.bf16.msra.mxu0 %v2042
        %2820 = vmatpush.bf16.msra.mxu0 %v2041
        %2821 = vmatmul.bf16.gmra.mxu0 %v1373
        %v2822 = vpop.f32.mrf.mxu0
        %v2823 = vadd.f32 %v2654, %v2822
        %v2824 = vpop.f32.mrf.mxu0
        %v2825 = vadd.f32 %v2656, %v2824
        %2826 = vmatmul.bf16.gmra.mxu0 %v1381
        %v2827 = vpop.f32.mrf.mxu0
        %v2828 = vadd.f32 %v2659, %v2827
        %v2829 = vpop.f32.mrf.mxu0
        %v2830 = vadd.f32 %v2661, %v2829
        %2831 = vmatmul.bf16.gmra.mxu0 %v1389
        %v2832 = vpop.f32.mrf.mxu0
        %v2833 = vadd.f32 %v2664, %v2832
        %v2834 = vpop.f32.mrf.mxu0
        %v2835 = vadd.f32 %v2666, %v2834
        %2836 = vmatmul.bf16.gmra.mxu0 %v1397
        %v2837 = vpop.f32.mrf.mxu0
        %v2838 = vadd.f32 %v2669, %v2837
        %v2839 = vpop.f32.mrf.mxu0
        %v2840 = vadd.f32 %v2671, %v2839
        %2841 = vmatmul.bf16.gmra.mxu0 %v1405
        %v2842 = vpop.f32.mrf.mxu0
        %v2843 = vadd.f32 %v2674, %v2842
        %v2844 = vpop.f32.mrf.mxu0
        %v2845 = vadd.f32 %v2676, %v2844
        %2846 = vmatmul.bf16.gmra.mxu0 %v1413
        %v2847 = vpop.f32.mrf.mxu0
        %v2848 = vadd.f32 %v2679, %v2847
        %v2849 = vpop.f32.mrf.mxu0
        %v2850 = vadd.f32 %v2681, %v2849
        %2851 = vmatmul.bf16.gmra.mxu0 %v1421
        %v2852 = vpop.f32.mrf.mxu0
        %v2853 = vadd.f32 %v2684, %v2852
        %v2854 = vpop.f32.mrf.mxu0
        %v2855 = vadd.f32 %v2686, %v2854
        %2856 = vmatmul.bf16.gmra.mxu0 %v1429
        %v2857 = vpop.f32.mrf.mxu0
        %v2858 = vadd.f32 %v2689, %v2857
        %v2859 = vpop.f32.mrf.mxu0
        %v2860 = vadd.f32 %v2691, %v2859
        %2861 = vmatmul.bf16.gmra.mxu0 %v1437
        %v2862 = vpop.f32.mrf.mxu0
        %v2863 = vadd.f32 %v2694, %v2862
        %v2864 = vpop.f32.mrf.mxu0
        %v2865 = vadd.f32 %v2696, %v2864
        %2866 = vmatmul.bf16.gmra.mxu0 %v1445
        %v2867 = vpop.f32.mrf.mxu0
        %v2868 = vadd.f32 %v2699, %v2867
        %v2869 = vpop.f32.mrf.mxu0
        %v2870 = vadd.f32 %v2701, %v2869
        %2871 = vmatmul.bf16.gmra.mxu0 %v1453
        %v2872 = vpop.f32.mrf.mxu0
        %v2873 = vadd.f32 %v2704, %v2872
        %v2874 = vpop.f32.mrf.mxu0
        %v2875 = vadd.f32 %v2706, %v2874
        %2876 = vmatmul.bf16.gmra.mxu0 %v1461
        %v2877 = vpop.f32.mrf.mxu0
        %v2878 = vadd.f32 %v2709, %v2877
        %v2879 = vpop.f32.mrf.mxu0
        %v2880 = vadd.f32 %v2711, %v2879
        %2881 = vmatmul.bf16.gmra.mxu0 %v1469
        %v2882 = vpop.f32.mrf.mxu0
        %v2883 = vadd.f32 %v2714, %v2882
        %v2884 = vpop.f32.mrf.mxu0
        %v2885 = vadd.f32 %v2716, %v2884
        %2886 = vmatmul.bf16.gmra.mxu0 %v1477
        %v2887 = vpop.f32.mrf.mxu0
        %v2888 = vadd.f32 %v2719, %v2887
        %v2889 = vpop.f32.mrf.mxu0
        %v2890 = vadd.f32 %v2721, %v2889
        %2891 = vmatmul.bf16.gmra.mxu0 %v1485
        %v2892 = vpop.f32.mrf.mxu0
        %v2893 = vadd.f32 %v2724, %v2892
        %v2894 = vpop.f32.mrf.mxu0
        %v2895 = vadd.f32 %v2726, %v2894
        %2896 = vmatmul.bf16.gmra.mxu0 %v1493
        %v2897 = vpop.f32.mrf.mxu0
        %v2898 = vadd.f32 %v2729, %v2897
        %v2899 = vpop.f32.mrf.mxu0
        %v2900 = vadd.f32 %v2731, %v2899
        %2901 = vmatmul.bf16.gmra.mxu0 %v1501
        %v2902 = vpop.f32.mrf.mxu0
        %v2903 = vadd.f32 %v2734, %v2902
        %v2904 = vpop.f32.mrf.mxu0
        %v2905 = vadd.f32 %v2736, %v2904
        %2906 = vmatmul.bf16.gmra.mxu0 %v1509
        %v2907 = vpop.f32.mrf.mxu0
        %v2908 = vadd.f32 %v2739, %v2907
        %v2909 = vpop.f32.mrf.mxu0
        %v2910 = vadd.f32 %v2741, %v2909
        %2911 = vmatmul.bf16.gmra.mxu0 %v1517
        %v2912 = vpop.f32.mrf.mxu0
        %v2913 = vadd.f32 %v2744, %v2912
        %v2914 = vpop.f32.mrf.mxu0
        %v2915 = vadd.f32 %v2746, %v2914
        %2916 = vmatmul.bf16.gmra.mxu0 %v1525
        %v2917 = vpop.f32.mrf.mxu0
        %v2918 = vadd.f32 %v2749, %v2917
        %v2919 = vpop.f32.mrf.mxu0
        %v2920 = vadd.f32 %v2751, %v2919
        %2921 = vmatmul.bf16.gmra.mxu0 %v1533
        %v2922 = vpop.f32.mrf.mxu0
        %v2923 = vadd.f32 %v2754, %v2922
        %v2924 = vpop.f32.mrf.mxu0
        %v2925 = vadd.f32 %v2756, %v2924
        %2926 = vmatmul.bf16.gmra.mxu0 %v1541
        %v2927 = vpop.f32.mrf.mxu0
        %v2928 = vadd.f32 %v2759, %v2927
        %v2929 = vpop.f32.mrf.mxu0
        %v2930 = vadd.f32 %v2761, %v2929
        %2931 = vmatmul.bf16.gmra.mxu0 %v1549
        %v2932 = vpop.f32.mrf.mxu0
        %v2933 = vadd.f32 %v2764, %v2932
        %v2934 = vpop.f32.mrf.mxu0
        %v2935 = vadd.f32 %v2766, %v2934
        %2936 = vmatmul.bf16.gmra.mxu0 %v1557
        %v2937 = vpop.f32.mrf.mxu0
        %v2938 = vadd.f32 %v2769, %v2937
        %v2939 = vpop.f32.mrf.mxu0
        %v2940 = vadd.f32 %v2771, %v2939
        %2941 = vmatmul.bf16.gmra.mxu0 %v1565
        %v2942 = vpop.f32.mrf.mxu0
        %v2943 = vadd.f32 %v2774, %v2942
        %v2944 = vpop.f32.mrf.mxu0
        %v2945 = vadd.f32 %v2776, %v2944
        %2946 = vmatmul.bf16.gmra.mxu0 %v1573
        %v2947 = vpop.f32.mrf.mxu0
        %v2948 = vadd.f32 %v2779, %v2947
        %v2949 = vpop.f32.mrf.mxu0
        %v2950 = vadd.f32 %v2781, %v2949
        %2951 = vmatmul.bf16.gmra.mxu0 %v1581
        %v2952 = vpop.f32.mrf.mxu0
        %v2953 = vadd.f32 %v2784, %v2952
        %v2954 = vpop.f32.mrf.mxu0
        %v2955 = vadd.f32 %v2786, %v2954
        %2956 = vmatmul.bf16.gmra.mxu0 %v1589
        %v2957 = vpop.f32.mrf.mxu0
        %v2958 = vadd.f32 %v2789, %v2957
        %v2959 = vpop.f32.mrf.mxu0
        %v2960 = vadd.f32 %v2791, %v2959
        %2961 = vmatmul.bf16.gmra.mxu0 %v1597
        %v2962 = vpop.f32.mrf.mxu0
        %v2963 = vadd.f32 %v2794, %v2962
        %v2964 = vpop.f32.mrf.mxu0
        %v2965 = vadd.f32 %v2796, %v2964
        %2966 = vmatmul.bf16.gmra.mxu0 %v1605
        %v2967 = vpop.f32.mrf.mxu0
        %v2968 = vadd.f32 %v2799, %v2967
        %v2969 = vpop.f32.mrf.mxu0
        %v2970 = vadd.f32 %v2801, %v2969
        %2971 = vmatmul.bf16.gmra.mxu0 %v1613
        %v2972 = vpop.f32.mrf.mxu0
        %v2973 = vadd.f32 %v2804, %v2972
        %v2974 = vpop.f32.mrf.mxu0
        %v2975 = vadd.f32 %v2806, %v2974
        %2976 = vmatmul.bf16.gmra.mxu0 %v1621
        %v2977 = vpop.f32.mrf.mxu0
        %v2978 = vadd.f32 %v2809, %v2977
        %v2979 = vpop.f32.mrf.mxu0
        %v2980 = vadd.f32 %v2811, %v2979
        %2981 = vdwg.mxu0
        %2982 = vmatpush.bf16.msra.mxu0 %v2056
        %2983 = vmatpush.bf16.msra.mxu0 %v2055
        %2984 = vmatpush.bf16.msra.mxu0 %v2054
        %2985 = vmatpush.bf16.msra.mxu0 %v2053
        %2986 = vmatpush.bf16.msra.mxu0 %v2052
        %2987 = vmatpush.bf16.msra.mxu0 %v2051
        %2988 = vmatpush.bf16.msra.mxu0 %v2050
        %2989 = vmatpush.bf16.msra.mxu0 %v2049
        %2990 = vmatmul.bf16.gmra.mxu0 %v1374
        %v2991 = vpop.f32.mrf.mxu0
        %v2992 = vadd.f32 %v2823, %v2991
        %v2993 = vpop.f32.mrf.mxu0
        %v2994 = vadd.f32 %v2825, %v2993
        %2995 = vmatmul.bf16.gmra.mxu0 %v1382
        %v2996 = vpop.f32.mrf.mxu0
        %v2997 = vadd.f32 %v2828, %v2996
        %v2998 = vpop.f32.mrf.mxu0
        %v2999 = vadd.f32 %v2830, %v2998
        %3000 = vmatmul.bf16.gmra.mxu0 %v1390
        %v3001 = vpop.f32.mrf.mxu0
        %v3002 = vadd.f32 %v2833, %v3001
        %v3003 = vpop.f32.mrf.mxu0
        %v3004 = vadd.f32 %v2835, %v3003
        %3005 = vmatmul.bf16.gmra.mxu0 %v1398
        %v3006 = vpop.f32.mrf.mxu0
        %v3007 = vadd.f32 %v2838, %v3006
        %v3008 = vpop.f32.mrf.mxu0
        %v3009 = vadd.f32 %v2840, %v3008
        %3010 = vmatmul.bf16.gmra.mxu0 %v1406
        %v3011 = vpop.f32.mrf.mxu0
        %v3012 = vadd.f32 %v2843, %v3011
        %v3013 = vpop.f32.mrf.mxu0
        %v3014 = vadd.f32 %v2845, %v3013
        %3015 = vmatmul.bf16.gmra.mxu0 %v1414
        %v3016 = vpop.f32.mrf.mxu0
        %v3017 = vadd.f32 %v2848, %v3016
        %v3018 = vpop.f32.mrf.mxu0
        %v3019 = vadd.f32 %v2850, %v3018
        %3020 = vmatmul.bf16.gmra.mxu0 %v1422
        %v3021 = vpop.f32.mrf.mxu0
        %v3022 = vadd.f32 %v2853, %v3021
        %v3023 = vpop.f32.mrf.mxu0
        %v3024 = vadd.f32 %v2855, %v3023
        %3025 = vmatmul.bf16.gmra.mxu0 %v1430
        %v3026 = vpop.f32.mrf.mxu0
        %v3027 = vadd.f32 %v2858, %v3026
        %v3028 = vpop.f32.mrf.mxu0
        %v3029 = vadd.f32 %v2860, %v3028
        %3030 = vmatmul.bf16.gmra.mxu0 %v1438
        %v3031 = vpop.f32.mrf.mxu0
        %v3032 = vadd.f32 %v2863, %v3031
        %v3033 = vpop.f32.mrf.mxu0
        %v3034 = vadd.f32 %v2865, %v3033
        %3035 = vmatmul.bf16.gmra.mxu0 %v1446
        %v3036 = vpop.f32.mrf.mxu0
        %v3037 = vadd.f32 %v2868, %v3036
        %v3038 = vpop.f32.mrf.mxu0
        %v3039 = vadd.f32 %v2870, %v3038
        %3040 = vmatmul.bf16.gmra.mxu0 %v1454
        %v3041 = vpop.f32.mrf.mxu0
        %v3042 = vadd.f32 %v2873, %v3041
        %v3043 = vpop.f32.mrf.mxu0
        %v3044 = vadd.f32 %v2875, %v3043
        %3045 = vmatmul.bf16.gmra.mxu0 %v1462
        %v3046 = vpop.f32.mrf.mxu0
        %v3047 = vadd.f32 %v2878, %v3046
        %v3048 = vpop.f32.mrf.mxu0
        %v3049 = vadd.f32 %v2880, %v3048
        %3050 = vmatmul.bf16.gmra.mxu0 %v1470
        %v3051 = vpop.f32.mrf.mxu0
        %v3052 = vadd.f32 %v2883, %v3051
        %v3053 = vpop.f32.mrf.mxu0
        %v3054 = vadd.f32 %v2885, %v3053
        %3055 = vmatmul.bf16.gmra.mxu0 %v1478
        %v3056 = vpop.f32.mrf.mxu0
        %v3057 = vadd.f32 %v2888, %v3056
        %v3058 = vpop.f32.mrf.mxu0
        %v3059 = vadd.f32 %v2890, %v3058
        %3060 = vmatmul.bf16.gmra.mxu0 %v1486
        %v3061 = vpop.f32.mrf.mxu0
        %v3062 = vadd.f32 %v2893, %v3061
        %v3063 = vpop.f32.mrf.mxu0
        %v3064 = vadd.f32 %v2895, %v3063
        %3065 = vmatmul.bf16.gmra.mxu0 %v1494
        %v3066 = vpop.f32.mrf.mxu0
        %v3067 = vadd.f32 %v2898, %v3066
        %v3068 = vpop.f32.mrf.mxu0
        %v3069 = vadd.f32 %v2900, %v3068
        %3070 = vmatmul.bf16.gmra.mxu0 %v1502
        %v3071 = vpop.f32.mrf.mxu0
        %v3072 = vadd.f32 %v2903, %v3071
        %v3073 = vpop.f32.mrf.mxu0
        %v3074 = vadd.f32 %v2905, %v3073
        %3075 = vmatmul.bf16.gmra.mxu0 %v1510
        %v3076 = vpop.f32.mrf.mxu0
        %v3077 = vadd.f32 %v2908, %v3076
        %v3078 = vpop.f32.mrf.mxu0
        %v3079 = vadd.f32 %v2910, %v3078
        %3080 = vmatmul.bf16.gmra.mxu0 %v1518
        %v3081 = vpop.f32.mrf.mxu0
        %v3082 = vadd.f32 %v2913, %v3081
        %v3083 = vpop.f32.mrf.mxu0
        %v3084 = vadd.f32 %v2915, %v3083
        %3085 = vmatmul.bf16.gmra.mxu0 %v1526
        %v3086 = vpop.f32.mrf.mxu0
        %v3087 = vadd.f32 %v2918, %v3086
        %v3088 = vpop.f32.mrf.mxu0
        %v3089 = vadd.f32 %v2920, %v3088
        %3090 = vmatmul.bf16.gmra.mxu0 %v1534
        %v3091 = vpop.f32.mrf.mxu0
        %v3092 = vadd.f32 %v2923, %v3091
        %v3093 = vpop.f32.mrf.mxu0
        %v3094 = vadd.f32 %v2925, %v3093
        %3095 = vmatmul.bf16.gmra.mxu0 %v1542
        %v3096 = vpop.f32.mrf.mxu0
        %v3097 = vadd.f32 %v2928, %v3096
        %v3098 = vpop.f32.mrf.mxu0
        %v3099 = vadd.f32 %v2930, %v3098
        %3100 = vmatmul.bf16.gmra.mxu0 %v1550
        %v3101 = vpop.f32.mrf.mxu0
        %v3102 = vadd.f32 %v2933, %v3101
        %v3103 = vpop.f32.mrf.mxu0
        %v3104 = vadd.f32 %v2935, %v3103
        %3105 = vmatmul.bf16.gmra.mxu0 %v1558
        %v3106 = vpop.f32.mrf.mxu0
        %v3107 = vadd.f32 %v2938, %v3106
        %v3108 = vpop.f32.mrf.mxu0
        %v3109 = vadd.f32 %v2940, %v3108
        %3110 = vmatmul.bf16.gmra.mxu0 %v1566
        %v3111 = vpop.f32.mrf.mxu0
        %v3112 = vadd.f32 %v2943, %v3111
        %v3113 = vpop.f32.mrf.mxu0
        %v3114 = vadd.f32 %v2945, %v3113
        %3115 = vmatmul.bf16.gmra.mxu0 %v1574
        %v3116 = vpop.f32.mrf.mxu0
        %v3117 = vadd.f32 %v2948, %v3116
        %v3118 = vpop.f32.mrf.mxu0
        %v3119 = vadd.f32 %v2950, %v3118
        %3120 = vmatmul.bf16.gmra.mxu0 %v1582
        %v3121 = vpop.f32.mrf.mxu0
        %v3122 = vadd.f32 %v2953, %v3121
        %v3123 = vpop.f32.mrf.mxu0
        %v3124 = vadd.f32 %v2955, %v3123
        %3125 = vmatmul.bf16.gmra.mxu0 %v1590
        %v3126 = vpop.f32.mrf.mxu0
        %v3127 = vadd.f32 %v2958, %v3126
        %v3128 = vpop.f32.mrf.mxu0
        %v3129 = vadd.f32 %v2960, %v3128
        %3130 = vmatmul.bf16.gmra.mxu0 %v1598
        %v3131 = vpop.f32.mrf.mxu0
        %v3132 = vadd.f32 %v2963, %v3131
        %v3133 = vpop.f32.mrf.mxu0
        %v3134 = vadd.f32 %v2965, %v3133
        %3135 = vmatmul.bf16.gmra.mxu0 %v1606
        %v3136 = vpop.f32.mrf.mxu0
        %v3137 = vadd.f32 %v2968, %v3136
        %v3138 = vpop.f32.mrf.mxu0
        %v3139 = vadd.f32 %v2970, %v3138
        %3140 = vmatmul.bf16.gmra.mxu0 %v1614
        %v3141 = vpop.f32.mrf.mxu0
        %v3142 = vadd.f32 %v2973, %v3141
        %v3143 = vpop.f32.mrf.mxu0
        %v3144 = vadd.f32 %v2975, %v3143
        %3145 = vmatmul.bf16.gmra.mxu0 %v1622
        %v3146 = vpop.f32.mrf.mxu0
        %v3147 = vadd.f32 %v2978, %v3146
        %v3148 = vpop.f32.mrf.mxu0
        %v3149 = vadd.f32 %v2980, %v3148
        %3150 = vdwg.mxu0
        %3151 = vmatpush.bf16.msra.mxu0 %v2064
        %3152 = vmatpush.bf16.msra.mxu0 %v2063
        %3153 = vmatpush.bf16.msra.mxu0 %v2062
        %3154 = vmatpush.bf16.msra.mxu0 %v2061
        %3155 = vmatpush.bf16.msra.mxu0 %v2060
        %3156 = vmatpush.bf16.msra.mxu0 %v2059
        %3157 = vmatpush.bf16.msra.mxu0 %v2058
        %3158 = vmatpush.bf16.msra.mxu0 %v2057
        %3159 = vmatmul.bf16.gmra.mxu0 %v1375
        %v3160 = vpop.f32.mrf.mxu0
        %v3161 = vadd.f32 %v2992, %v3160
        %v3162 = vpop.f32.mrf.mxu0
        %v3163 = vadd.f32 %v2994, %v3162
        %3164 = vmatmul.bf16.gmra.mxu0 %v1383
        %v3165 = vpop.f32.mrf.mxu0
        %v3166 = vadd.f32 %v2997, %v3165
        %v3167 = vpop.f32.mrf.mxu0
        %v3168 = vadd.f32 %v2999, %v3167
        %3169 = vmatmul.bf16.gmra.mxu0 %v1391
        %v3170 = vpop.f32.mrf.mxu0
        %v3171 = vadd.f32 %v3002, %v3170
        %v3172 = vpop.f32.mrf.mxu0
        %v3173 = vadd.f32 %v3004, %v3172
        %3174 = vmatmul.bf16.gmra.mxu0 %v1399
        %v3175 = vpop.f32.mrf.mxu0
        %v3176 = vadd.f32 %v3007, %v3175
        %v3177 = vpop.f32.mrf.mxu0
        %v3178 = vadd.f32 %v3009, %v3177
        %3179 = vmatmul.bf16.gmra.mxu0 %v1407
        %v3180 = vpop.f32.mrf.mxu0
        %v3181 = vadd.f32 %v3012, %v3180
        %v3182 = vpop.f32.mrf.mxu0
        %v3183 = vadd.f32 %v3014, %v3182
        %3184 = vmatmul.bf16.gmra.mxu0 %v1415
        %v3185 = vpop.f32.mrf.mxu0
        %v3186 = vadd.f32 %v3017, %v3185
        %v3187 = vpop.f32.mrf.mxu0
        %v3188 = vadd.f32 %v3019, %v3187
        %3189 = vmatmul.bf16.gmra.mxu0 %v1423
        %v3190 = vpop.f32.mrf.mxu0
        %v3191 = vadd.f32 %v3022, %v3190
        %v3192 = vpop.f32.mrf.mxu0
        %v3193 = vadd.f32 %v3024, %v3192
        %3194 = vmatmul.bf16.gmra.mxu0 %v1431
        %v3195 = vpop.f32.mrf.mxu0
        %v3196 = vadd.f32 %v3027, %v3195
        %v3197 = vpop.f32.mrf.mxu0
        %v3198 = vadd.f32 %v3029, %v3197
        %3199 = vmatmul.bf16.gmra.mxu0 %v1439
        %v3200 = vpop.f32.mrf.mxu0
        %v3201 = vadd.f32 %v3032, %v3200
        %v3202 = vpop.f32.mrf.mxu0
        %v3203 = vadd.f32 %v3034, %v3202
        %3204 = vmatmul.bf16.gmra.mxu0 %v1447
        %v3205 = vpop.f32.mrf.mxu0
        %v3206 = vadd.f32 %v3037, %v3205
        %v3207 = vpop.f32.mrf.mxu0
        %v3208 = vadd.f32 %v3039, %v3207
        %3209 = vmatmul.bf16.gmra.mxu0 %v1455
        %v3210 = vpop.f32.mrf.mxu0
        %v3211 = vadd.f32 %v3042, %v3210
        %v3212 = vpop.f32.mrf.mxu0
        %v3213 = vadd.f32 %v3044, %v3212
        %3214 = vmatmul.bf16.gmra.mxu0 %v1463
        %v3215 = vpop.f32.mrf.mxu0
        %v3216 = vadd.f32 %v3047, %v3215
        %v3217 = vpop.f32.mrf.mxu0
        %v3218 = vadd.f32 %v3049, %v3217
        %3219 = vmatmul.bf16.gmra.mxu0 %v1471
        %v3220 = vpop.f32.mrf.mxu0
        %v3221 = vadd.f32 %v3052, %v3220
        %v3222 = vpop.f32.mrf.mxu0
        %v3223 = vadd.f32 %v3054, %v3222
        %3224 = vmatmul.bf16.gmra.mxu0 %v1479
        %v3225 = vpop.f32.mrf.mxu0
        %v3226 = vadd.f32 %v3057, %v3225
        %v3227 = vpop.f32.mrf.mxu0
        %v3228 = vadd.f32 %v3059, %v3227
        %3229 = vmatmul.bf16.gmra.mxu0 %v1487
        %v3230 = vpop.f32.mrf.mxu0
        %v3231 = vadd.f32 %v3062, %v3230
        %v3232 = vpop.f32.mrf.mxu0
        %v3233 = vadd.f32 %v3064, %v3232
        %3234 = vmatmul.bf16.gmra.mxu0 %v1495
        %v3235 = vpop.f32.mrf.mxu0
        %v3236 = vadd.f32 %v3067, %v3235
        %v3237 = vpop.f32.mrf.mxu0
        %v3238 = vadd.f32 %v3069, %v3237
        %3239 = vmatmul.bf16.gmra.mxu0 %v1503
        %v3240 = vpop.f32.mrf.mxu0
        %v3241 = vadd.f32 %v3072, %v3240
        %v3242 = vpop.f32.mrf.mxu0
        %v3243 = vadd.f32 %v3074, %v3242
        %3244 = vmatmul.bf16.gmra.mxu0 %v1511
        %v3245 = vpop.f32.mrf.mxu0
        %v3246 = vadd.f32 %v3077, %v3245
        %v3247 = vpop.f32.mrf.mxu0
        %v3248 = vadd.f32 %v3079, %v3247
        %3249 = vmatmul.bf16.gmra.mxu0 %v1519
        %v3250 = vpop.f32.mrf.mxu0
        %v3251 = vadd.f32 %v3082, %v3250
        %v3252 = vpop.f32.mrf.mxu0
        %v3253 = vadd.f32 %v3084, %v3252
        %3254 = vmatmul.bf16.gmra.mxu0 %v1527
        %v3255 = vpop.f32.mrf.mxu0
        %v3256 = vadd.f32 %v3087, %v3255
        %v3257 = vpop.f32.mrf.mxu0
        %v3258 = vadd.f32 %v3089, %v3257
        %3259 = vmatmul.bf16.gmra.mxu0 %v1535
        %v3260 = vpop.f32.mrf.mxu0
        %v3261 = vadd.f32 %v3092, %v3260
        %v3262 = vpop.f32.mrf.mxu0
        %v3263 = vadd.f32 %v3094, %v3262
        %3264 = vmatmul.bf16.gmra.mxu0 %v1543
        %v3265 = vpop.f32.mrf.mxu0
        %v3266 = vadd.f32 %v3097, %v3265
        %v3267 = vpop.f32.mrf.mxu0
        %v3268 = vadd.f32 %v3099, %v3267
        %3269 = vmatmul.bf16.gmra.mxu0 %v1551
        %v3270 = vpop.f32.mrf.mxu0
        %v3271 = vadd.f32 %v3102, %v3270
        %v3272 = vpop.f32.mrf.mxu0
        %v3273 = vadd.f32 %v3104, %v3272
        %3274 = vmatmul.bf16.gmra.mxu0 %v1559
        %v3275 = vpop.f32.mrf.mxu0
        %v3276 = vadd.f32 %v3107, %v3275
        %v3277 = vpop.f32.mrf.mxu0
        %v3278 = vadd.f32 %v3109, %v3277
        %3279 = vmatmul.bf16.gmra.mxu0 %v1567
        %v3280 = vpop.f32.mrf.mxu0
        %v3281 = vadd.f32 %v3112, %v3280
        %v3282 = vpop.f32.mrf.mxu0
        %v3283 = vadd.f32 %v3114, %v3282
        %3284 = vmatmul.bf16.gmra.mxu0 %v1575
        %v3285 = vpop.f32.mrf.mxu0
        %v3286 = vadd.f32 %v3117, %v3285
        %v3287 = vpop.f32.mrf.mxu0
        %v3288 = vadd.f32 %v3119, %v3287
        %3289 = vmatmul.bf16.gmra.mxu0 %v1583
        %v3290 = vpop.f32.mrf.mxu0
        %v3291 = vadd.f32 %v3122, %v3290
        %v3292 = vpop.f32.mrf.mxu0
        %v3293 = vadd.f32 %v3124, %v3292
        %3294 = vmatmul.bf16.gmra.mxu0 %v1591
        %v3295 = vpop.f32.mrf.mxu0
        %v3296 = vadd.f32 %v3127, %v3295
        %v3297 = vpop.f32.mrf.mxu0
        %v3298 = vadd.f32 %v3129, %v3297
        %3299 = vmatmul.bf16.gmra.mxu0 %v1599
        %v3300 = vpop.f32.mrf.mxu0
        %v3301 = vadd.f32 %v3132, %v3300
        %v3302 = vpop.f32.mrf.mxu0
        %v3303 = vadd.f32 %v3134, %v3302
        %3304 = vmatmul.bf16.gmra.mxu0 %v1607
        %v3305 = vpop.f32.mrf.mxu0
        %v3306 = vadd.f32 %v3137, %v3305
        %v3307 = vpop.f32.mrf.mxu0
        %v3308 = vadd.f32 %v3139, %v3307
        %3309 = vmatmul.bf16.gmra.mxu0 %v1615
        %v3310 = vpop.f32.mrf.mxu0
        %v3311 = vadd.f32 %v3142, %v3310
        %v3312 = vpop.f32.mrf.mxu0
        %v3313 = vadd.f32 %v3144, %v3312
        %3314 = vmatmul.bf16.gmra.mxu0 %v1623
        %v3315 = vpop.f32.mrf.mxu0
        %v3316 = vadd.f32 %v3147, %v3315
        %v3317 = vpop.f32.mrf.mxu0
        %v3318 = vadd.f32 %v3149, %v3317
        %3319 = vdwg.mxu0
        %3320 = vmatpush.bf16.msra.mxu0 %v2072
        %3321 = vmatpush.bf16.msra.mxu0 %v2071
        %3322 = vmatpush.bf16.msra.mxu0 %v2070
        %3323 = vmatpush.bf16.msra.mxu0 %v2069
        %3324 = vmatpush.bf16.msra.mxu0 %v2068
        %3325 = vmatpush.bf16.msra.mxu0 %v2067
        %3326 = vmatpush.bf16.msra.mxu0 %v2066
        %3327 = vmatpush.bf16.msra.mxu0 %v2065
        %3328 = vmatmul.bf16.gmra.mxu0 %v1376
        %v3329 = vpop.f32.mrf.mxu0
        %v3330 = vadd.f32 %v3161, %v3329
        %v3331 = vpop.f32.mrf.mxu0
        %v3332 = vadd.f32 %v3163, %v3331
        %3333 = vmatmul.bf16.gmra.mxu0 %v1384
        %v3334 = vpop.f32.mrf.mxu0
        %v3335 = vadd.f32 %v3166, %v3334
        %v3336 = vpop.f32.mrf.mxu0
        %v3337 = vadd.f32 %v3168, %v3336
        %3338 = vmatmul.bf16.gmra.mxu0 %v1392
        %v3339 = vpop.f32.mrf.mxu0
        %v3340 = vadd.f32 %v3171, %v3339
        %v3341 = vpop.f32.mrf.mxu0
        %v3342 = vadd.f32 %v3173, %v3341
        %3343 = vmatmul.bf16.gmra.mxu0 %v1400
        %v3344 = vpop.f32.mrf.mxu0
        %v3345 = vadd.f32 %v3176, %v3344
        %v3346 = vpop.f32.mrf.mxu0
        %v3347 = vadd.f32 %v3178, %v3346
        %3348 = vmatmul.bf16.gmra.mxu0 %v1408
        %v3349 = vpop.f32.mrf.mxu0
        %v3350 = vadd.f32 %v3181, %v3349
        %v3351 = vpop.f32.mrf.mxu0
        %v3352 = vadd.f32 %v3183, %v3351
        %3353 = vmatmul.bf16.gmra.mxu0 %v1416
        %v3354 = vpop.f32.mrf.mxu0
        %v3355 = vadd.f32 %v3186, %v3354
        %v3356 = vpop.f32.mrf.mxu0
        %v3357 = vadd.f32 %v3188, %v3356
        %3358 = vmatmul.bf16.gmra.mxu0 %v1424
        %v3359 = vpop.f32.mrf.mxu0
        %v3360 = vadd.f32 %v3191, %v3359
        %v3361 = vpop.f32.mrf.mxu0
        %v3362 = vadd.f32 %v3193, %v3361
        %3363 = vmatmul.bf16.gmra.mxu0 %v1432
        %v3364 = vpop.f32.mrf.mxu0
        %v3365 = vadd.f32 %v3196, %v3364
        %v3366 = vpop.f32.mrf.mxu0
        %v3367 = vadd.f32 %v3198, %v3366
        %3368 = vmatmul.bf16.gmra.mxu0 %v1440
        %v3369 = vpop.f32.mrf.mxu0
        %v3370 = vadd.f32 %v3201, %v3369
        %v3371 = vpop.f32.mrf.mxu0
        %v3372 = vadd.f32 %v3203, %v3371
        %3373 = vmatmul.bf16.gmra.mxu0 %v1448
        %v3374 = vpop.f32.mrf.mxu0
        %v3375 = vadd.f32 %v3206, %v3374
        %v3376 = vpop.f32.mrf.mxu0
        %v3377 = vadd.f32 %v3208, %v3376
        %3378 = vmatmul.bf16.gmra.mxu0 %v1456
        %v3379 = vpop.f32.mrf.mxu0
        %v3380 = vadd.f32 %v3211, %v3379
        %v3381 = vpop.f32.mrf.mxu0
        %v3382 = vadd.f32 %v3213, %v3381
        %3383 = vmatmul.bf16.gmra.mxu0 %v1464
        %v3384 = vpop.f32.mrf.mxu0
        %v3385 = vadd.f32 %v3216, %v3384
        %v3386 = vpop.f32.mrf.mxu0
        %v3387 = vadd.f32 %v3218, %v3386
        %3388 = vmatmul.bf16.gmra.mxu0 %v1472
        %v3389 = vpop.f32.mrf.mxu0
        %v3390 = vadd.f32 %v3221, %v3389
        %v3391 = vpop.f32.mrf.mxu0
        %v3392 = vadd.f32 %v3223, %v3391
        %3393 = vmatmul.bf16.gmra.mxu0 %v1480
        %v3394 = vpop.f32.mrf.mxu0
        %v3395 = vadd.f32 %v3226, %v3394
        %v3396 = vpop.f32.mrf.mxu0
        %v3397 = vadd.f32 %v3228, %v3396
        %3398 = vmatmul.bf16.gmra.mxu0 %v1488
        %v3399 = vpop.f32.mrf.mxu0
        %v3400 = vadd.f32 %v3231, %v3399
        %v3401 = vpop.f32.mrf.mxu0
        %v3402 = vadd.f32 %v3233, %v3401
        %3403 = vmatmul.bf16.gmra.mxu0 %v1496
        %v3404 = vpop.f32.mrf.mxu0
        %v3405 = vadd.f32 %v3236, %v3404
        %v3406 = vpop.f32.mrf.mxu0
        %v3407 = vadd.f32 %v3238, %v3406
        %3408 = vmatmul.bf16.gmra.mxu0 %v1504
        %v3409 = vpop.f32.mrf.mxu0
        %v3410 = vadd.f32 %v3241, %v3409
        %v3411 = vpop.f32.mrf.mxu0
        %v3412 = vadd.f32 %v3243, %v3411
        %3413 = vmatmul.bf16.gmra.mxu0 %v1512
        %v3414 = vpop.f32.mrf.mxu0
        %v3415 = vadd.f32 %v3246, %v3414
        %v3416 = vpop.f32.mrf.mxu0
        %v3417 = vadd.f32 %v3248, %v3416
        %3418 = vmatmul.bf16.gmra.mxu0 %v1520
        %v3419 = vpop.f32.mrf.mxu0
        %v3420 = vadd.f32 %v3251, %v3419
        %v3421 = vpop.f32.mrf.mxu0
        %v3422 = vadd.f32 %v3253, %v3421
        %3423 = vmatmul.bf16.gmra.mxu0 %v1528
        %v3424 = vpop.f32.mrf.mxu0
        %v3425 = vadd.f32 %v3256, %v3424
        %v3426 = vpop.f32.mrf.mxu0
        %v3427 = vadd.f32 %v3258, %v3426
        %3428 = vmatmul.bf16.gmra.mxu0 %v1536
        %v3429 = vpop.f32.mrf.mxu0
        %v3430 = vadd.f32 %v3261, %v3429
        %v3431 = vpop.f32.mrf.mxu0
        %v3432 = vadd.f32 %v3263, %v3431
        %3433 = vmatmul.bf16.gmra.mxu0 %v1544
        %v3434 = vpop.f32.mrf.mxu0
        %v3435 = vadd.f32 %v3266, %v3434
        %v3436 = vpop.f32.mrf.mxu0
        %v3437 = vadd.f32 %v3268, %v3436
        %3438 = vmatmul.bf16.gmra.mxu0 %v1552
        %v3439 = vpop.f32.mrf.mxu0
        %v3440 = vadd.f32 %v3271, %v3439
        %v3441 = vpop.f32.mrf.mxu0
        %v3442 = vadd.f32 %v3273, %v3441
        %3443 = vmatmul.bf16.gmra.mxu0 %v1560
        %v3444 = vpop.f32.mrf.mxu0
        %v3445 = vadd.f32 %v3276, %v3444
        %v3446 = vpop.f32.mrf.mxu0
        %v3447 = vadd.f32 %v3278, %v3446
        %3448 = vmatmul.bf16.gmra.mxu0 %v1568
        %v3449 = vpop.f32.mrf.mxu0
        %v3450 = vadd.f32 %v3281, %v3449
        %v3451 = vpop.f32.mrf.mxu0
        %v3452 = vadd.f32 %v3283, %v3451
        %3453 = vmatmul.bf16.gmra.mxu0 %v1576
        %v3454 = vpop.f32.mrf.mxu0
        %v3455 = vadd.f32 %v3286, %v3454
        %v3456 = vpop.f32.mrf.mxu0
        %v3457 = vadd.f32 %v3288, %v3456
        %3458 = vmatmul.bf16.gmra.mxu0 %v1584
        %v3459 = vpop.f32.mrf.mxu0
        %v3460 = vadd.f32 %v3291, %v3459
        %v3461 = vpop.f32.mrf.mxu0
        %v3462 = vadd.f32 %v3293, %v3461
        %3463 = vmatmul.bf16.gmra.mxu0 %v1592
        %v3464 = vpop.f32.mrf.mxu0
        %v3465 = vadd.f32 %v3296, %v3464
        %v3466 = vpop.f32.mrf.mxu0
        %v3467 = vadd.f32 %v3298, %v3466
        %3468 = vmatmul.bf16.gmra.mxu0 %v1600
        %v3469 = vpop.f32.mrf.mxu0
        %v3470 = vadd.f32 %v3301, %v3469
        %v3471 = vpop.f32.mrf.mxu0
        %v3472 = vadd.f32 %v3303, %v3471
        %3473 = vmatmul.bf16.gmra.mxu0 %v1608
        %v3474 = vpop.f32.mrf.mxu0
        %v3475 = vadd.f32 %v3306, %v3474
        %v3476 = vpop.f32.mrf.mxu0
        %v3477 = vadd.f32 %v3308, %v3476
        %3478 = vmatmul.bf16.gmra.mxu0 %v1616
        %v3479 = vpop.f32.mrf.mxu0
        %v3480 = vadd.f32 %v3311, %v3479
        %v3481 = vpop.f32.mrf.mxu0
        %v3482 = vadd.f32 %v3313, %v3481
        %3483 = vmatmul.bf16.gmra.mxu0 %v1624
        %v3484 = vpop.f32.mrf.mxu0
        %v3485 = vadd.f32 %v3316, %v3484
        %v3486 = vpop.f32.mrf.mxu0
        %v3487 = vadd.f32 %v3318, %v3486
        %3488 = vdwg.mxu0
        %v3489 = vpack.c.bf16 %v3332, %v3330
        %v3490 = vpack.c.bf16 %v3337, %v3335
        %v3491 = vpack.c.bf16 %v3342, %v3340
        %v3492 = vpack.c.bf16 %v3347, %v3345
        %v3493 = vpack.c.bf16 %v3352, %v3350
        %v3494 = vpack.c.bf16 %v3357, %v3355
        %v3495 = vpack.c.bf16 %v3362, %v3360
        %v3496 = vpack.c.bf16 %v3367, %v3365
        %v3497 = vpack.c.bf16 %v3372, %v3370
        %v3498 = vpack.c.bf16 %v3377, %v3375
        %v3499 = vpack.c.bf16 %v3382, %v3380
        %v3500 = vpack.c.bf16 %v3387, %v3385
        %v3501 = vpack.c.bf16 %v3392, %v3390
        %v3502 = vpack.c.bf16 %v3397, %v3395
        %v3503 = vpack.c.bf16 %v3402, %v3400
        %v3504 = vpack.c.bf16 %v3407, %v3405
        %v3505 = vpack.c.bf16 %v3412, %v3410
        %v3506 = vpack.c.bf16 %v3417, %v3415
        %v3507 = vpack.c.bf16 %v3422, %v3420
        %v3508 = vpack.c.bf16 %v3427, %v3425
        %v3509 = vpack.c.bf16 %v3432, %v3430
        %v3510 = vpack.c.bf16 %v3437, %v3435
        %v3511 = vpack.c.bf16 %v3442, %v3440
        %v3512 = vpack.c.bf16 %v3447, %v3445
        %v3513 = vpack.c.bf16 %v3452, %v3450
        %v3514 = vpack.c.bf16 %v3457, %v3455
        %v3515 = vpack.c.bf16 %v3462, %v3460
        %v3516 = vpack.c.bf16 %v3467, %v3465
        %v3517 = vpack.c.bf16 %v3472, %v3470
        %v3518 = vpack.c.bf16 %v3477, %v3475
        %v3519 = vpack.c.bf16 %v3482, %v3480
        %v3520 = vpack.c.bf16 %v3487, %v3485
        %3521 = vxpose.xlu0.c.b16.start [1/8] %v3489, 128
        %3522 = vxpose.xlu0.c.b16.cont [2/8] %v3490, 128
        %3523 = vxpose.xlu0.c.b16.cont [3/8] %v3491, 128
        %3524 = vxpose.xlu0.c.b16.cont [4/8] %v3492, 128
        %3525 = vxpose.xlu0.c.b16.cont [5/8] %v3493, 128
        %3526 = vxpose.xlu0.c.b16.cont [6/8] %v3494, 128
        %3527 = vxpose.xlu0.c.b16.cont [7/8] %v3495, 128
        %3528 = vxpose.xlu0.c.b16.end [8/8] %v3496, 128
        %v3529 = vpop.trf.xlu0
        %v3530 = vpop.trf.xlu0
        %v3531 = vpop.trf.xlu0
        %v3532 = vpop.trf.xlu0
        %v3533 = vpop.trf.xlu0
        %v3534 = vpop.trf.xlu0
        %v3535 = vpop.trf.xlu0
        %v3536 = vpop.trf.xlu0
        %3537 = vxpose.xlu0.c.b16.start [1/8] %v3497, 128
        %3538 = vxpose.xlu0.c.b16.cont [2/8] %v3498, 128
        %3539 = vxpose.xlu0.c.b16.cont [3/8] %v3499, 128
        %3540 = vxpose.xlu0.c.b16.cont [4/8] %v3500, 128
        %3541 = vxpose.xlu0.c.b16.cont [5/8] %v3501, 128
        %3542 = vxpose.xlu0.c.b16.cont [6/8] %v3502, 128
        %3543 = vxpose.xlu0.c.b16.cont [7/8] %v3503, 128
        %3544 = vxpose.xlu0.c.b16.end [8/8] %v3504, 128
        %v3545 = vpop.trf.xlu0
        %v3546 = vpop.trf.xlu0
        %v3547 = vpop.trf.xlu0
        %v3548 = vpop.trf.xlu0
        %v3549 = vpop.trf.xlu0
        %v3550 = vpop.trf.xlu0
        %v3551 = vpop.trf.xlu0
        %v3552 = vpop.trf.xlu0
        %3553 = vxpose.xlu0.c.b16.start [1/8] %v3505, 128
        %3554 = vxpose.xlu0.c.b16.cont [2/8] %v3506, 128
        %3555 = vxpose.xlu0.c.b16.cont [3/8] %v3507, 128
        %3556 = vxpose.xlu0.c.b16.cont [4/8] %v3508, 128
        %3557 = vxpose.xlu0.c.b16.cont [5/8] %v3509, 128
        %3558 = vxpose.xlu0.c.b16.cont [6/8] %v3510, 128
        %3559 = vxpose.xlu0.c.b16.cont [7/8] %v3511, 128
        %3560 = vxpose.xlu0.c.b16.end [8/8] %v3512, 128
        %v3561 = vpop.trf.xlu0
        %v3562 = vpop.trf.xlu0
        %v3563 = vpop.trf.xlu0
        %v3564 = vpop.trf.xlu0
        %v3565 = vpop.trf.xlu0
        %v3566 = vpop.trf.xlu0
        %v3567 = vpop.trf.xlu0
        %v3568 = vpop.trf.xlu0
        %3569 = vxpose.xlu0.c.b16.start [1/8] %v3513, 128
        %3570 = vxpose.xlu0.c.b16.cont [2/8] %v3514, 128
        %3571 = vxpose.xlu0.c.b16.cont [3/8] %v3515, 128
        %3572 = vxpose.xlu0.c.b16.cont [4/8] %v3516, 128
        %3573 = vxpose.xlu0.c.b16.cont [5/8] %v3517, 128
        %3574 = vxpose.xlu0.c.b16.cont [6/8] %v3518, 128
        %3575 = vxpose.xlu0.c.b16.cont [7/8] %v3519, 128
        %3576 = vxpose.xlu0.c.b16.end [8/8] %v3520, 128
        %v3577 = vpop.trf.xlu0
        %v3578 = vpop.trf.xlu0
        %v3579 = vpop.trf.xlu0
        %v3580 = vpop.trf.xlu0
        %v3581 = vpop.trf.xlu0
        %v3582 = vpop.trf.xlu0
        %v3583 = vpop.trf.xlu0
        %v3584 = vpop.trf.xlu0
        %3585 = vmatpush.bf16.msra.mxu0 %v1425
        %3586 = vmatpush.bf16.msra.mxu0 %v1417
        %3587 = vmatpush.bf16.msra.mxu0 %v1409
        %3588 = vmatpush.bf16.msra.mxu0 %v1401
        %3589 = vmatpush.bf16.msra.mxu0 %v1393
        %3590 = vmatpush.bf16.msra.mxu0 %v1385
        %3591 = vmatpush.bf16.msra.mxu0 %v1377
        %3592 = vmatpush.bf16.msra.mxu0 %v1369
        %3593 = vmatmul.bf16.gmra.mxu0 %v3529
        %v3594 = vpop.f32.mrf.mxu0
        %v3595 = vadd.f32 0.0, %v3594
        %v3596 = vpop.f32.mrf.mxu0
        %v3597 = vadd.f32 0.0, %v3596
        %3598 = vmatmul.bf16.gmra.mxu0 %v3530
        %v3599 = vpop.f32.mrf.mxu0
        %v3600 = vadd.f32 0.0, %v3599
        %v3601 = vpop.f32.mrf.mxu0
        %v3602 = vadd.f32 0.0, %v3601
        %3603 = vmatmul.bf16.gmra.mxu0 %v3531
        %v3604 = vpop.f32.mrf.mxu0
        %v3605 = vadd.f32 0.0, %v3604
        %v3606 = vpop.f32.mrf.mxu0
        %v3607 = vadd.f32 0.0, %v3606
        %3608 = vmatmul.bf16.gmra.mxu0 %v3532
        %v3609 = vpop.f32.mrf.mxu0
        %v3610 = vadd.f32 0.0, %v3609
        %v3611 = vpop.f32.mrf.mxu0
        %v3612 = vadd.f32 0.0, %v3611
        %3613 = vmatmul.bf16.gmra.mxu0 %v3533
        %v3614 = vpop.f32.mrf.mxu0
        %v3615 = vadd.f32 0.0, %v3614
        %v3616 = vpop.f32.mrf.mxu0
        %v3617 = vadd.f32 0.0, %v3616
        %3618 = vmatmul.bf16.gmra.mxu0 %v3534
        %v3619 = vpop.f32.mrf.mxu0
        %v3620 = vadd.f32 0.0, %v3619
        %v3621 = vpop.f32.mrf.mxu0
        %v3622 = vadd.f32 0.0, %v3621
        %3623 = vmatmul.bf16.gmra.mxu0 %v3535
        %v3624 = vpop.f32.mrf.mxu0
        %v3625 = vadd.f32 0.0, %v3624
        %v3626 = vpop.f32.mrf.mxu0
        %v3627 = vadd.f32 0.0, %v3626
        %3628 = vmatmul.bf16.gmra.mxu0 %v3536
        %v3629 = vpop.f32.mrf.mxu0
        %v3630 = vadd.f32 0.0, %v3629
        %v3631 = vpop.f32.mrf.mxu0
        %v3632 = vadd.f32 0.0, %v3631
        %3633 = vdwg.mxu0
        %3634 = vmatpush.bf16.msra.mxu0 %v1489
        %3635 = vmatpush.bf16.msra.mxu0 %v1481
        %3636 = vmatpush.bf16.msra.mxu0 %v1473
        %3637 = vmatpush.bf16.msra.mxu0 %v1465
        %3638 = vmatpush.bf16.msra.mxu0 %v1457
        %3639 = vmatpush.bf16.msra.mxu0 %v1449
        %3640 = vmatpush.bf16.msra.mxu0 %v1441
        %3641 = vmatpush.bf16.msra.mxu0 %v1433
        %3642 = vmatmul.bf16.gmra.mxu0 %v3545
        %v3643 = vpop.f32.mrf.mxu0
        %v3644 = vadd.f32 %v3595, %v3643
        %v3645 = vpop.f32.mrf.mxu0
        %v3646 = vadd.f32 %v3597, %v3645
        %3647 = vmatmul.bf16.gmra.mxu0 %v3546
        %v3648 = vpop.f32.mrf.mxu0
        %v3649 = vadd.f32 %v3600, %v3648
        %v3650 = vpop.f32.mrf.mxu0
        %v3651 = vadd.f32 %v3602, %v3650
        %3652 = vmatmul.bf16.gmra.mxu0 %v3547
        %v3653 = vpop.f32.mrf.mxu0
        %v3654 = vadd.f32 %v3605, %v3653
        %v3655 = vpop.f32.mrf.mxu0
        %v3656 = vadd.f32 %v3607, %v3655
        %3657 = vmatmul.bf16.gmra.mxu0 %v3548
        %v3658 = vpop.f32.mrf.mxu0
        %v3659 = vadd.f32 %v3610, %v3658
        %v3660 = vpop.f32.mrf.mxu0
        %v3661 = vadd.f32 %v3612, %v3660
        %3662 = vmatmul.bf16.gmra.mxu0 %v3549
        %v3663 = vpop.f32.mrf.mxu0
        %v3664 = vadd.f32 %v3615, %v3663
        %v3665 = vpop.f32.mrf.mxu0
        %v3666 = vadd.f32 %v3617, %v3665
        %3667 = vmatmul.bf16.gmra.mxu0 %v3550
        %v3668 = vpop.f32.mrf.mxu0
        %v3669 = vadd.f32 %v3620, %v3668
        %v3670 = vpop.f32.mrf.mxu0
        %v3671 = vadd.f32 %v3622, %v3670
        %3672 = vmatmul.bf16.gmra.mxu0 %v3551
        %v3673 = vpop.f32.mrf.mxu0
        %v3674 = vadd.f32 %v3625, %v3673
        %v3675 = vpop.f32.mrf.mxu0
        %v3676 = vadd.f32 %v3627, %v3675
        %3677 = vmatmul.bf16.gmra.mxu0 %v3552
        %v3678 = vpop.f32.mrf.mxu0
        %v3679 = vadd.f32 %v3630, %v3678
        %v3680 = vpop.f32.mrf.mxu0
        %v3681 = vadd.f32 %v3632, %v3680
        %3682 = vdwg.mxu0
        %3683 = vmatpush.bf16.msra.mxu0 %v1553
        %3684 = vmatpush.bf16.msra.mxu0 %v1545
        %3685 = vmatpush.bf16.msra.mxu0 %v1537
        %3686 = vmatpush.bf16.msra.mxu0 %v1529
        %3687 = vmatpush.bf16.msra.mxu0 %v1521
        %3688 = vmatpush.bf16.msra.mxu0 %v1513
        %3689 = vmatpush.bf16.msra.mxu0 %v1505
        %3690 = vmatpush.bf16.msra.mxu0 %v1497
        %3691 = vmatmul.bf16.gmra.mxu0 %v3561
        %v3692 = vpop.f32.mrf.mxu0
        %v3693 = vadd.f32 %v3644, %v3692
        %v3694 = vpop.f32.mrf.mxu0
        %v3695 = vadd.f32 %v3646, %v3694
        %3696 = vmatmul.bf16.gmra.mxu0 %v3562
        %v3697 = vpop.f32.mrf.mxu0
        %v3698 = vadd.f32 %v3649, %v3697
        %v3699 = vpop.f32.mrf.mxu0
        %v3700 = vadd.f32 %v3651, %v3699
        %3701 = vmatmul.bf16.gmra.mxu0 %v3563
        %v3702 = vpop.f32.mrf.mxu0
        %v3703 = vadd.f32 %v3654, %v3702
        %v3704 = vpop.f32.mrf.mxu0
        %v3705 = vadd.f32 %v3656, %v3704
        %3706 = vmatmul.bf16.gmra.mxu0 %v3564
        %v3707 = vpop.f32.mrf.mxu0
        %v3708 = vadd.f32 %v3659, %v3707
        %v3709 = vpop.f32.mrf.mxu0
        %v3710 = vadd.f32 %v3661, %v3709
        %3711 = vmatmul.bf16.gmra.mxu0 %v3565
        %v3712 = vpop.f32.mrf.mxu0
        %v3713 = vadd.f32 %v3664, %v3712
        %v3714 = vpop.f32.mrf.mxu0
        %v3715 = vadd.f32 %v3666, %v3714
        %3716 = vmatmul.bf16.gmra.mxu0 %v3566
        %v3717 = vpop.f32.mrf.mxu0
        %v3718 = vadd.f32 %v3669, %v3717
        %v3719 = vpop.f32.mrf.mxu0
        %v3720 = vadd.f32 %v3671, %v3719
        %3721 = vmatmul.bf16.gmra.mxu0 %v3567
        %v3722 = vpop.f32.mrf.mxu0
        %v3723 = vadd.f32 %v3674, %v3722
        %v3724 = vpop.f32.mrf.mxu0
        %v3725 = vadd.f32 %v3676, %v3724
        %3726 = vmatmul.bf16.gmra.mxu0 %v3568
        %v3727 = vpop.f32.mrf.mxu0
        %v3728 = vadd.f32 %v3679, %v3727
        %v3729 = vpop.f32.mrf.mxu0
        %v3730 = vadd.f32 %v3681, %v3729
        %3731 = vdwg.mxu0
        %3732 = vmatpush.bf16.msra.mxu0 %v1617
        %3733 = vmatpush.bf16.msra.mxu0 %v1609
        %3734 = vmatpush.bf16.msra.mxu0 %v1601
        %3735 = vmatpush.bf16.msra.mxu0 %v1593
        %3736 = vmatpush.bf16.msra.mxu0 %v1585
        %3737 = vmatpush.bf16.msra.mxu0 %v1577
        %3738 = vmatpush.bf16.msra.mxu0 %v1569
        %3739 = vmatpush.bf16.msra.mxu0 %v1561
        %3740 = vmatmul.bf16.gmra.mxu0 %v3577
        %v3741 = vpop.f32.mrf.mxu0
        %v3742 = vadd.f32 %v3693, %v3741
        %v3743 = vpop.f32.mrf.mxu0
        %v3744 = vadd.f32 %v3695, %v3743
        %3745 = vmatmul.bf16.gmra.mxu0 %v3578
        %v3746 = vpop.f32.mrf.mxu0
        %v3747 = vadd.f32 %v3698, %v3746
        %v3748 = vpop.f32.mrf.mxu0
        %v3749 = vadd.f32 %v3700, %v3748
        %3750 = vmatmul.bf16.gmra.mxu0 %v3579
        %v3751 = vpop.f32.mrf.mxu0
        %v3752 = vadd.f32 %v3703, %v3751
        %v3753 = vpop.f32.mrf.mxu0
        %v3754 = vadd.f32 %v3705, %v3753
        %3755 = vmatmul.bf16.gmra.mxu0 %v3580
        %v3756 = vpop.f32.mrf.mxu0
        %v3757 = vadd.f32 %v3708, %v3756
        %v3758 = vpop.f32.mrf.mxu0
        %v3759 = vadd.f32 %v3710, %v3758
        %3760 = vmatmul.bf16.gmra.mxu0 %v3581
        %v3761 = vpop.f32.mrf.mxu0
        %v3762 = vadd.f32 %v3713, %v3761
        %v3763 = vpop.f32.mrf.mxu0
        %v3764 = vadd.f32 %v3715, %v3763
        %3765 = vmatmul.bf16.gmra.mxu0 %v3582
        %v3766 = vpop.f32.mrf.mxu0
        %v3767 = vadd.f32 %v3718, %v3766
        %v3768 = vpop.f32.mrf.mxu0
        %v3769 = vadd.f32 %v3720, %v3768
        %3770 = vmatmul.bf16.gmra.mxu0 %v3583
        %v3771 = vpop.f32.mrf.mxu0
        %v3772 = vadd.f32 %v3723, %v3771
        %v3773 = vpop.f32.mrf.mxu0
        %v3774 = vadd.f32 %v3725, %v3773
        %3775 = vmatmul.bf16.gmra.mxu0 %v3584
        %v3776 = vpop.f32.mrf.mxu0
        %v3777 = vadd.f32 %v3728, %v3776
        %v3778 = vpop.f32.mrf.mxu0
        %v3779 = vadd.f32 %v3730, %v3778
        %3780 = vdwg.mxu0
        %3781 = vmatpush.bf16.msra.mxu0 %v1426
        %3782 = vmatpush.bf16.msra.mxu0 %v1418
        %3783 = vmatpush.bf16.msra.mxu0 %v1410
        %3784 = vmatpush.bf16.msra.mxu0 %v1402
        %3785 = vmatpush.bf16.msra.mxu0 %v1394
        %3786 = vmatpush.bf16.msra.mxu0 %v1386
        %3787 = vmatpush.bf16.msra.mxu0 %v1378
        %3788 = vmatpush.bf16.msra.mxu0 %v1370
        %3789 = vmatmul.bf16.gmra.mxu0 %v3529
        %v3790 = vpop.f32.mrf.mxu0
        %v3791 = vadd.f32 0.0, %v3790
        %v3792 = vpop.f32.mrf.mxu0
        %v3793 = vadd.f32 0.0, %v3792
        %3794 = vmatmul.bf16.gmra.mxu0 %v3530
        %v3795 = vpop.f32.mrf.mxu0
        %v3796 = vadd.f32 0.0, %v3795
        %v3797 = vpop.f32.mrf.mxu0
        %v3798 = vadd.f32 0.0, %v3797
        %3799 = vmatmul.bf16.gmra.mxu0 %v3531
        %v3800 = vpop.f32.mrf.mxu0
        %v3801 = vadd.f32 0.0, %v3800
        %v3802 = vpop.f32.mrf.mxu0
        %v3803 = vadd.f32 0.0, %v3802
        %3804 = vmatmul.bf16.gmra.mxu0 %v3532
        %v3805 = vpop.f32.mrf.mxu0
        %v3806 = vadd.f32 0.0, %v3805
        %v3807 = vpop.f32.mrf.mxu0
        %v3808 = vadd.f32 0.0, %v3807
        %3809 = vmatmul.bf16.gmra.mxu0 %v3533
        %v3810 = vpop.f32.mrf.mxu0
        %v3811 = vadd.f32 0.0, %v3810
        %v3812 = vpop.f32.mrf.mxu0
        %v3813 = vadd.f32 0.0, %v3812
        %3814 = vmatmul.bf16.gmra.mxu0 %v3534
        %v3815 = vpop.f32.mrf.mxu0
        %v3816 = vadd.f32 0.0, %v3815
        %v3817 = vpop.f32.mrf.mxu0
        %v3818 = vadd.f32 0.0, %v3817
        %3819 = vmatmul.bf16.gmra.mxu0 %v3535
        %v3820 = vpop.f32.mrf.mxu0
        %v3821 = vadd.f32 0.0, %v3820
        %v3822 = vpop.f32.mrf.mxu0
        %v3823 = vadd.f32 0.0, %v3822
        %3824 = vmatmul.bf16.gmra.mxu0 %v3536
        %v3825 = vpop.f32.mrf.mxu0
        %v3826 = vadd.f32 0.0, %v3825
        %v3827 = vpop.f32.mrf.mxu0
        %v3828 = vadd.f32 0.0, %v3827
        %3829 = vdwg.mxu0
        %3830 = vmatpush.bf16.msra.mxu0 %v1490
        %3831 = vmatpush.bf16.msra.mxu0 %v1482
        %3832 = vmatpush.bf16.msra.mxu0 %v1474
        %3833 = vmatpush.bf16.msra.mxu0 %v1466
        %3834 = vmatpush.bf16.msra.mxu0 %v1458
        %3835 = vmatpush.bf16.msra.mxu0 %v1450
        %3836 = vmatpush.bf16.msra.mxu0 %v1442
        %3837 = vmatpush.bf16.msra.mxu0 %v1434
        %3838 = vmatmul.bf16.gmra.mxu0 %v3545
        %v3839 = vpop.f32.mrf.mxu0
        %v3840 = vadd.f32 %v3791, %v3839
        %v3841 = vpop.f32.mrf.mxu0
        %v3842 = vadd.f32 %v3793, %v3841
        %3843 = vmatmul.bf16.gmra.mxu0 %v3546
        %v3844 = vpop.f32.mrf.mxu0
        %v3845 = vadd.f32 %v3796, %v3844
        %v3846 = vpop.f32.mrf.mxu0
        %v3847 = vadd.f32 %v3798, %v3846
        %3848 = vmatmul.bf16.gmra.mxu0 %v3547
        %v3849 = vpop.f32.mrf.mxu0
        %v3850 = vadd.f32 %v3801, %v3849
        %v3851 = vpop.f32.mrf.mxu0
        %v3852 = vadd.f32 %v3803, %v3851
        %3853 = vmatmul.bf16.gmra.mxu0 %v3548
        %v3854 = vpop.f32.mrf.mxu0
        %v3855 = vadd.f32 %v3806, %v3854
        %v3856 = vpop.f32.mrf.mxu0
        %v3857 = vadd.f32 %v3808, %v3856
        %3858 = vmatmul.bf16.gmra.mxu0 %v3549
        %v3859 = vpop.f32.mrf.mxu0
        %v3860 = vadd.f32 %v3811, %v3859
        %v3861 = vpop.f32.mrf.mxu0
        %v3862 = vadd.f32 %v3813, %v3861
        %3863 = vmatmul.bf16.gmra.mxu0 %v3550
        %v3864 = vpop.f32.mrf.mxu0
        %v3865 = vadd.f32 %v3816, %v3864
        %v3866 = vpop.f32.mrf.mxu0
        %v3867 = vadd.f32 %v3818, %v3866
        %3868 = vmatmul.bf16.gmra.mxu0 %v3551
        %v3869 = vpop.f32.mrf.mxu0
        %v3870 = vadd.f32 %v3821, %v3869
        %v3871 = vpop.f32.mrf.mxu0
        %v3872 = vadd.f32 %v3823, %v3871
        %3873 = vmatmul.bf16.gmra.mxu0 %v3552
        %v3874 = vpop.f32.mrf.mxu0
        %v3875 = vadd.f32 %v3826, %v3874
        %v3876 = vpop.f32.mrf.mxu0
        %v3877 = vadd.f32 %v3828, %v3876
        %3878 = vdwg.mxu0
        %3879 = vmatpush.bf16.msra.mxu0 %v1554
        %3880 = vmatpush.bf16.msra.mxu0 %v1546
        %3881 = vmatpush.bf16.msra.mxu0 %v1538
        %3882 = vmatpush.bf16.msra.mxu0 %v1530
        %3883 = vmatpush.bf16.msra.mxu0 %v1522
        %3884 = vmatpush.bf16.msra.mxu0 %v1514
        %3885 = vmatpush.bf16.msra.mxu0 %v1506
        %3886 = vmatpush.bf16.msra.mxu0 %v1498
        %3887 = vmatmul.bf16.gmra.mxu0 %v3561
        %v3888 = vpop.f32.mrf.mxu0
        %v3889 = vadd.f32 %v3840, %v3888
        %v3890 = vpop.f32.mrf.mxu0
        %v3891 = vadd.f32 %v3842, %v3890
        %3892 = vmatmul.bf16.gmra.mxu0 %v3562
        %v3893 = vpop.f32.mrf.mxu0
        %v3894 = vadd.f32 %v3845, %v3893
        %v3895 = vpop.f32.mrf.mxu0
        %v3896 = vadd.f32 %v3847, %v3895
        %3897 = vmatmul.bf16.gmra.mxu0 %v3563
        %v3898 = vpop.f32.mrf.mxu0
        %v3899 = vadd.f32 %v3850, %v3898
        %v3900 = vpop.f32.mrf.mxu0
        %v3901 = vadd.f32 %v3852, %v3900
        %3902 = vmatmul.bf16.gmra.mxu0 %v3564
        %v3903 = vpop.f32.mrf.mxu0
        %v3904 = vadd.f32 %v3855, %v3903
        %v3905 = vpop.f32.mrf.mxu0
        %v3906 = vadd.f32 %v3857, %v3905
        %3907 = vmatmul.bf16.gmra.mxu0 %v3565
        %v3908 = vpop.f32.mrf.mxu0
        %v3909 = vadd.f32 %v3860, %v3908
        %v3910 = vpop.f32.mrf.mxu0
        %v3911 = vadd.f32 %v3862, %v3910
        %3912 = vmatmul.bf16.gmra.mxu0 %v3566
        %v3913 = vpop.f32.mrf.mxu0
        %v3914 = vadd.f32 %v3865, %v3913
        %v3915 = vpop.f32.mrf.mxu0
        %v3916 = vadd.f32 %v3867, %v3915
        %3917 = vmatmul.bf16.gmra.mxu0 %v3567
        %v3918 = vpop.f32.mrf.mxu0
        %v3919 = vadd.f32 %v3870, %v3918
        %v3920 = vpop.f32.mrf.mxu0
        %v3921 = vadd.f32 %v3872, %v3920
        %3922 = vmatmul.bf16.gmra.mxu0 %v3568
        %v3923 = vpop.f32.mrf.mxu0
        %v3924 = vadd.f32 %v3875, %v3923
        %v3925 = vpop.f32.mrf.mxu0
        %v3926 = vadd.f32 %v3877, %v3925
        %3927 = vdwg.mxu0
        %3928 = vmatpush.bf16.msra.mxu0 %v1618
        %3929 = vmatpush.bf16.msra.mxu0 %v1610
        %3930 = vmatpush.bf16.msra.mxu0 %v1602
        %3931 = vmatpush.bf16.msra.mxu0 %v1594
        %3932 = vmatpush.bf16.msra.mxu0 %v1586
        %3933 = vmatpush.bf16.msra.mxu0 %v1578
        %3934 = vmatpush.bf16.msra.mxu0 %v1570
        %3935 = vmatpush.bf16.msra.mxu0 %v1562
        %3936 = vmatmul.bf16.gmra.mxu0 %v3577
        %v3937 = vpop.f32.mrf.mxu0
        %v3938 = vadd.f32 %v3889, %v3937
        %v3939 = vpop.f32.mrf.mxu0
        %v3940 = vadd.f32 %v3891, %v3939
        %3941 = vmatmul.bf16.gmra.mxu0 %v3578
        %v3942 = vpop.f32.mrf.mxu0
        %v3943 = vadd.f32 %v3894, %v3942
        %v3944 = vpop.f32.mrf.mxu0
        %v3945 = vadd.f32 %v3896, %v3944
        %3946 = vmatmul.bf16.gmra.mxu0 %v3579
        %v3947 = vpop.f32.mrf.mxu0
        %v3948 = vadd.f32 %v3899, %v3947
        %v3949 = vpop.f32.mrf.mxu0
        %v3950 = vadd.f32 %v3901, %v3949
        %3951 = vmatmul.bf16.gmra.mxu0 %v3580
        %v3952 = vpop.f32.mrf.mxu0
        %v3953 = vadd.f32 %v3904, %v3952
        %v3954 = vpop.f32.mrf.mxu0
        %v3955 = vadd.f32 %v3906, %v3954
        %3956 = vmatmul.bf16.gmra.mxu0 %v3581
        %v3957 = vpop.f32.mrf.mxu0
        %v3958 = vadd.f32 %v3909, %v3957
        %v3959 = vpop.f32.mrf.mxu0
        %v3960 = vadd.f32 %v3911, %v3959
        %3961 = vmatmul.bf16.gmra.mxu0 %v3582
        %v3962 = vpop.f32.mrf.mxu0
        %v3963 = vadd.f32 %v3914, %v3962
        %v3964 = vpop.f32.mrf.mxu0
        %v3965 = vadd.f32 %v3916, %v3964
        %3966 = vmatmul.bf16.gmra.mxu0 %v3583
        %v3967 = vpop.f32.mrf.mxu0
        %v3968 = vadd.f32 %v3919, %v3967
        %v3969 = vpop.f32.mrf.mxu0
        %v3970 = vadd.f32 %v3921, %v3969
        %3971 = vmatmul.bf16.gmra.mxu0 %v3584
        %v3972 = vpop.f32.mrf.mxu0
        %v3973 = vadd.f32 %v3924, %v3972
        %v3974 = vpop.f32.mrf.mxu0
        %v3975 = vadd.f32 %v3926, %v3974
        %3976 = vdwg.mxu0
        %3977 = vmatpush.bf16.msra.mxu0 %v1427
        %3978 = vmatpush.bf16.msra.mxu0 %v1419
        %3979 = vmatpush.bf16.msra.mxu0 %v1411
        %3980 = vmatpush.bf16.msra.mxu0 %v1403
        %3981 = vmatpush.bf16.msra.mxu0 %v1395
        %3982 = vmatpush.bf16.msra.mxu0 %v1387
        %3983 = vmatpush.bf16.msra.mxu0 %v1379
        %3984 = vmatpush.bf16.msra.mxu0 %v1371
        %3985 = vmatmul.bf16.gmra.mxu0 %v3529
        %v3986 = vpop.f32.mrf.mxu0
        %v3987 = vadd.f32 0.0, %v3986
        %v3988 = vpop.f32.mrf.mxu0
        %v3989 = vadd.f32 0.0, %v3988
        %3990 = vmatmul.bf16.gmra.mxu0 %v3530
        %v3991 = vpop.f32.mrf.mxu0
        %v3992 = vadd.f32 0.0, %v3991
        %v3993 = vpop.f32.mrf.mxu0
        %v3994 = vadd.f32 0.0, %v3993
        %3995 = vmatmul.bf16.gmra.mxu0 %v3531
        %v3996 = vpop.f32.mrf.mxu0
        %v3997 = vadd.f32 0.0, %v3996
        %v3998 = vpop.f32.mrf.mxu0
        %v3999 = vadd.f32 0.0, %v3998
        %4000 = vmatmul.bf16.gmra.mxu0 %v3532
        %v4001 = vpop.f32.mrf.mxu0
        %v4002 = vadd.f32 0.0, %v4001
        %v4003 = vpop.f32.mrf.mxu0
        %v4004 = vadd.f32 0.0, %v4003
        %4005 = vmatmul.bf16.gmra.mxu0 %v3533
        %v4006 = vpop.f32.mrf.mxu0
        %v4007 = vadd.f32 0.0, %v4006
        %v4008 = vpop.f32.mrf.mxu0
        %v4009 = vadd.f32 0.0, %v4008
        %4010 = vmatmul.bf16.gmra.mxu0 %v3534
        %v4011 = vpop.f32.mrf.mxu0
        %v4012 = vadd.f32 0.0, %v4011
        %v4013 = vpop.f32.mrf.mxu0
        %v4014 = vadd.f32 0.0, %v4013
        %4015 = vmatmul.bf16.gmra.mxu0 %v3535
        %v4016 = vpop.f32.mrf.mxu0
        %v4017 = vadd.f32 0.0, %v4016
        %v4018 = vpop.f32.mrf.mxu0
        %v4019 = vadd.f32 0.0, %v4018
        %4020 = vmatmul.bf16.gmra.mxu0 %v3536
        %v4021 = vpop.f32.mrf.mxu0
        %v4022 = vadd.f32 0.0, %v4021
        %v4023 = vpop.f32.mrf.mxu0
        %v4024 = vadd.f32 0.0, %v4023
        %4025 = vdwg.mxu0
        %4026 = vmatpush.bf16.msra.mxu0 %v1491
        %4027 = vmatpush.bf16.msra.mxu0 %v1483
        %4028 = vmatpush.bf16.msra.mxu0 %v1475
        %4029 = vmatpush.bf16.msra.mxu0 %v1467
        %4030 = vmatpush.bf16.msra.mxu0 %v1459
        %4031 = vmatpush.bf16.msra.mxu0 %v1451
        %4032 = vmatpush.bf16.msra.mxu0 %v1443
        %4033 = vmatpush.bf16.msra.mxu0 %v1435
        %4034 = vmatmul.bf16.gmra.mxu0 %v3545
        %v4035 = vpop.f32.mrf.mxu0
        %v4036 = vadd.f32 %v3987, %v4035
        %v4037 = vpop.f32.mrf.mxu0
        %v4038 = vadd.f32 %v3989, %v4037
        %4039 = vmatmul.bf16.gmra.mxu0 %v3546
        %v4040 = vpop.f32.mrf.mxu0
        %v4041 = vadd.f32 %v3992, %v4040
        %v4042 = vpop.f32.mrf.mxu0
        %v4043 = vadd.f32 %v3994, %v4042
        %4044 = vmatmul.bf16.gmra.mxu0 %v3547
        %v4045 = vpop.f32.mrf.mxu0
        %v4046 = vadd.f32 %v3997, %v4045
        %v4047 = vpop.f32.mrf.mxu0
        %v4048 = vadd.f32 %v3999, %v4047
        %4049 = vmatmul.bf16.gmra.mxu0 %v3548
        %v4050 = vpop.f32.mrf.mxu0
        %v4051 = vadd.f32 %v4002, %v4050
        %v4052 = vpop.f32.mrf.mxu0
        %v4053 = vadd.f32 %v4004, %v4052
        %4054 = vmatmul.bf16.gmra.mxu0 %v3549
        %v4055 = vpop.f32.mrf.mxu0
        %v4056 = vadd.f32 %v4007, %v4055
        %v4057 = vpop.f32.mrf.mxu0
        %v4058 = vadd.f32 %v4009, %v4057
        %4059 = vmatmul.bf16.gmra.mxu0 %v3550
        %v4060 = vpop.f32.mrf.mxu0
        %v4061 = vadd.f32 %v4012, %v4060
        %v4062 = vpop.f32.mrf.mxu0
        %v4063 = vadd.f32 %v4014, %v4062
        %4064 = vmatmul.bf16.gmra.mxu0 %v3551
        %v4065 = vpop.f32.mrf.mxu0
        %v4066 = vadd.f32 %v4017, %v4065
        %v4067 = vpop.f32.mrf.mxu0
        %v4068 = vadd.f32 %v4019, %v4067
        %4069 = vmatmul.bf16.gmra.mxu0 %v3552
        %v4070 = vpop.f32.mrf.mxu0
        %v4071 = vadd.f32 %v4022, %v4070
        %v4072 = vpop.f32.mrf.mxu0
        %v4073 = vadd.f32 %v4024, %v4072
        %4074 = vdwg.mxu0
        %4075 = vmatpush.bf16.msra.mxu0 %v1555
        %4076 = vmatpush.bf16.msra.mxu0 %v1547
        %4077 = vmatpush.bf16.msra.mxu0 %v1539
        %4078 = vmatpush.bf16.msra.mxu0 %v1531
        %4079 = vmatpush.bf16.msra.mxu0 %v1523
        %4080 = vmatpush.bf16.msra.mxu0 %v1515
        %4081 = vmatpush.bf16.msra.mxu0 %v1507
        %4082 = vmatpush.bf16.msra.mxu0 %v1499
        %4083 = vmatmul.bf16.gmra.mxu0 %v3561
        %v4084 = vpop.f32.mrf.mxu0
        %v4085 = vadd.f32 %v4036, %v4084
        %v4086 = vpop.f32.mrf.mxu0
        %v4087 = vadd.f32 %v4038, %v4086
        %4088 = vmatmul.bf16.gmra.mxu0 %v3562
        %v4089 = vpop.f32.mrf.mxu0
        %v4090 = vadd.f32 %v4041, %v4089
        %v4091 = vpop.f32.mrf.mxu0
        %v4092 = vadd.f32 %v4043, %v4091
        %4093 = vmatmul.bf16.gmra.mxu0 %v3563
        %v4094 = vpop.f32.mrf.mxu0
        %v4095 = vadd.f32 %v4046, %v4094
        %v4096 = vpop.f32.mrf.mxu0
        %v4097 = vadd.f32 %v4048, %v4096
        %4098 = vmatmul.bf16.gmra.mxu0 %v3564
        %v4099 = vpop.f32.mrf.mxu0
        %v4100 = vadd.f32 %v4051, %v4099
        %v4101 = vpop.f32.mrf.mxu0
        %v4102 = vadd.f32 %v4053, %v4101
        %4103 = vmatmul.bf16.gmra.mxu0 %v3565
        %v4104 = vpop.f32.mrf.mxu0
        %v4105 = vadd.f32 %v4056, %v4104
        %v4106 = vpop.f32.mrf.mxu0
        %v4107 = vadd.f32 %v4058, %v4106
        %4108 = vmatmul.bf16.gmra.mxu0 %v3566
        %v4109 = vpop.f32.mrf.mxu0
        %v4110 = vadd.f32 %v4061, %v4109
        %v4111 = vpop.f32.mrf.mxu0
        %v4112 = vadd.f32 %v4063, %v4111
        %4113 = vmatmul.bf16.gmra.mxu0 %v3567
        %v4114 = vpop.f32.mrf.mxu0
        %v4115 = vadd.f32 %v4066, %v4114
        %v4116 = vpop.f32.mrf.mxu0
        %v4117 = vadd.f32 %v4068, %v4116
        %4118 = vmatmul.bf16.gmra.mxu0 %v3568
        %v4119 = vpop.f32.mrf.mxu0
        %v4120 = vadd.f32 %v4071, %v4119
        %v4121 = vpop.f32.mrf.mxu0
        %v4122 = vadd.f32 %v4073, %v4121
        %4123 = vdwg.mxu0
        %4124 = vmatpush.bf16.msra.mxu0 %v1619
        %4125 = vmatpush.bf16.msra.mxu0 %v1611
        %4126 = vmatpush.bf16.msra.mxu0 %v1603
        %4127 = vmatpush.bf16.msra.mxu0 %v1595
        %4128 = vmatpush.bf16.msra.mxu0 %v1587
        %4129 = vmatpush.bf16.msra.mxu0 %v1579
        %4130 = vmatpush.bf16.msra.mxu0 %v1571
        %4131 = vmatpush.bf16.msra.mxu0 %v1563
        %4132 = vmatmul.bf16.gmra.mxu0 %v3577
        %v4133 = vpop.f32.mrf.mxu0
        %v4134 = vadd.f32 %v4085, %v4133
        %v4135 = vpop.f32.mrf.mxu0
        %v4136 = vadd.f32 %v4087, %v4135
        %4137 = vmatmul.bf16.gmra.mxu0 %v3578
        %v4138 = vpop.f32.mrf.mxu0
        %v4139 = vadd.f32 %v4090, %v4138
        %v4140 = vpop.f32.mrf.mxu0
        %v4141 = vadd.f32 %v4092, %v4140
        %4142 = vmatmul.bf16.gmra.mxu0 %v3579
        %v4143 = vpop.f32.mrf.mxu0
        %v4144 = vadd.f32 %v4095, %v4143
        %v4145 = vpop.f32.mrf.mxu0
        %v4146 = vadd.f32 %v4097, %v4145
        %4147 = vmatmul.bf16.gmra.mxu0 %v3580
        %v4148 = vpop.f32.mrf.mxu0
        %v4149 = vadd.f32 %v4100, %v4148
        %v4150 = vpop.f32.mrf.mxu0
        %v4151 = vadd.f32 %v4102, %v4150
        %4152 = vmatmul.bf16.gmra.mxu0 %v3581
        %v4153 = vpop.f32.mrf.mxu0
        %v4154 = vadd.f32 %v4105, %v4153
        %v4155 = vpop.f32.mrf.mxu0
        %v4156 = vadd.f32 %v4107, %v4155
        %4157 = vmatmul.bf16.gmra.mxu0 %v3582
        %v4158 = vpop.f32.mrf.mxu0
        %v4159 = vadd.f32 %v4110, %v4158
        %v4160 = vpop.f32.mrf.mxu0
        %v4161 = vadd.f32 %v4112, %v4160
        %4162 = vmatmul.bf16.gmra.mxu0 %v3583
        %v4163 = vpop.f32.mrf.mxu0
        %v4164 = vadd.f32 %v4115, %v4163
        %v4165 = vpop.f32.mrf.mxu0
        %v4166 = vadd.f32 %v4117, %v4165
        %4167 = vmatmul.bf16.gmra.mxu0 %v3584
        %v4168 = vpop.f32.mrf.mxu0
        %v4169 = vadd.f32 %v4120, %v4168
        %v4170 = vpop.f32.mrf.mxu0
        %v4171 = vadd.f32 %v4122, %v4170
        %4172 = vdwg.mxu0
        %4173 = vmatpush.bf16.msra.mxu0 %v1428
        %4174 = vmatpush.bf16.msra.mxu0 %v1420
        %4175 = vmatpush.bf16.msra.mxu0 %v1412
        %4176 = vmatpush.bf16.msra.mxu0 %v1404
        %4177 = vmatpush.bf16.msra.mxu0 %v1396
        %4178 = vmatpush.bf16.msra.mxu0 %v1388
        %4179 = vmatpush.bf16.msra.mxu0 %v1380
        %4180 = vmatpush.bf16.msra.mxu0 %v1372
        %4181 = vmatmul.bf16.gmra.mxu0 %v3529
        %v4182 = vpop.f32.mrf.mxu0
        %v4183 = vadd.f32 0.0, %v4182
        %v4184 = vpop.f32.mrf.mxu0
        %v4185 = vadd.f32 0.0, %v4184
        %4186 = vmatmul.bf16.gmra.mxu0 %v3530
        %v4187 = vpop.f32.mrf.mxu0
        %v4188 = vadd.f32 0.0, %v4187
        %v4189 = vpop.f32.mrf.mxu0
        %v4190 = vadd.f32 0.0, %v4189
        %4191 = vmatmul.bf16.gmra.mxu0 %v3531
        %v4192 = vpop.f32.mrf.mxu0
        %v4193 = vadd.f32 0.0, %v4192
        %v4194 = vpop.f32.mrf.mxu0
        %v4195 = vadd.f32 0.0, %v4194
        %4196 = vmatmul.bf16.gmra.mxu0 %v3532
        %v4197 = vpop.f32.mrf.mxu0
        %v4198 = vadd.f32 0.0, %v4197
        %v4199 = vpop.f32.mrf.mxu0
        %v4200 = vadd.f32 0.0, %v4199
        %4201 = vmatmul.bf16.gmra.mxu0 %v3533
        %v4202 = vpop.f32.mrf.mxu0
        %v4203 = vadd.f32 0.0, %v4202
        %v4204 = vpop.f32.mrf.mxu0
        %v4205 = vadd.f32 0.0, %v4204
        %4206 = vmatmul.bf16.gmra.mxu0 %v3534
        %v4207 = vpop.f32.mrf.mxu0
        %v4208 = vadd.f32 0.0, %v4207
        %v4209 = vpop.f32.mrf.mxu0
        %v4210 = vadd.f32 0.0, %v4209
        %4211 = vmatmul.bf16.gmra.mxu0 %v3535
        %v4212 = vpop.f32.mrf.mxu0
        %v4213 = vadd.f32 0.0, %v4212
        %v4214 = vpop.f32.mrf.mxu0
        %v4215 = vadd.f32 0.0, %v4214
        %4216 = vmatmul.bf16.gmra.mxu0 %v3536
        %v4217 = vpop.f32.mrf.mxu0
        %v4218 = vadd.f32 0.0, %v4217
        %v4219 = vpop.f32.mrf.mxu0
        %v4220 = vadd.f32 0.0, %v4219
        %4221 = vdwg.mxu0
        %4222 = vmatpush.bf16.msra.mxu0 %v1492
        %4223 = vmatpush.bf16.msra.mxu0 %v1484
        %4224 = vmatpush.bf16.msra.mxu0 %v1476
        %4225 = vmatpush.bf16.msra.mxu0 %v1468
        %4226 = vmatpush.bf16.msra.mxu0 %v1460
        %4227 = vmatpush.bf16.msra.mxu0 %v1452
        %4228 = vmatpush.bf16.msra.mxu0 %v1444
        %4229 = vmatpush.bf16.msra.mxu0 %v1436
        %4230 = vmatmul.bf16.gmra.mxu0 %v3545
        %v4231 = vpop.f32.mrf.mxu0
        %v4232 = vadd.f32 %v4183, %v4231
        %v4233 = vpop.f32.mrf.mxu0
        %v4234 = vadd.f32 %v4185, %v4233
        %4235 = vmatmul.bf16.gmra.mxu0 %v3546
        %v4236 = vpop.f32.mrf.mxu0
        %v4237 = vadd.f32 %v4188, %v4236
        %v4238 = vpop.f32.mrf.mxu0
        %v4239 = vadd.f32 %v4190, %v4238
        %4240 = vmatmul.bf16.gmra.mxu0 %v3547
        %v4241 = vpop.f32.mrf.mxu0
        %v4242 = vadd.f32 %v4193, %v4241
        %v4243 = vpop.f32.mrf.mxu0
        %v4244 = vadd.f32 %v4195, %v4243
        %4245 = vmatmul.bf16.gmra.mxu0 %v3548
        %v4246 = vpop.f32.mrf.mxu0
        %v4247 = vadd.f32 %v4198, %v4246
        %v4248 = vpop.f32.mrf.mxu0
        %v4249 = vadd.f32 %v4200, %v4248
        %4250 = vmatmul.bf16.gmra.mxu0 %v3549
        %v4251 = vpop.f32.mrf.mxu0
        %v4252 = vadd.f32 %v4203, %v4251
        %v4253 = vpop.f32.mrf.mxu0
        %v4254 = vadd.f32 %v4205, %v4253
        %4255 = vmatmul.bf16.gmra.mxu0 %v3550
        %v4256 = vpop.f32.mrf.mxu0
        %v4257 = vadd.f32 %v4208, %v4256
        %v4258 = vpop.f32.mrf.mxu0
        %v4259 = vadd.f32 %v4210, %v4258
        %4260 = vmatmul.bf16.gmra.mxu0 %v3551
        %v4261 = vpop.f32.mrf.mxu0
        %v4262 = vadd.f32 %v4213, %v4261
        %v4263 = vpop.f32.mrf.mxu0
        %v4264 = vadd.f32 %v4215, %v4263
        %4265 = vmatmul.bf16.gmra.mxu0 %v3552
        %v4266 = vpop.f32.mrf.mxu0
        %v4267 = vadd.f32 %v4218, %v4266
        %v4268 = vpop.f32.mrf.mxu0
        %v4269 = vadd.f32 %v4220, %v4268
        %4270 = vdwg.mxu0
        %4271 = vmatpush.bf16.msra.mxu0 %v1556
        %4272 = vmatpush.bf16.msra.mxu0 %v1548
        %4273 = vmatpush.bf16.msra.mxu0 %v1540
        %4274 = vmatpush.bf16.msra.mxu0 %v1532
        %4275 = vmatpush.bf16.msra.mxu0 %v1524
        %4276 = vmatpush.bf16.msra.mxu0 %v1516
        %4277 = vmatpush.bf16.msra.mxu0 %v1508
        %4278 = vmatpush.bf16.msra.mxu0 %v1500
        %4279 = vmatmul.bf16.gmra.mxu0 %v3561
        %v4280 = vpop.f32.mrf.mxu0
        %v4281 = vadd.f32 %v4232, %v4280
        %v4282 = vpop.f32.mrf.mxu0
        %v4283 = vadd.f32 %v4234, %v4282
        %4284 = vmatmul.bf16.gmra.mxu0 %v3562
        %v4285 = vpop.f32.mrf.mxu0
        %v4286 = vadd.f32 %v4237, %v4285
        %v4287 = vpop.f32.mrf.mxu0
        %v4288 = vadd.f32 %v4239, %v4287
        %4289 = vmatmul.bf16.gmra.mxu0 %v3563
        %v4290 = vpop.f32.mrf.mxu0
        %v4291 = vadd.f32 %v4242, %v4290
        %v4292 = vpop.f32.mrf.mxu0
        %v4293 = vadd.f32 %v4244, %v4292
        %4294 = vmatmul.bf16.gmra.mxu0 %v3564
        %v4295 = vpop.f32.mrf.mxu0
        %v4296 = vadd.f32 %v4247, %v4295
        %v4297 = vpop.f32.mrf.mxu0
        %v4298 = vadd.f32 %v4249, %v4297
        %4299 = vmatmul.bf16.gmra.mxu0 %v3565
        %v4300 = vpop.f32.mrf.mxu0
        %v4301 = vadd.f32 %v4252, %v4300
        %v4302 = vpop.f32.mrf.mxu0
        %v4303 = vadd.f32 %v4254, %v4302
        %4304 = vmatmul.bf16.gmra.mxu0 %v3566
        %v4305 = vpop.f32.mrf.mxu0
        %v4306 = vadd.f32 %v4257, %v4305
        %v4307 = vpop.f32.mrf.mxu0
        %v4308 = vadd.f32 %v4259, %v4307
        %4309 = vmatmul.bf16.gmra.mxu0 %v3567
        %v4310 = vpop.f32.mrf.mxu0
        %v4311 = vadd.f32 %v4262, %v4310
        %v4312 = vpop.f32.mrf.mxu0
        %v4313 = vadd.f32 %v4264, %v4312
        %4314 = vmatmul.bf16.gmra.mxu0 %v3568
        %v4315 = vpop.f32.mrf.mxu0
        %v4316 = vadd.f32 %v4267, %v4315
        %v4317 = vpop.f32.mrf.mxu0
        %v4318 = vadd.f32 %v4269, %v4317
        %4319 = vdwg.mxu0
        %4320 = vmatpush.bf16.msra.mxu0 %v1620
        %4321 = vmatpush.bf16.msra.mxu0 %v1612
        %4322 = vmatpush.bf16.msra.mxu0 %v1604
        %4323 = vmatpush.bf16.msra.mxu0 %v1596
        %4324 = vmatpush.bf16.msra.mxu0 %v1588
        %4325 = vmatpush.bf16.msra.mxu0 %v1580
        %4326 = vmatpush.bf16.msra.mxu0 %v1572
        %4327 = vmatpush.bf16.msra.mxu0 %v1564
        %4328 = vmatmul.bf16.gmra.mxu0 %v3577
        %v4329 = vpop.f32.mrf.mxu0
        %v4330 = vadd.f32 %v4281, %v4329
        %v4331 = vpop.f32.mrf.mxu0
        %v4332 = vadd.f32 %v4283, %v4331
        %4333 = vmatmul.bf16.gmra.mxu0 %v3578
        %v4334 = vpop.f32.mrf.mxu0
        %v4335 = vadd.f32 %v4286, %v4334
        %v4336 = vpop.f32.mrf.mxu0
        %v4337 = vadd.f32 %v4288, %v4336
        %4338 = vmatmul.bf16.gmra.mxu0 %v3579
        %v4339 = vpop.f32.mrf.mxu0
        %v4340 = vadd.f32 %v4291, %v4339
        %v4341 = vpop.f32.mrf.mxu0
        %v4342 = vadd.f32 %v4293, %v4341
        %4343 = vmatmul.bf16.gmra.mxu0 %v3580
        %v4344 = vpop.f32.mrf.mxu0
        %v4345 = vadd.f32 %v4296, %v4344
        %v4346 = vpop.f32.mrf.mxu0
        %v4347 = vadd.f32 %v4298, %v4346
        %4348 = vmatmul.bf16.gmra.mxu0 %v3581
        %v4349 = vpop.f32.mrf.mxu0
        %v4350 = vadd.f32 %v4301, %v4349
        %v4351 = vpop.f32.mrf.mxu0
        %v4352 = vadd.f32 %v4303, %v4351
        %4353 = vmatmul.bf16.gmra.mxu0 %v3582
        %v4354 = vpop.f32.mrf.mxu0
        %v4355 = vadd.f32 %v4306, %v4354
        %v4356 = vpop.f32.mrf.mxu0
        %v4357 = vadd.f32 %v4308, %v4356
        %4358 = vmatmul.bf16.gmra.mxu0 %v3583
        %v4359 = vpop.f32.mrf.mxu0
        %v4360 = vadd.f32 %v4311, %v4359
        %v4361 = vpop.f32.mrf.mxu0
        %v4362 = vadd.f32 %v4313, %v4361
        %4363 = vmatmul.bf16.gmra.mxu0 %v3584
        %v4364 = vpop.f32.mrf.mxu0
        %v4365 = vadd.f32 %v4316, %v4364
        %v4366 = vpop.f32.mrf.mxu0
        %v4367 = vadd.f32 %v4318, %v4366
        %4368 = vdwg.mxu0
        %4369 = vmatpush.bf16.msra.mxu0 %v1429
        %4370 = vmatpush.bf16.msra.mxu0 %v1421
        %4371 = vmatpush.bf16.msra.mxu0 %v1413
        %4372 = vmatpush.bf16.msra.mxu0 %v1405
        %4373 = vmatpush.bf16.msra.mxu0 %v1397
        %4374 = vmatpush.bf16.msra.mxu0 %v1389
        %4375 = vmatpush.bf16.msra.mxu0 %v1381
        %4376 = vmatpush.bf16.msra.mxu0 %v1373
        %4377 = vmatmul.bf16.gmra.mxu0 %v3529
        %v4378 = vpop.f32.mrf.mxu0
        %v4379 = vadd.f32 0.0, %v4378
        %v4380 = vpop.f32.mrf.mxu0
        %v4381 = vadd.f32 0.0, %v4380
        %4382 = vmatmul.bf16.gmra.mxu0 %v3530
        %v4383 = vpop.f32.mrf.mxu0
        %v4384 = vadd.f32 0.0, %v4383
        %v4385 = vpop.f32.mrf.mxu0
        %v4386 = vadd.f32 0.0, %v4385
        %4387 = vmatmul.bf16.gmra.mxu0 %v3531
        %v4388 = vpop.f32.mrf.mxu0
        %v4389 = vadd.f32 0.0, %v4388
        %v4390 = vpop.f32.mrf.mxu0
        %v4391 = vadd.f32 0.0, %v4390
        %4392 = vmatmul.bf16.gmra.mxu0 %v3532
        %v4393 = vpop.f32.mrf.mxu0
        %v4394 = vadd.f32 0.0, %v4393
        %v4395 = vpop.f32.mrf.mxu0
        %v4396 = vadd.f32 0.0, %v4395
        %4397 = vmatmul.bf16.gmra.mxu0 %v3533
        %v4398 = vpop.f32.mrf.mxu0
        %v4399 = vadd.f32 0.0, %v4398
        %v4400 = vpop.f32.mrf.mxu0
        %v4401 = vadd.f32 0.0, %v4400
        %4402 = vmatmul.bf16.gmra.mxu0 %v3534
        %v4403 = vpop.f32.mrf.mxu0
        %v4404 = vadd.f32 0.0, %v4403
        %v4405 = vpop.f32.mrf.mxu0
        %v4406 = vadd.f32 0.0, %v4405
        %4407 = vmatmul.bf16.gmra.mxu0 %v3535
        %v4408 = vpop.f32.mrf.mxu0
        %v4409 = vadd.f32 0.0, %v4408
        %v4410 = vpop.f32.mrf.mxu0
        %v4411 = vadd.f32 0.0, %v4410
        %4412 = vmatmul.bf16.gmra.mxu0 %v3536
        %v4413 = vpop.f32.mrf.mxu0
        %v4414 = vadd.f32 0.0, %v4413
        %v4415 = vpop.f32.mrf.mxu0
        %v4416 = vadd.f32 0.0, %v4415
        %4417 = vdwg.mxu0
        %4418 = vmatpush.bf16.msra.mxu0 %v1493
        %4419 = vmatpush.bf16.msra.mxu0 %v1485
        %4420 = vmatpush.bf16.msra.mxu0 %v1477
        %4421 = vmatpush.bf16.msra.mxu0 %v1469
        %4422 = vmatpush.bf16.msra.mxu0 %v1461
        %4423 = vmatpush.bf16.msra.mxu0 %v1453
        %4424 = vmatpush.bf16.msra.mxu0 %v1445
        %4425 = vmatpush.bf16.msra.mxu0 %v1437
        %4426 = vmatmul.bf16.gmra.mxu0 %v3545
        %v4427 = vpop.f32.mrf.mxu0
        %v4428 = vadd.f32 %v4379, %v4427
        %v4429 = vpop.f32.mrf.mxu0
        %v4430 = vadd.f32 %v4381, %v4429
        %4431 = vmatmul.bf16.gmra.mxu0 %v3546
        %v4432 = vpop.f32.mrf.mxu0
        %v4433 = vadd.f32 %v4384, %v4432
        %v4434 = vpop.f32.mrf.mxu0
        %v4435 = vadd.f32 %v4386, %v4434
        %4436 = vmatmul.bf16.gmra.mxu0 %v3547
        %v4437 = vpop.f32.mrf.mxu0
        %v4438 = vadd.f32 %v4389, %v4437
        %v4439 = vpop.f32.mrf.mxu0
        %v4440 = vadd.f32 %v4391, %v4439
        %4441 = vmatmul.bf16.gmra.mxu0 %v3548
        %v4442 = vpop.f32.mrf.mxu0
        %v4443 = vadd.f32 %v4394, %v4442
        %v4444 = vpop.f32.mrf.mxu0
        %v4445 = vadd.f32 %v4396, %v4444
        %4446 = vmatmul.bf16.gmra.mxu0 %v3549
        %v4447 = vpop.f32.mrf.mxu0
        %v4448 = vadd.f32 %v4399, %v4447
        %v4449 = vpop.f32.mrf.mxu0
        %v4450 = vadd.f32 %v4401, %v4449
        %4451 = vmatmul.bf16.gmra.mxu0 %v3550
        %v4452 = vpop.f32.mrf.mxu0
        %v4453 = vadd.f32 %v4404, %v4452
        %v4454 = vpop.f32.mrf.mxu0
        %v4455 = vadd.f32 %v4406, %v4454
        %4456 = vmatmul.bf16.gmra.mxu0 %v3551
        %v4457 = vpop.f32.mrf.mxu0
        %v4458 = vadd.f32 %v4409, %v4457
        %v4459 = vpop.f32.mrf.mxu0
        %v4460 = vadd.f32 %v4411, %v4459
        %4461 = vmatmul.bf16.gmra.mxu0 %v3552
        %v4462 = vpop.f32.mrf.mxu0
        %v4463 = vadd.f32 %v4414, %v4462
        %v4464 = vpop.f32.mrf.mxu0
        %v4465 = vadd.f32 %v4416, %v4464
        %4466 = vdwg.mxu0
        %4467 = vmatpush.bf16.msra.mxu0 %v1557
        %4468 = vmatpush.bf16.msra.mxu0 %v1549
        %4469 = vmatpush.bf16.msra.mxu0 %v1541
        %4470 = vmatpush.bf16.msra.mxu0 %v1533
        %4471 = vmatpush.bf16.msra.mxu0 %v1525
        %4472 = vmatpush.bf16.msra.mxu0 %v1517
        %4473 = vmatpush.bf16.msra.mxu0 %v1509
        %4474 = vmatpush.bf16.msra.mxu0 %v1501
        %4475 = vmatmul.bf16.gmra.mxu0 %v3561
        %v4476 = vpop.f32.mrf.mxu0
        %v4477 = vadd.f32 %v4428, %v4476
        %v4478 = vpop.f32.mrf.mxu0
        %v4479 = vadd.f32 %v4430, %v4478
        %4480 = vmatmul.bf16.gmra.mxu0 %v3562
        %v4481 = vpop.f32.mrf.mxu0
        %v4482 = vadd.f32 %v4433, %v4481
        %v4483 = vpop.f32.mrf.mxu0
        %v4484 = vadd.f32 %v4435, %v4483
        %4485 = vmatmul.bf16.gmra.mxu0 %v3563
        %v4486 = vpop.f32.mrf.mxu0
        %v4487 = vadd.f32 %v4438, %v4486
        %v4488 = vpop.f32.mrf.mxu0
        %v4489 = vadd.f32 %v4440, %v4488
        %4490 = vmatmul.bf16.gmra.mxu0 %v3564
        %v4491 = vpop.f32.mrf.mxu0
        %v4492 = vadd.f32 %v4443, %v4491
        %v4493 = vpop.f32.mrf.mxu0
        %v4494 = vadd.f32 %v4445, %v4493
        %4495 = vmatmul.bf16.gmra.mxu0 %v3565
        %v4496 = vpop.f32.mrf.mxu0
        %v4497 = vadd.f32 %v4448, %v4496
        %v4498 = vpop.f32.mrf.mxu0
        %v4499 = vadd.f32 %v4450, %v4498
        %4500 = vmatmul.bf16.gmra.mxu0 %v3566
        %v4501 = vpop.f32.mrf.mxu0
        %v4502 = vadd.f32 %v4453, %v4501
        %v4503 = vpop.f32.mrf.mxu0
        %v4504 = vadd.f32 %v4455, %v4503
        %4505 = vmatmul.bf16.gmra.mxu0 %v3567
        %v4506 = vpop.f32.mrf.mxu0
        %v4507 = vadd.f32 %v4458, %v4506
        %v4508 = vpop.f32.mrf.mxu0
        %v4509 = vadd.f32 %v4460, %v4508
        %4510 = vmatmul.bf16.gmra.mxu0 %v3568
        %v4511 = vpop.f32.mrf.mxu0
        %v4512 = vadd.f32 %v4463, %v4511
        %v4513 = vpop.f32.mrf.mxu0
        %v4514 = vadd.f32 %v4465, %v4513
        %4515 = vdwg.mxu0
        %4516 = vmatpush.bf16.msra.mxu0 %v1621
        %4517 = vmatpush.bf16.msra.mxu0 %v1613
        %4518 = vmatpush.bf16.msra.mxu0 %v1605
        %4519 = vmatpush.bf16.msra.mxu0 %v1597
        %4520 = vmatpush.bf16.msra.mxu0 %v1589
        %4521 = vmatpush.bf16.msra.mxu0 %v1581
        %4522 = vmatpush.bf16.msra.mxu0 %v1573
        %4523 = vmatpush.bf16.msra.mxu0 %v1565
        %4524 = vmatmul.bf16.gmra.mxu0 %v3577
        %v4525 = vpop.f32.mrf.mxu0
        %v4526 = vadd.f32 %v4477, %v4525
        %v4527 = vpop.f32.mrf.mxu0
        %v4528 = vadd.f32 %v4479, %v4527
        %4529 = vmatmul.bf16.gmra.mxu0 %v3578
        %v4530 = vpop.f32.mrf.mxu0
        %v4531 = vadd.f32 %v4482, %v4530
        %v4532 = vpop.f32.mrf.mxu0
        %v4533 = vadd.f32 %v4484, %v4532
        %4534 = vmatmul.bf16.gmra.mxu0 %v3579
        %v4535 = vpop.f32.mrf.mxu0
        %v4536 = vadd.f32 %v4487, %v4535
        %v4537 = vpop.f32.mrf.mxu0
        %v4538 = vadd.f32 %v4489, %v4537
        %4539 = vmatmul.bf16.gmra.mxu0 %v3580
        %v4540 = vpop.f32.mrf.mxu0
        %v4541 = vadd.f32 %v4492, %v4540
        %v4542 = vpop.f32.mrf.mxu0
        %v4543 = vadd.f32 %v4494, %v4542
        %4544 = vmatmul.bf16.gmra.mxu0 %v3581
        %v4545 = vpop.f32.mrf.mxu0
        %v4546 = vadd.f32 %v4497, %v4545
        %v4547 = vpop.f32.mrf.mxu0
        %v4548 = vadd.f32 %v4499, %v4547
        %4549 = vmatmul.bf16.gmra.mxu0 %v3582
        %v4550 = vpop.f32.mrf.mxu0
        %v4551 = vadd.f32 %v4502, %v4550
        %v4552 = vpop.f32.mrf.mxu0
        %v4553 = vadd.f32 %v4504, %v4552
        %4554 = vmatmul.bf16.gmra.mxu0 %v3583
        %v4555 = vpop.f32.mrf.mxu0
        %v4556 = vadd.f32 %v4507, %v4555
        %v4557 = vpop.f32.mrf.mxu0
        %v4558 = vadd.f32 %v4509, %v4557
        %4559 = vmatmul.bf16.gmra.mxu0 %v3584
        %v4560 = vpop.f32.mrf.mxu0
        %v4561 = vadd.f32 %v4512, %v4560
        %v4562 = vpop.f32.mrf.mxu0
        %v4563 = vadd.f32 %v4514, %v4562
        %4564 = vdwg.mxu0
        %4565 = vmatpush.bf16.msra.mxu0 %v1430
        %4566 = vmatpush.bf16.msra.mxu0 %v1422
        %4567 = vmatpush.bf16.msra.mxu0 %v1414
        %4568 = vmatpush.bf16.msra.mxu0 %v1406
        %4569 = vmatpush.bf16.msra.mxu0 %v1398
        %4570 = vmatpush.bf16.msra.mxu0 %v1390
        %4571 = vmatpush.bf16.msra.mxu0 %v1382
        %4572 = vmatpush.bf16.msra.mxu0 %v1374
        %4573 = vmatmul.bf16.gmra.mxu0 %v3529
        %v4574 = vpop.f32.mrf.mxu0
        %v4575 = vadd.f32 0.0, %v4574
        %v4576 = vpop.f32.mrf.mxu0
        %v4577 = vadd.f32 0.0, %v4576
        %4578 = vmatmul.bf16.gmra.mxu0 %v3530
        %v4579 = vpop.f32.mrf.mxu0
        %v4580 = vadd.f32 0.0, %v4579
        %v4581 = vpop.f32.mrf.mxu0
        %v4582 = vadd.f32 0.0, %v4581
        %4583 = vmatmul.bf16.gmra.mxu0 %v3531
        %v4584 = vpop.f32.mrf.mxu0
        %v4585 = vadd.f32 0.0, %v4584
        %v4586 = vpop.f32.mrf.mxu0
        %v4587 = vadd.f32 0.0, %v4586
        %4588 = vmatmul.bf16.gmra.mxu0 %v3532
        %v4589 = vpop.f32.mrf.mxu0
        %v4590 = vadd.f32 0.0, %v4589
        %v4591 = vpop.f32.mrf.mxu0
        %v4592 = vadd.f32 0.0, %v4591
        %4593 = vmatmul.bf16.gmra.mxu0 %v3533
        %v4594 = vpop.f32.mrf.mxu0
        %v4595 = vadd.f32 0.0, %v4594
        %v4596 = vpop.f32.mrf.mxu0
        %v4597 = vadd.f32 0.0, %v4596
        %4598 = vmatmul.bf16.gmra.mxu0 %v3534
        %v4599 = vpop.f32.mrf.mxu0
        %v4600 = vadd.f32 0.0, %v4599
        %v4601 = vpop.f32.mrf.mxu0
        %v4602 = vadd.f32 0.0, %v4601
        %4603 = vmatmul.bf16.gmra.mxu0 %v3535
        %v4604 = vpop.f32.mrf.mxu0
        %v4605 = vadd.f32 0.0, %v4604
        %v4606 = vpop.f32.mrf.mxu0
        %v4607 = vadd.f32 0.0, %v4606
        %4608 = vmatmul.bf16.gmra.mxu0 %v3536
        %v4609 = vpop.f32.mrf.mxu0
        %v4610 = vadd.f32 0.0, %v4609
        %v4611 = vpop.f32.mrf.mxu0
        %v4612 = vadd.f32 0.0, %v4611
        %4613 = vdwg.mxu0
        %4614 = vmatpush.bf16.msra.mxu0 %v1494
        %4615 = vmatpush.bf16.msra.mxu0 %v1486
        %4616 = vmatpush.bf16.msra.mxu0 %v1478
        %4617 = vmatpush.bf16.msra.mxu0 %v1470
        %4618 = vmatpush.bf16.msra.mxu0 %v1462
        %4619 = vmatpush.bf16.msra.mxu0 %v1454
        %4620 = vmatpush.bf16.msra.mxu0 %v1446
        %4621 = vmatpush.bf16.msra.mxu0 %v1438
        %4622 = vmatmul.bf16.gmra.mxu0 %v3545
        %v4623 = vpop.f32.mrf.mxu0
        %v4624 = vadd.f32 %v4575, %v4623
        %v4625 = vpop.f32.mrf.mxu0
        %v4626 = vadd.f32 %v4577, %v4625
        %4627 = vmatmul.bf16.gmra.mxu0 %v3546
        %v4628 = vpop.f32.mrf.mxu0
        %v4629 = vadd.f32 %v4580, %v4628
        %v4630 = vpop.f32.mrf.mxu0
        %v4631 = vadd.f32 %v4582, %v4630
        %4632 = vmatmul.bf16.gmra.mxu0 %v3547
        %v4633 = vpop.f32.mrf.mxu0
        %v4634 = vadd.f32 %v4585, %v4633
        %v4635 = vpop.f32.mrf.mxu0
        %v4636 = vadd.f32 %v4587, %v4635
        %4637 = vmatmul.bf16.gmra.mxu0 %v3548
        %v4638 = vpop.f32.mrf.mxu0
        %v4639 = vadd.f32 %v4590, %v4638
        %v4640 = vpop.f32.mrf.mxu0
        %v4641 = vadd.f32 %v4592, %v4640
        %4642 = vmatmul.bf16.gmra.mxu0 %v3549
        %v4643 = vpop.f32.mrf.mxu0
        %v4644 = vadd.f32 %v4595, %v4643
        %v4645 = vpop.f32.mrf.mxu0
        %v4646 = vadd.f32 %v4597, %v4645
        %4647 = vmatmul.bf16.gmra.mxu0 %v3550
        %v4648 = vpop.f32.mrf.mxu0
        %v4649 = vadd.f32 %v4600, %v4648
        %v4650 = vpop.f32.mrf.mxu0
        %v4651 = vadd.f32 %v4602, %v4650
        %4652 = vmatmul.bf16.gmra.mxu0 %v3551
        %v4653 = vpop.f32.mrf.mxu0
        %v4654 = vadd.f32 %v4605, %v4653
        %v4655 = vpop.f32.mrf.mxu0
        %v4656 = vadd.f32 %v4607, %v4655
        %4657 = vmatmul.bf16.gmra.mxu0 %v3552
        %v4658 = vpop.f32.mrf.mxu0
        %v4659 = vadd.f32 %v4610, %v4658
        %v4660 = vpop.f32.mrf.mxu0
        %v4661 = vadd.f32 %v4612, %v4660
        %4662 = vdwg.mxu0
        %4663 = vmatpush.bf16.msra.mxu0 %v1558
        %4664 = vmatpush.bf16.msra.mxu0 %v1550
        %4665 = vmatpush.bf16.msra.mxu0 %v1542
        %4666 = vmatpush.bf16.msra.mxu0 %v1534
        %4667 = vmatpush.bf16.msra.mxu0 %v1526
        %4668 = vmatpush.bf16.msra.mxu0 %v1518
        %4669 = vmatpush.bf16.msra.mxu0 %v1510
        %4670 = vmatpush.bf16.msra.mxu0 %v1502
        %4671 = vmatmul.bf16.gmra.mxu0 %v3561
        %v4672 = vpop.f32.mrf.mxu0
        %v4673 = vadd.f32 %v4624, %v4672
        %v4674 = vpop.f32.mrf.mxu0
        %v4675 = vadd.f32 %v4626, %v4674
        %4676 = vmatmul.bf16.gmra.mxu0 %v3562
        %v4677 = vpop.f32.mrf.mxu0
        %v4678 = vadd.f32 %v4629, %v4677
        %v4679 = vpop.f32.mrf.mxu0
        %v4680 = vadd.f32 %v4631, %v4679
        %4681 = vmatmul.bf16.gmra.mxu0 %v3563
        %v4682 = vpop.f32.mrf.mxu0
        %v4683 = vadd.f32 %v4634, %v4682
        %v4684 = vpop.f32.mrf.mxu0
        %v4685 = vadd.f32 %v4636, %v4684
        %4686 = vmatmul.bf16.gmra.mxu0 %v3564
        %v4687 = vpop.f32.mrf.mxu0
        %v4688 = vadd.f32 %v4639, %v4687
        %v4689 = vpop.f32.mrf.mxu0
        %v4690 = vadd.f32 %v4641, %v4689
        %4691 = vmatmul.bf16.gmra.mxu0 %v3565
        %v4692 = vpop.f32.mrf.mxu0
        %v4693 = vadd.f32 %v4644, %v4692
        %v4694 = vpop.f32.mrf.mxu0
        %v4695 = vadd.f32 %v4646, %v4694
        %4696 = vmatmul.bf16.gmra.mxu0 %v3566
        %v4697 = vpop.f32.mrf.mxu0
        %v4698 = vadd.f32 %v4649, %v4697
        %v4699 = vpop.f32.mrf.mxu0
        %v4700 = vadd.f32 %v4651, %v4699
        %4701 = vmatmul.bf16.gmra.mxu0 %v3567
        %v4702 = vpop.f32.mrf.mxu0
        %v4703 = vadd.f32 %v4654, %v4702
        %v4704 = vpop.f32.mrf.mxu0
        %v4705 = vadd.f32 %v4656, %v4704
        %4706 = vmatmul.bf16.gmra.mxu0 %v3568
        %v4707 = vpop.f32.mrf.mxu0
        %v4708 = vadd.f32 %v4659, %v4707
        %v4709 = vpop.f32.mrf.mxu0
        %v4710 = vadd.f32 %v4661, %v4709
        %4711 = vdwg.mxu0
        %4712 = vmatpush.bf16.msra.mxu0 %v1622
        %4713 = vmatpush.bf16.msra.mxu0 %v1614
        %4714 = vmatpush.bf16.msra.mxu0 %v1606
        %4715 = vmatpush.bf16.msra.mxu0 %v1598
        %4716 = vmatpush.bf16.msra.mxu0 %v1590
        %4717 = vmatpush.bf16.msra.mxu0 %v1582
        %4718 = vmatpush.bf16.msra.mxu0 %v1574
        %4719 = vmatpush.bf16.msra.mxu0 %v1566
        %4720 = vmatmul.bf16.gmra.mxu0 %v3577
        %v4721 = vpop.f32.mrf.mxu0
        %v4722 = vadd.f32 %v4673, %v4721
        %v4723 = vpop.f32.mrf.mxu0
        %v4724 = vadd.f32 %v4675, %v4723
        %4725 = vmatmul.bf16.gmra.mxu0 %v3578
        %v4726 = vpop.f32.mrf.mxu0
        %v4727 = vadd.f32 %v4678, %v4726
        %v4728 = vpop.f32.mrf.mxu0
        %v4729 = vadd.f32 %v4680, %v4728
        %4730 = vmatmul.bf16.gmra.mxu0 %v3579
        %v4731 = vpop.f32.mrf.mxu0
        %v4732 = vadd.f32 %v4683, %v4731
        %v4733 = vpop.f32.mrf.mxu0
        %v4734 = vadd.f32 %v4685, %v4733
        %4735 = vmatmul.bf16.gmra.mxu0 %v3580
        %v4736 = vpop.f32.mrf.mxu0
        %v4737 = vadd.f32 %v4688, %v4736
        %v4738 = vpop.f32.mrf.mxu0
        %v4739 = vadd.f32 %v4690, %v4738
        %4740 = vmatmul.bf16.gmra.mxu0 %v3581
        %v4741 = vpop.f32.mrf.mxu0
        %v4742 = vadd.f32 %v4693, %v4741
        %v4743 = vpop.f32.mrf.mxu0
        %v4744 = vadd.f32 %v4695, %v4743
        %4745 = vmatmul.bf16.gmra.mxu0 %v3582
        %v4746 = vpop.f32.mrf.mxu0
        %v4747 = vadd.f32 %v4698, %v4746
        %v4748 = vpop.f32.mrf.mxu0
        %v4749 = vadd.f32 %v4700, %v4748
        %4750 = vmatmul.bf16.gmra.mxu0 %v3583
        %v4751 = vpop.f32.mrf.mxu0
        %v4752 = vadd.f32 %v4703, %v4751
        %v4753 = vpop.f32.mrf.mxu0
        %v4754 = vadd.f32 %v4705, %v4753
        %4755 = vmatmul.bf16.gmra.mxu0 %v3584
        %v4756 = vpop.f32.mrf.mxu0
        %v4757 = vadd.f32 %v4708, %v4756
        %v4758 = vpop.f32.mrf.mxu0
        %v4759 = vadd.f32 %v4710, %v4758
        %4760 = vdwg.mxu0
        %4761 = vmatpush.bf16.msra.mxu0 %v1431
        %4762 = vmatpush.bf16.msra.mxu0 %v1423
        %4763 = vmatpush.bf16.msra.mxu0 %v1415
        %4764 = vmatpush.bf16.msra.mxu0 %v1407
        %4765 = vmatpush.bf16.msra.mxu0 %v1399
        %4766 = vmatpush.bf16.msra.mxu0 %v1391
        %4767 = vmatpush.bf16.msra.mxu0 %v1383
        %4768 = vmatpush.bf16.msra.mxu0 %v1375
        %4769 = vmatmul.bf16.gmra.mxu0 %v3529
        %v4770 = vpop.f32.mrf.mxu0
        %v4771 = vadd.f32 0.0, %v4770
        %v4772 = vpop.f32.mrf.mxu0
        %v4773 = vadd.f32 0.0, %v4772
        %4774 = vmatmul.bf16.gmra.mxu0 %v3530
        %v4775 = vpop.f32.mrf.mxu0
        %v4776 = vadd.f32 0.0, %v4775
        %v4777 = vpop.f32.mrf.mxu0
        %v4778 = vadd.f32 0.0, %v4777
        %4779 = vmatmul.bf16.gmra.mxu0 %v3531
        %v4780 = vpop.f32.mrf.mxu0
        %v4781 = vadd.f32 0.0, %v4780
        %v4782 = vpop.f32.mrf.mxu0
        %v4783 = vadd.f32 0.0, %v4782
        %4784 = vmatmul.bf16.gmra.mxu0 %v3532
        %v4785 = vpop.f32.mrf.mxu0
        %v4786 = vadd.f32 0.0, %v4785
        %v4787 = vpop.f32.mrf.mxu0
        %v4788 = vadd.f32 0.0, %v4787
        %4789 = vmatmul.bf16.gmra.mxu0 %v3533
        %v4790 = vpop.f32.mrf.mxu0
        %v4791 = vadd.f32 0.0, %v4790
        %v4792 = vpop.f32.mrf.mxu0
        %v4793 = vadd.f32 0.0, %v4792
        %4794 = vmatmul.bf16.gmra.mxu0 %v3534
        %v4795 = vpop.f32.mrf.mxu0
        %v4796 = vadd.f32 0.0, %v4795
        %v4797 = vpop.f32.mrf.mxu0
        %v4798 = vadd.f32 0.0, %v4797
        %4799 = vmatmul.bf16.gmra.mxu0 %v3535
        %v4800 = vpop.f32.mrf.mxu0
        %v4801 = vadd.f32 0.0, %v4800
        %v4802 = vpop.f32.mrf.mxu0
        %v4803 = vadd.f32 0.0, %v4802
        %4804 = vmatmul.bf16.gmra.mxu0 %v3536
        %v4805 = vpop.f32.mrf.mxu0
        %v4806 = vadd.f32 0.0, %v4805
        %v4807 = vpop.f32.mrf.mxu0
        %v4808 = vadd.f32 0.0, %v4807
        %4809 = vdwg.mxu0
        %4810 = vmatpush.bf16.msra.mxu0 %v1495
        %4811 = vmatpush.bf16.msra.mxu0 %v1487
        %4812 = vmatpush.bf16.msra.mxu0 %v1479
        %4813 = vmatpush.bf16.msra.mxu0 %v1471
        %4814 = vmatpush.bf16.msra.mxu0 %v1463
        %4815 = vmatpush.bf16.msra.mxu0 %v1455
        %4816 = vmatpush.bf16.msra.mxu0 %v1447
        %4817 = vmatpush.bf16.msra.mxu0 %v1439
        %4818 = vmatmul.bf16.gmra.mxu0 %v3545
        %v4819 = vpop.f32.mrf.mxu0
        %v4820 = vadd.f32 %v4771, %v4819
        %v4821 = vpop.f32.mrf.mxu0
        %v4822 = vadd.f32 %v4773, %v4821
        %4823 = vmatmul.bf16.gmra.mxu0 %v3546
        %v4824 = vpop.f32.mrf.mxu0
        %v4825 = vadd.f32 %v4776, %v4824
        %v4826 = vpop.f32.mrf.mxu0
        %v4827 = vadd.f32 %v4778, %v4826
        %4828 = vmatmul.bf16.gmra.mxu0 %v3547
        %v4829 = vpop.f32.mrf.mxu0
        %v4830 = vadd.f32 %v4781, %v4829
        %v4831 = vpop.f32.mrf.mxu0
        %v4832 = vadd.f32 %v4783, %v4831
        %4833 = vmatmul.bf16.gmra.mxu0 %v3548
        %v4834 = vpop.f32.mrf.mxu0
        %v4835 = vadd.f32 %v4786, %v4834
        %v4836 = vpop.f32.mrf.mxu0
        %v4837 = vadd.f32 %v4788, %v4836
        %4838 = vmatmul.bf16.gmra.mxu0 %v3549
        %v4839 = vpop.f32.mrf.mxu0
        %v4840 = vadd.f32 %v4791, %v4839
        %v4841 = vpop.f32.mrf.mxu0
        %v4842 = vadd.f32 %v4793, %v4841
        %4843 = vmatmul.bf16.gmra.mxu0 %v3550
        %v4844 = vpop.f32.mrf.mxu0
        %v4845 = vadd.f32 %v4796, %v4844
        %v4846 = vpop.f32.mrf.mxu0
        %v4847 = vadd.f32 %v4798, %v4846
        %4848 = vmatmul.bf16.gmra.mxu0 %v3551
        %v4849 = vpop.f32.mrf.mxu0
        %v4850 = vadd.f32 %v4801, %v4849
        %v4851 = vpop.f32.mrf.mxu0
        %v4852 = vadd.f32 %v4803, %v4851
        %4853 = vmatmul.bf16.gmra.mxu0 %v3552
        %v4854 = vpop.f32.mrf.mxu0
        %v4855 = vadd.f32 %v4806, %v4854
        %v4856 = vpop.f32.mrf.mxu0
        %v4857 = vadd.f32 %v4808, %v4856
        %4858 = vdwg.mxu0
        %4859 = vmatpush.bf16.msra.mxu0 %v1559
        %4860 = vmatpush.bf16.msra.mxu0 %v1551
        %4861 = vmatpush.bf16.msra.mxu0 %v1543
        %4862 = vmatpush.bf16.msra.mxu0 %v1535
        %4863 = vmatpush.bf16.msra.mxu0 %v1527
        %4864 = vmatpush.bf16.msra.mxu0 %v1519
        %4865 = vmatpush.bf16.msra.mxu0 %v1511
        %4866 = vmatpush.bf16.msra.mxu0 %v1503
        %4867 = vmatmul.bf16.gmra.mxu0 %v3561
        %v4868 = vpop.f32.mrf.mxu0
        %v4869 = vadd.f32 %v4820, %v4868
        %v4870 = vpop.f32.mrf.mxu0
        %v4871 = vadd.f32 %v4822, %v4870
        %4872 = vmatmul.bf16.gmra.mxu0 %v3562
        %v4873 = vpop.f32.mrf.mxu0
        %v4874 = vadd.f32 %v4825, %v4873
        %v4875 = vpop.f32.mrf.mxu0
        %v4876 = vadd.f32 %v4827, %v4875
        %4877 = vmatmul.bf16.gmra.mxu0 %v3563
        %v4878 = vpop.f32.mrf.mxu0
        %v4879 = vadd.f32 %v4830, %v4878
        %v4880 = vpop.f32.mrf.mxu0
        %v4881 = vadd.f32 %v4832, %v4880
        %4882 = vmatmul.bf16.gmra.mxu0 %v3564
        %v4883 = vpop.f32.mrf.mxu0
        %v4884 = vadd.f32 %v4835, %v4883
        %v4885 = vpop.f32.mrf.mxu0
        %v4886 = vadd.f32 %v4837, %v4885
        %4887 = vmatmul.bf16.gmra.mxu0 %v3565
        %v4888 = vpop.f32.mrf.mxu0
        %v4889 = vadd.f32 %v4840, %v4888
        %v4890 = vpop.f32.mrf.mxu0
        %v4891 = vadd.f32 %v4842, %v4890
        %4892 = vmatmul.bf16.gmra.mxu0 %v3566
        %v4893 = vpop.f32.mrf.mxu0
        %v4894 = vadd.f32 %v4845, %v4893
        %v4895 = vpop.f32.mrf.mxu0
        %v4896 = vadd.f32 %v4847, %v4895
        %4897 = vmatmul.bf16.gmra.mxu0 %v3567
        %v4898 = vpop.f32.mrf.mxu0
        %v4899 = vadd.f32 %v4850, %v4898
        %v4900 = vpop.f32.mrf.mxu0
        %v4901 = vadd.f32 %v4852, %v4900
        %4902 = vmatmul.bf16.gmra.mxu0 %v3568
        %v4903 = vpop.f32.mrf.mxu0
        %v4904 = vadd.f32 %v4855, %v4903
        %v4905 = vpop.f32.mrf.mxu0
        %v4906 = vadd.f32 %v4857, %v4905
        %4907 = vdwg.mxu0
        %4908 = vmatpush.bf16.msra.mxu0 %v1623
        %4909 = vmatpush.bf16.msra.mxu0 %v1615
        %4910 = vmatpush.bf16.msra.mxu0 %v1607
        %4911 = vmatpush.bf16.msra.mxu0 %v1599
        %4912 = vmatpush.bf16.msra.mxu0 %v1591
        %4913 = vmatpush.bf16.msra.mxu0 %v1583
        %4914 = vmatpush.bf16.msra.mxu0 %v1575
        %4915 = vmatpush.bf16.msra.mxu0 %v1567
        %4916 = vmatmul.bf16.gmra.mxu0 %v3577
        %v4917 = vpop.f32.mrf.mxu0
        %v4918 = vadd.f32 %v4869, %v4917
        %v4919 = vpop.f32.mrf.mxu0
        %v4920 = vadd.f32 %v4871, %v4919
        %4921 = vmatmul.bf16.gmra.mxu0 %v3578
        %v4922 = vpop.f32.mrf.mxu0
        %v4923 = vadd.f32 %v4874, %v4922
        %v4924 = vpop.f32.mrf.mxu0
        %v4925 = vadd.f32 %v4876, %v4924
        %4926 = vmatmul.bf16.gmra.mxu0 %v3579
        %v4927 = vpop.f32.mrf.mxu0
        %v4928 = vadd.f32 %v4879, %v4927
        %v4929 = vpop.f32.mrf.mxu0
        %v4930 = vadd.f32 %v4881, %v4929
        %4931 = vmatmul.bf16.gmra.mxu0 %v3580
        %v4932 = vpop.f32.mrf.mxu0
        %v4933 = vadd.f32 %v4884, %v4932
        %v4934 = vpop.f32.mrf.mxu0
        %v4935 = vadd.f32 %v4886, %v4934
        %4936 = vmatmul.bf16.gmra.mxu0 %v3581
        %v4937 = vpop.f32.mrf.mxu0
        %v4938 = vadd.f32 %v4889, %v4937
        %v4939 = vpop.f32.mrf.mxu0
        %v4940 = vadd.f32 %v4891, %v4939
        %4941 = vmatmul.bf16.gmra.mxu0 %v3582
        %v4942 = vpop.f32.mrf.mxu0
        %v4943 = vadd.f32 %v4894, %v4942
        %v4944 = vpop.f32.mrf.mxu0
        %v4945 = vadd.f32 %v4896, %v4944
        %4946 = vmatmul.bf16.gmra.mxu0 %v3583
        %v4947 = vpop.f32.mrf.mxu0
        %v4948 = vadd.f32 %v4899, %v4947
        %v4949 = vpop.f32.mrf.mxu0
        %v4950 = vadd.f32 %v4901, %v4949
        %4951 = vmatmul.bf16.gmra.mxu0 %v3584
        %v4952 = vpop.f32.mrf.mxu0
        %v4953 = vadd.f32 %v4904, %v4952
        %v4954 = vpop.f32.mrf.mxu0
        %v4955 = vadd.f32 %v4906, %v4954
        %4956 = vdwg.mxu0
        %4957 = vmatpush.bf16.msra.mxu0 %v1432
        %4958 = vmatpush.bf16.msra.mxu0 %v1424
        %4959 = vmatpush.bf16.msra.mxu0 %v1416
        %4960 = vmatpush.bf16.msra.mxu0 %v1408
        %4961 = vmatpush.bf16.msra.mxu0 %v1400
        %4962 = vmatpush.bf16.msra.mxu0 %v1392
        %4963 = vmatpush.bf16.msra.mxu0 %v1384
        %4964 = vmatpush.bf16.msra.mxu0 %v1376
        %4965 = vmatmul.bf16.gmra.mxu0 %v3529
        %v4966 = vpop.f32.mrf.mxu0
        %v4967 = vadd.f32 0.0, %v4966
        %v4968 = vpop.f32.mrf.mxu0
        %v4969 = vadd.f32 0.0, %v4968
        %4970 = vmatmul.bf16.gmra.mxu0 %v3530
        %v4971 = vpop.f32.mrf.mxu0
        %v4972 = vadd.f32 0.0, %v4971
        %v4973 = vpop.f32.mrf.mxu0
        %v4974 = vadd.f32 0.0, %v4973
        %4975 = vmatmul.bf16.gmra.mxu0 %v3531
        %v4976 = vpop.f32.mrf.mxu0
        %v4977 = vadd.f32 0.0, %v4976
        %v4978 = vpop.f32.mrf.mxu0
        %v4979 = vadd.f32 0.0, %v4978
        %4980 = vmatmul.bf16.gmra.mxu0 %v3532
        %v4981 = vpop.f32.mrf.mxu0
        %v4982 = vadd.f32 0.0, %v4981
        %v4983 = vpop.f32.mrf.mxu0
        %v4984 = vadd.f32 0.0, %v4983
        %4985 = vmatmul.bf16.gmra.mxu0 %v3533
        %v4986 = vpop.f32.mrf.mxu0
        %v4987 = vadd.f32 0.0, %v4986
        %v4988 = vpop.f32.mrf.mxu0
        %v4989 = vadd.f32 0.0, %v4988
        %4990 = vmatmul.bf16.gmra.mxu0 %v3534
        %v4991 = vpop.f32.mrf.mxu0
        %v4992 = vadd.f32 0.0, %v4991
        %v4993 = vpop.f32.mrf.mxu0
        %v4994 = vadd.f32 0.0, %v4993
        %4995 = vmatmul.bf16.gmra.mxu0 %v3535
        %v4996 = vpop.f32.mrf.mxu0
        %v4997 = vadd.f32 0.0, %v4996
        %v4998 = vpop.f32.mrf.mxu0
        %v4999 = vadd.f32 0.0, %v4998
        %5000 = vmatmul.bf16.gmra.mxu0 %v3536
        %v5001 = vpop.f32.mrf.mxu0
        %v5002 = vadd.f32 0.0, %v5001
        %v5003 = vpop.f32.mrf.mxu0
        %v5004 = vadd.f32 0.0, %v5003
        %5005 = vdwg.mxu0
        %5006 = vmatpush.bf16.msra.mxu0 %v1496
        %5007 = vmatpush.bf16.msra.mxu0 %v1488
        %5008 = vmatpush.bf16.msra.mxu0 %v1480
        %5009 = vmatpush.bf16.msra.mxu0 %v1472
        %5010 = vmatpush.bf16.msra.mxu0 %v1464
        %5011 = vmatpush.bf16.msra.mxu0 %v1456
        %5012 = vmatpush.bf16.msra.mxu0 %v1448
        %5013 = vmatpush.bf16.msra.mxu0 %v1440
        %5014 = vmatmul.bf16.gmra.mxu0 %v3545
        %v5015 = vpop.f32.mrf.mxu0
        %v5016 = vadd.f32 %v4967, %v5015
        %v5017 = vpop.f32.mrf.mxu0
        %v5018 = vadd.f32 %v4969, %v5017
        %5019 = vmatmul.bf16.gmra.mxu0 %v3546
        %v5020 = vpop.f32.mrf.mxu0
        %v5021 = vadd.f32 %v4972, %v5020
        %v5022 = vpop.f32.mrf.mxu0
        %v5023 = vadd.f32 %v4974, %v5022
        %5024 = vmatmul.bf16.gmra.mxu0 %v3547
        %v5025 = vpop.f32.mrf.mxu0
        %v5026 = vadd.f32 %v4977, %v5025
        %v5027 = vpop.f32.mrf.mxu0
        %v5028 = vadd.f32 %v4979, %v5027
        %5029 = vmatmul.bf16.gmra.mxu0 %v3548
        %v5030 = vpop.f32.mrf.mxu0
        %v5031 = vadd.f32 %v4982, %v5030
        %v5032 = vpop.f32.mrf.mxu0
        %v5033 = vadd.f32 %v4984, %v5032
        %5034 = vmatmul.bf16.gmra.mxu0 %v3549
        %v5035 = vpop.f32.mrf.mxu0
        %v5036 = vadd.f32 %v4987, %v5035
        %v5037 = vpop.f32.mrf.mxu0
        %v5038 = vadd.f32 %v4989, %v5037
        %5039 = vmatmul.bf16.gmra.mxu0 %v3550
        %v5040 = vpop.f32.mrf.mxu0
        %v5041 = vadd.f32 %v4992, %v5040
        %v5042 = vpop.f32.mrf.mxu0
        %v5043 = vadd.f32 %v4994, %v5042
        %5044 = vmatmul.bf16.gmra.mxu0 %v3551
        %v5045 = vpop.f32.mrf.mxu0
        %v5046 = vadd.f32 %v4997, %v5045
        %v5047 = vpop.f32.mrf.mxu0
        %v5048 = vadd.f32 %v4999, %v5047
        %5049 = vmatmul.bf16.gmra.mxu0 %v3552
        %v5050 = vpop.f32.mrf.mxu0
        %v5051 = vadd.f32 %v5002, %v5050
        %v5052 = vpop.f32.mrf.mxu0
        %v5053 = vadd.f32 %v5004, %v5052
        %5054 = vdwg.mxu0
        %5055 = vmatpush.bf16.msra.mxu0 %v1560
        %5056 = vmatpush.bf16.msra.mxu0 %v1552
        %5057 = vmatpush.bf16.msra.mxu0 %v1544
        %5058 = vmatpush.bf16.msra.mxu0 %v1536
        %5059 = vmatpush.bf16.msra.mxu0 %v1528
        %5060 = vmatpush.bf16.msra.mxu0 %v1520
        %5061 = vmatpush.bf16.msra.mxu0 %v1512
        %5062 = vmatpush.bf16.msra.mxu0 %v1504
        %5063 = vmatmul.bf16.gmra.mxu0 %v3561
        %v5064 = vpop.f32.mrf.mxu0
        %v5065 = vadd.f32 %v5016, %v5064
        %v5066 = vpop.f32.mrf.mxu0
        %v5067 = vadd.f32 %v5018, %v5066
        %5068 = vmatmul.bf16.gmra.mxu0 %v3562
        %v5069 = vpop.f32.mrf.mxu0
        %v5070 = vadd.f32 %v5021, %v5069
        %v5071 = vpop.f32.mrf.mxu0
        %v5072 = vadd.f32 %v5023, %v5071
        %5073 = vmatmul.bf16.gmra.mxu0 %v3563
        %v5074 = vpop.f32.mrf.mxu0
        %v5075 = vadd.f32 %v5026, %v5074
        %v5076 = vpop.f32.mrf.mxu0
        %v5077 = vadd.f32 %v5028, %v5076
        %5078 = vmatmul.bf16.gmra.mxu0 %v3564
        %v5079 = vpop.f32.mrf.mxu0
        %v5080 = vadd.f32 %v5031, %v5079
        %v5081 = vpop.f32.mrf.mxu0
        %v5082 = vadd.f32 %v5033, %v5081
        %5083 = vmatmul.bf16.gmra.mxu0 %v3565
        %v5084 = vpop.f32.mrf.mxu0
        %v5085 = vadd.f32 %v5036, %v5084
        %v5086 = vpop.f32.mrf.mxu0
        %v5087 = vadd.f32 %v5038, %v5086
        %5088 = vmatmul.bf16.gmra.mxu0 %v3566
        %v5089 = vpop.f32.mrf.mxu0
        %v5090 = vadd.f32 %v5041, %v5089
        %v5091 = vpop.f32.mrf.mxu0
        %v5092 = vadd.f32 %v5043, %v5091
        %5093 = vmatmul.bf16.gmra.mxu0 %v3567
        %v5094 = vpop.f32.mrf.mxu0
        %v5095 = vadd.f32 %v5046, %v5094
        %v5096 = vpop.f32.mrf.mxu0
        %v5097 = vadd.f32 %v5048, %v5096
        %5098 = vmatmul.bf16.gmra.mxu0 %v3568
        %v5099 = vpop.f32.mrf.mxu0
        %v5100 = vadd.f32 %v5051, %v5099
        %v5101 = vpop.f32.mrf.mxu0
        %v5102 = vadd.f32 %v5053, %v5101
        %5103 = vdwg.mxu0
        %5104 = vmatpush.bf16.msra.mxu0 %v1624
        %5105 = vmatpush.bf16.msra.mxu0 %v1616
        %5106 = vmatpush.bf16.msra.mxu0 %v1608
        %5107 = vmatpush.bf16.msra.mxu0 %v1600
        %5108 = vmatpush.bf16.msra.mxu0 %v1592
        %5109 = vmatpush.bf16.msra.mxu0 %v1584
        %5110 = vmatpush.bf16.msra.mxu0 %v1576
        %5111 = vmatpush.bf16.msra.mxu0 %v1568
        %5112 = vmatmul.bf16.gmra.mxu0 %v3577
        %v5113 = vpop.f32.mrf.mxu0
        %v5114 = vadd.f32 %v5065, %v5113
        %v5115 = vpop.f32.mrf.mxu0
        %v5116 = vadd.f32 %v5067, %v5115
        %5117 = vmatmul.bf16.gmra.mxu0 %v3578
        %v5118 = vpop.f32.mrf.mxu0
        %v5119 = vadd.f32 %v5070, %v5118
        %v5120 = vpop.f32.mrf.mxu0
        %v5121 = vadd.f32 %v5072, %v5120
        %5122 = vmatmul.bf16.gmra.mxu0 %v3579
        %v5123 = vpop.f32.mrf.mxu0
        %v5124 = vadd.f32 %v5075, %v5123
        %v5125 = vpop.f32.mrf.mxu0
        %v5126 = vadd.f32 %v5077, %v5125
        %5127 = vmatmul.bf16.gmra.mxu0 %v3580
        %v5128 = vpop.f32.mrf.mxu0
        %v5129 = vadd.f32 %v5080, %v5128
        %v5130 = vpop.f32.mrf.mxu0
        %v5131 = vadd.f32 %v5082, %v5130
        %5132 = vmatmul.bf16.gmra.mxu0 %v3581
        %v5133 = vpop.f32.mrf.mxu0
        %v5134 = vadd.f32 %v5085, %v5133
        %v5135 = vpop.f32.mrf.mxu0
        %v5136 = vadd.f32 %v5087, %v5135
        %5137 = vmatmul.bf16.gmra.mxu0 %v3582
        %v5138 = vpop.f32.mrf.mxu0
        %v5139 = vadd.f32 %v5090, %v5138
        %v5140 = vpop.f32.mrf.mxu0
        %v5141 = vadd.f32 %v5092, %v5140
        %5142 = vmatmul.bf16.gmra.mxu0 %v3583
        %v5143 = vpop.f32.mrf.mxu0
        %v5144 = vadd.f32 %v5095, %v5143
        %v5145 = vpop.f32.mrf.mxu0
        %v5146 = vadd.f32 %v5097, %v5145
        %5147 = vmatmul.bf16.gmra.mxu0 %v3584
        %v5148 = vpop.f32.mrf.mxu0
        %v5149 = vadd.f32 %v5100, %v5148
        %v5150 = vpop.f32.mrf.mxu0
        %v5151 = vadd.f32 %v5102, %v5150
        %5152 = vdwg.mxu0
        %p5153 = scmp.eq.s32.totalorder %s27, 0
        // Predicated region
        $region37: #{tpu_custom_call.1} parent=27 // pred_check
          %p5154 = pneg %p5153
        $region38: #{tpu_custom_call.1} parent=27 // pred_check_branch
          %5156 = sbr.rel (%p5154) target = $region40
        $region39: #{tpu_custom_call.1} parent=27 // pred_region
          %5157 = vst [vmem:[%s212] sm:$0xff] %v3742
          %5158 = vst [vmem:[%s212 + $0x8] sm:$0xff] %v3938
          %5159 = vst [vmem:[%s212 + $0x10] sm:$0xff] %v4134
          %5160 = vst [vmem:[%s212 + $0x18] sm:$0xff] %v4330
          %5161 = vst [vmem:[%s212 + $0x20] sm:$0xff] %v4526
          %5162 = vst [vmem:[%s212 + $0x28] sm:$0xff] %v4722
          %5163 = vst [vmem:[%s212 + $0x30] sm:$0xff] %v4918
          %5164 = vst [vmem:[%s212 + $0x38] sm:$0xff] %v5114
          %5165 = vst [vmem:[%s212 + $0x40] sm:$0xff] %v3744
          %5166 = vst [vmem:[%s212 + $0x48] sm:$0xff] %v3940
          %5167 = vst [vmem:[%s212 + $0x50] sm:$0xff] %v4136
          %5168 = vst [vmem:[%s212 + $0x58] sm:$0xff] %v4332
          %5169 = vst [vmem:[%s212 + $0x60] sm:$0xff] %v4528
          %5170 = vst [vmem:[%s212 + $0x68] sm:$0xff] %v4724
          %5171 = vst [vmem:[%s212 + $0x70] sm:$0xff] %v4920
          %5172 = vst [vmem:[%s212 + $0x78] sm:$0xff] %v5116
          %5173 = vst [vmem:[%s212 + $0x80] sm:$0xff] %v3747
          %5174 = vst [vmem:[%s212 + $0x88] sm:$0xff] %v3943
          %5175 = vst [vmem:[%s212 + $0x90] sm:$0xff] %v4139
          %5176 = vst [vmem:[%s212 + $0x98] sm:$0xff] %v4335
          %5177 = vst [vmem:[%s212 + $0xa0] sm:$0xff] %v4531
          %5178 = vst [vmem:[%s212 + $0xa8] sm:$0xff] %v4727
          %5179 = vst [vmem:[%s212 + $0xb0] sm:$0xff] %v4923
          %5180 = vst [vmem:[%s212 + $0xb8] sm:$0xff] %v5119
          %5181 = vst [vmem:[%s212 + $0xc0] sm:$0xff] %v3749
          %5182 = vst [vmem:[%s212 + $0xc8] sm:$0xff] %v3945
          %5183 = vst [vmem:[%s212 + $0xd0] sm:$0xff] %v4141
          %5184 = vst [vmem:[%s212 + $0xd8] sm:$0xff] %v4337
          %5185 = vst [vmem:[%s212 + $0xe0] sm:$0xff] %v4533
          %5186 = vst [vmem:[%s212 + $0xe8] sm:$0xff] %v4729
          %5187 = vst [vmem:[%s212 + $0xf0] sm:$0xff] %v4925
          %5188 = vst [vmem:[%s212 + $0xf8] sm:$0xff] %v5121
          %5189 = vst [vmem:[%s212 + $0x100] sm:$0xff] %v3752
          %5190 = vst [vmem:[%s212 + $0x108] sm:$0xff] %v3948
          %5191 = vst [vmem:[%s212 + $0x110] sm:$0xff] %v4144
          %5192 = vst [vmem:[%s212 + $0x118] sm:$0xff] %v4340
          %5193 = vst [vmem:[%s212 + $0x120] sm:$0xff] %v4536
          %5194 = vst [vmem:[%s212 + $0x128] sm:$0xff] %v4732
          %5195 = vst [vmem:[%s212 + $0x130] sm:$0xff] %v4928
          %5196 = vst [vmem:[%s212 + $0x138] sm:$0xff] %v5124
          %5197 = vst [vmem:[%s212 + $0x140] sm:$0xff] %v3754
          %5198 = vst [vmem:[%s212 + $0x148] sm:$0xff] %v3950
          %5199 = vst [vmem:[%s212 + $0x150] sm:$0xff] %v4146
          %5200 = vst [vmem:[%s212 + $0x158] sm:$0xff] %v4342
          %5201 = vst [vmem:[%s212 + $0x160] sm:$0xff] %v4538
          %5202 = vst [vmem:[%s212 + $0x168] sm:$0xff] %v4734
          %5203 = vst [vmem:[%s212 + $0x170] sm:$0xff] %v4930
          %5204 = vst [vmem:[%s212 + $0x178] sm:$0xff] %v5126
          %5205 = vst [vmem:[%s212 + $0x180] sm:$0xff] %v3757
          %5206 = vst [vmem:[%s212 + $0x188] sm:$0xff] %v3953
          %5207 = vst [vmem:[%s212 + $0x190] sm:$0xff] %v4149
          %5208 = vst [vmem:[%s212 + $0x198] sm:$0xff] %v4345
          %5209 = vst [vmem:[%s212 + $0x1a0] sm:$0xff] %v4541
          %5210 = vst [vmem:[%s212 + $0x1a8] sm:$0xff] %v4737
          %5211 = vst [vmem:[%s212 + $0x1b0] sm:$0xff] %v4933
          %5212 = vst [vmem:[%s212 + $0x1b8] sm:$0xff] %v5129
          %5213 = vst [vmem:[%s212 + $0x1c0] sm:$0xff] %v3759
          %5214 = vst [vmem:[%s212 + $0x1c8] sm:$0xff] %v3955
          %5215 = vst [vmem:[%s212 + $0x1d0] sm:$0xff] %v4151
          %5216 = vst [vmem:[%s212 + $0x1d8] sm:$0xff] %v4347
          %5217 = vst [vmem:[%s212 + $0x1e0] sm:$0xff] %v4543
          %5218 = vst [vmem:[%s212 + $0x1e8] sm:$0xff] %v4739
          %5219 = vst [vmem:[%s212 + $0x1f0] sm:$0xff] %v4935
          %5220 = vst [vmem:[%s212 + $0x1f8] sm:$0xff] %v5131
          %5221 = vst [vmem:[%s212 + $0x200] sm:$0xff] %v3762
          %5222 = vst [vmem:[%s212 + $0x208] sm:$0xff] %v3958
          %5223 = vst [vmem:[%s212 + $0x210] sm:$0xff] %v4154
          %5224 = vst [vmem:[%s212 + $0x218] sm:$0xff] %v4350
          %5225 = vst [vmem:[%s212 + $0x220] sm:$0xff] %v4546
          %5226 = vst [vmem:[%s212 + $0x228] sm:$0xff] %v4742
          %5227 = vst [vmem:[%s212 + $0x230] sm:$0xff] %v4938
          %5228 = vst [vmem:[%s212 + $0x238] sm:$0xff] %v5134
          %5229 = vst [vmem:[%s212 + $0x240] sm:$0xff] %v3764
          %5230 = vst [vmem:[%s212 + $0x248] sm:$0xff] %v3960
          %5231 = vst [vmem:[%s212 + $0x250] sm:$0xff] %v4156
          %5232 = vst [vmem:[%s212 + $0x258] sm:$0xff] %v4352
          %5233 = vst [vmem:[%s212 + $0x260] sm:$0xff] %v4548
          %5234 = vst [vmem:[%s212 + $0x268] sm:$0xff] %v4744
          %5235 = vst [vmem:[%s212 + $0x270] sm:$0xff] %v4940
          %5236 = vst [vmem:[%s212 + $0x278] sm:$0xff] %v5136
          %5237 = vst [vmem:[%s212 + $0x280] sm:$0xff] %v3767
          %5238 = vst [vmem:[%s212 + $0x288] sm:$0xff] %v3963
          %5239 = vst [vmem:[%s212 + $0x290] sm:$0xff] %v4159
          %5240 = vst [vmem:[%s212 + $0x298] sm:$0xff] %v4355
          %5241 = vst [vmem:[%s212 + $0x2a0] sm:$0xff] %v4551
          %5242 = vst [vmem:[%s212 + $0x2a8] sm:$0xff] %v4747
          %5243 = vst [vmem:[%s212 + $0x2b0] sm:$0xff] %v4943
          %5244 = vst [vmem:[%s212 + $0x2b8] sm:$0xff] %v5139
          %5245 = vst [vmem:[%s212 + $0x2c0] sm:$0xff] %v3769
          %5246 = vst [vmem:[%s212 + $0x2c8] sm:$0xff] %v3965
          %5247 = vst [vmem:[%s212 + $0x2d0] sm:$0xff] %v4161
          %5248 = vst [vmem:[%s212 + $0x2d8] sm:$0xff] %v4357
          %5249 = vst [vmem:[%s212 + $0x2e0] sm:$0xff] %v4553
          %5250 = vst [vmem:[%s212 + $0x2e8] sm:$0xff] %v4749
          %5251 = vst [vmem:[%s212 + $0x2f0] sm:$0xff] %v4945
          %5252 = vst [vmem:[%s212 + $0x2f8] sm:$0xff] %v5141
          %5253 = vst [vmem:[%s212 + $0x300] sm:$0xff] %v3772
          %5254 = vst [vmem:[%s212 + $0x308] sm:$0xff] %v3968
          %5255 = vst [vmem:[%s212 + $0x310] sm:$0xff] %v4164
          %5256 = vst [vmem:[%s212 + $0x318] sm:$0xff] %v4360
          %5257 = vst [vmem:[%s212 + $0x320] sm:$0xff] %v4556
          %5258 = vst [vmem:[%s212 + $0x328] sm:$0xff] %v4752
          %5259 = vst [vmem:[%s212 + $0x330] sm:$0xff] %v4948
          %5260 = vst [vmem:[%s212 + $0x338] sm:$0xff] %v5144
          %5261 = vst [vmem:[%s212 + $0x340] sm:$0xff] %v3774
          %5262 = vst [vmem:[%s212 + $0x348] sm:$0xff] %v3970
          %5263 = vst [vmem:[%s212 + $0x350] sm:$0xff] %v4166
          %5264 = vst [vmem:[%s212 + $0x358] sm:$0xff] %v4362
          %5265 = vst [vmem:[%s212 + $0x360] sm:$0xff] %v4558
          %5266 = vst [vmem:[%s212 + $0x368] sm:$0xff] %v4754
          %5267 = vst [vmem:[%s212 + $0x370] sm:$0xff] %v4950
          %5268 = vst [vmem:[%s212 + $0x378] sm:$0xff] %v5146
          %5269 = vst [vmem:[%s212 + $0x380] sm:$0xff] %v3777
          %5270 = vst [vmem:[%s212 + $0x388] sm:$0xff] %v3973
          %5271 = vst [vmem:[%s212 + $0x390] sm:$0xff] %v4169
          %5272 = vst [vmem:[%s212 + $0x398] sm:$0xff] %v4365
          %5273 = vst [vmem:[%s212 + $0x3a0] sm:$0xff] %v4561
          %5274 = vst [vmem:[%s212 + $0x3a8] sm:$0xff] %v4757
          %5275 = vst [vmem:[%s212 + $0x3b0] sm:$0xff] %v4953
          %5276 = vst [vmem:[%s212 + $0x3b8] sm:$0xff] %v5149
          %5277 = vst [vmem:[%s212 + $0x3c0] sm:$0xff] %v3779
          %5278 = vst [vmem:[%s212 + $0x3c8] sm:$0xff] %v3975
          %5279 = vst [vmem:[%s212 + $0x3d0] sm:$0xff] %v4171
          %5280 = vst [vmem:[%s212 + $0x3d8] sm:$0xff] %v4367
          %5281 = vst [vmem:[%s212 + $0x3e0] sm:$0xff] %v4563
          %5282 = vst [vmem:[%s212 + $0x3e8] sm:$0xff] %v4759
          %5283 = vst [vmem:[%s212 + $0x3f0] sm:$0xff] %v4955
          %5284 = vst [vmem:[%s212 + $0x3f8] sm:$0xff] %v5151
        $region40: #{tpu_custom_call.1} parent=27 // pred_fallthru
          _
        %p5285 = scmp.gt.s32.totalorder %s27, 0
        // Predicated region
        $region41: #{tpu_custom_call.1} parent=27 // pred_check
          %p5286 = pneg %p5285
        $region42: #{tpu_custom_call.1} parent=27 // pred_check_branch
          %5288 = sbr.rel (%p5286) target = $region44
        $region43: #{tpu_custom_call.1} parent=27 // pred_region
          %v5289 = vld [vmem:[%s212] sm:$0xff]
          %v5290 = vld [vmem:[%s212 + $0x8] sm:$0xff]
          %v5291 = vld [vmem:[%s212 + $0x10] sm:$0xff]
          %v5292 = vld [vmem:[%s212 + $0x18] sm:$0xff]
          %v5293 = vld [vmem:[%s212 + $0x20] sm:$0xff]
          %v5294 = vld [vmem:[%s212 + $0x28] sm:$0xff]
          %v5295 = vld [vmem:[%s212 + $0x30] sm:$0xff]
          %v5296 = vld [vmem:[%s212 + $0x38] sm:$0xff]
          %v5297 = vld [vmem:[%s212 + $0x40] sm:$0xff]
          %v5298 = vld [vmem:[%s212 + $0x48] sm:$0xff]
          %v5299 = vld [vmem:[%s212 + $0x50] sm:$0xff]
          %v5300 = vld [vmem:[%s212 + $0x58] sm:$0xff]
          %v5301 = vld [vmem:[%s212 + $0x60] sm:$0xff]
          %v5302 = vld [vmem:[%s212 + $0x68] sm:$0xff]
          %v5303 = vld [vmem:[%s212 + $0x70] sm:$0xff]
          %v5304 = vld [vmem:[%s212 + $0x78] sm:$0xff]
          %v5305 = vld [vmem:[%s212 + $0x80] sm:$0xff]
          %v5306 = vld [vmem:[%s212 + $0x88] sm:$0xff]
          %v5307 = vld [vmem:[%s212 + $0x90] sm:$0xff]
          %v5308 = vld [vmem:[%s212 + $0x98] sm:$0xff]
          %v5309 = vld [vmem:[%s212 + $0xa0] sm:$0xff]
          %v5310 = vld [vmem:[%s212 + $0xa8] sm:$0xff]
          %v5311 = vld [vmem:[%s212 + $0xb0] sm:$0xff]
          %v5312 = vld [vmem:[%s212 + $0xb8] sm:$0xff]
          %v5313 = vld [vmem:[%s212 + $0xc0] sm:$0xff]
          %v5314 = vld [vmem:[%s212 + $0xc8] sm:$0xff]
          %v5315 = vld [vmem:[%s212 + $0xd0] sm:$0xff]
          %v5316 = vld [vmem:[%s212 + $0xd8] sm:$0xff]
          %v5317 = vld [vmem:[%s212 + $0xe0] sm:$0xff]
          %v5318 = vld [vmem:[%s212 + $0xe8] sm:$0xff]
          %v5319 = vld [vmem:[%s212 + $0xf0] sm:$0xff]
          %v5320 = vld [vmem:[%s212 + $0xf8] sm:$0xff]
          %v5321 = vld [vmem:[%s212 + $0x100] sm:$0xff]
          %v5322 = vld [vmem:[%s212 + $0x108] sm:$0xff]
          %v5323 = vld [vmem:[%s212 + $0x110] sm:$0xff]
          %v5324 = vld [vmem:[%s212 + $0x118] sm:$0xff]
          %v5325 = vld [vmem:[%s212 + $0x120] sm:$0xff]
          %v5326 = vld [vmem:[%s212 + $0x128] sm:$0xff]
          %v5327 = vld [vmem:[%s212 + $0x130] sm:$0xff]
          %v5328 = vld [vmem:[%s212 + $0x138] sm:$0xff]
          %v5329 = vld [vmem:[%s212 + $0x140] sm:$0xff]
          %v5330 = vld [vmem:[%s212 + $0x148] sm:$0xff]
          %v5331 = vld [vmem:[%s212 + $0x150] sm:$0xff]
          %v5332 = vld [vmem:[%s212 + $0x158] sm:$0xff]
          %v5333 = vld [vmem:[%s212 + $0x160] sm:$0xff]
          %v5334 = vld [vmem:[%s212 + $0x168] sm:$0xff]
          %v5335 = vld [vmem:[%s212 + $0x170] sm:$0xff]
          %v5336 = vld [vmem:[%s212 + $0x178] sm:$0xff]
          %v5337 = vld [vmem:[%s212 + $0x180] sm:$0xff]
          %v5338 = vld [vmem:[%s212 + $0x188] sm:$0xff]
          %v5339 = vld [vmem:[%s212 + $0x190] sm:$0xff]
          %v5340 = vld [vmem:[%s212 + $0x198] sm:$0xff]
          %v5341 = vld [vmem:[%s212 + $0x1a0] sm:$0xff]
          %v5342 = vld [vmem:[%s212 + $0x1a8] sm:$0xff]
          %v5343 = vld [vmem:[%s212 + $0x1b0] sm:$0xff]
          %v5344 = vld [vmem:[%s212 + $0x1b8] sm:$0xff]
          %v5345 = vld [vmem:[%s212 + $0x1c0] sm:$0xff]
          %v5346 = vld [vmem:[%s212 + $0x1c8] sm:$0xff]
          %v5347 = vld [vmem:[%s212 + $0x1d0] sm:$0xff]
          %v5348 = vld [vmem:[%s212 + $0x1d8] sm:$0xff]
          %v5349 = vld [vmem:[%s212 + $0x1e0] sm:$0xff]
          %v5350 = vld [vmem:[%s212 + $0x1e8] sm:$0xff]
          %v5351 = vld [vmem:[%s212 + $0x1f0] sm:$0xff]
          %v5352 = vld [vmem:[%s212 + $0x1f8] sm:$0xff]
          %v5353 = vld [vmem:[%s212 + $0x200] sm:$0xff]
          %v5354 = vld [vmem:[%s212 + $0x208] sm:$0xff]
          %v5355 = vld [vmem:[%s212 + $0x210] sm:$0xff]
          %v5356 = vld [vmem:[%s212 + $0x218] sm:$0xff]
          %v5357 = vld [vmem:[%s212 + $0x220] sm:$0xff]
          %v5358 = vld [vmem:[%s212 + $0x228] sm:$0xff]
          %v5359 = vld [vmem:[%s212 + $0x230] sm:$0xff]
          %v5360 = vld [vmem:[%s212 + $0x238] sm:$0xff]
          %v5361 = vld [vmem:[%s212 + $0x240] sm:$0xff]
          %v5362 = vld [vmem:[%s212 + $0x248] sm:$0xff]
          %v5363 = vld [vmem:[%s212 + $0x250] sm:$0xff]
          %v5364 = vld [vmem:[%s212 + $0x258] sm:$0xff]
          %v5365 = vld [vmem:[%s212 + $0x260] sm:$0xff]
          %v5366 = vld [vmem:[%s212 + $0x268] sm:$0xff]
          %v5367 = vld [vmem:[%s212 + $0x270] sm:$0xff]
          %v5368 = vld [vmem:[%s212 + $0x278] sm:$0xff]
          %v5369 = vld [vmem:[%s212 + $0x280] sm:$0xff]
          %v5370 = vld [vmem:[%s212 + $0x288] sm:$0xff]
          %v5371 = vld [vmem:[%s212 + $0x290] sm:$0xff]
          %v5372 = vld [vmem:[%s212 + $0x298] sm:$0xff]
          %v5373 = vld [vmem:[%s212 + $0x2a0] sm:$0xff]
          %v5374 = vld [vmem:[%s212 + $0x2a8] sm:$0xff]
          %v5375 = vld [vmem:[%s212 + $0x2b0] sm:$0xff]
          %v5376 = vld [vmem:[%s212 + $0x2b8] sm:$0xff]
          %v5377 = vld [vmem:[%s212 + $0x2c0] sm:$0xff]
          %v5378 = vld [vmem:[%s212 + $0x2c8] sm:$0xff]
          %v5379 = vld [vmem:[%s212 + $0x2d0] sm:$0xff]
          %v5380 = vld [vmem:[%s212 + $0x2d8] sm:$0xff]
          %v5381 = vld [vmem:[%s212 + $0x2e0] sm:$0xff]
          %v5382 = vld [vmem:[%s212 + $0x2e8] sm:$0xff]
          %v5383 = vld [vmem:[%s212 + $0x2f0] sm:$0xff]
          %v5384 = vld [vmem:[%s212 + $0x2f8] sm:$0xff]
          %v5385 = vld [vmem:[%s212 + $0x300] sm:$0xff]
          %v5386 = vld [vmem:[%s212 + $0x308] sm:$0xff]
          %v5387 = vld [vmem:[%s212 + $0x310] sm:$0xff]
          %v5388 = vld [vmem:[%s212 + $0x318] sm:$0xff]
          %v5389 = vld [vmem:[%s212 + $0x320] sm:$0xff]
          %v5390 = vld [vmem:[%s212 + $0x328] sm:$0xff]
          %v5391 = vld [vmem:[%s212 + $0x330] sm:$0xff]
          %v5392 = vld [vmem:[%s212 + $0x338] sm:$0xff]
          %v5393 = vld [vmem:[%s212 + $0x340] sm:$0xff]
          %v5394 = vld [vmem:[%s212 + $0x348] sm:$0xff]
          %v5395 = vld [vmem:[%s212 + $0x350] sm:$0xff]
          %v5396 = vld [vmem:[%s212 + $0x358] sm:$0xff]
          %v5397 = vld [vmem:[%s212 + $0x360] sm:$0xff]
          %v5398 = vld [vmem:[%s212 + $0x368] sm:$0xff]
          %v5399 = vld [vmem:[%s212 + $0x370] sm:$0xff]
          %v5400 = vld [vmem:[%s212 + $0x378] sm:$0xff]
          %v5401 = vld [vmem:[%s212 + $0x380] sm:$0xff]
          %v5402 = vld [vmem:[%s212 + $0x388] sm:$0xff]
          %v5403 = vld [vmem:[%s212 + $0x390] sm:$0xff]
          %v5404 = vld [vmem:[%s212 + $0x398] sm:$0xff]
          %v5405 = vld [vmem:[%s212 + $0x3a0] sm:$0xff]
          %v5406 = vld [vmem:[%s212 + $0x3a8] sm:$0xff]
          %v5407 = vld [vmem:[%s212 + $0x3b0] sm:$0xff]
          %v5408 = vld [vmem:[%s212 + $0x3b8] sm:$0xff]
          %v5409 = vld [vmem:[%s212 + $0x3c0] sm:$0xff]
          %v5410 = vld [vmem:[%s212 + $0x3c8] sm:$0xff]
          %v5411 = vld [vmem:[%s212 + $0x3d0] sm:$0xff]
          %v5412 = vld [vmem:[%s212 + $0x3d8] sm:$0xff]
          %v5413 = vld [vmem:[%s212 + $0x3e0] sm:$0xff]
          %v5414 = vld [vmem:[%s212 + $0x3e8] sm:$0xff]
          %v5415 = vld [vmem:[%s212 + $0x3f0] sm:$0xff]
          %v5416 = vld [vmem:[%s212 + $0x3f8] sm:$0xff]
          %v5417 = vadd.f32 %v5289, %v3742
          %v5418 = vadd.f32 %v5290, %v3938
          %v5419 = vadd.f32 %v5291, %v4134
          %v5420 = vadd.f32 %v5292, %v4330
          %v5421 = vadd.f32 %v5293, %v4526
          %v5422 = vadd.f32 %v5294, %v4722
          %v5423 = vadd.f32 %v5295, %v4918
          %v5424 = vadd.f32 %v5296, %v5114
          %v5425 = vadd.f32 %v5297, %v3744
          %v5426 = vadd.f32 %v5298, %v3940
          %v5427 = vadd.f32 %v5299, %v4136
          %v5428 = vadd.f32 %v5300, %v4332
          %v5429 = vadd.f32 %v5301, %v4528
          %v5430 = vadd.f32 %v5302, %v4724
          %v5431 = vadd.f32 %v5303, %v4920
          %v5432 = vadd.f32 %v5304, %v5116
          %v5433 = vadd.f32 %v5305, %v3747
          %v5434 = vadd.f32 %v5306, %v3943
          %v5435 = vadd.f32 %v5307, %v4139
          %v5436 = vadd.f32 %v5308, %v4335
          %v5437 = vadd.f32 %v5309, %v4531
          %v5438 = vadd.f32 %v5310, %v4727
          %v5439 = vadd.f32 %v5311, %v4923
          %v5440 = vadd.f32 %v5312, %v5119
          %v5441 = vadd.f32 %v5313, %v3749
          %v5442 = vadd.f32 %v5314, %v3945
          %v5443 = vadd.f32 %v5315, %v4141
          %v5444 = vadd.f32 %v5316, %v4337
          %v5445 = vadd.f32 %v5317, %v4533
          %v5446 = vadd.f32 %v5318, %v4729
          %v5447 = vadd.f32 %v5319, %v4925
          %v5448 = vadd.f32 %v5320, %v5121
          %v5449 = vadd.f32 %v5321, %v3752
          %v5450 = vadd.f32 %v5322, %v3948
          %v5451 = vadd.f32 %v5323, %v4144
          %v5452 = vadd.f32 %v5324, %v4340
          %v5453 = vadd.f32 %v5325, %v4536
          %v5454 = vadd.f32 %v5326, %v4732
          %v5455 = vadd.f32 %v5327, %v4928
          %v5456 = vadd.f32 %v5328, %v5124
          %v5457 = vadd.f32 %v5329, %v3754
          %v5458 = vadd.f32 %v5330, %v3950
          %v5459 = vadd.f32 %v5331, %v4146
          %v5460 = vadd.f32 %v5332, %v4342
          %v5461 = vadd.f32 %v5333, %v4538
          %v5462 = vadd.f32 %v5334, %v4734
          %v5463 = vadd.f32 %v5335, %v4930
          %v5464 = vadd.f32 %v5336, %v5126
          %v5465 = vadd.f32 %v5337, %v3757
          %v5466 = vadd.f32 %v5338, %v3953
          %v5467 = vadd.f32 %v5339, %v4149
          %v5468 = vadd.f32 %v5340, %v4345
          %v5469 = vadd.f32 %v5341, %v4541
          %v5470 = vadd.f32 %v5342, %v4737
          %v5471 = vadd.f32 %v5343, %v4933
          %v5472 = vadd.f32 %v5344, %v5129
          %v5473 = vadd.f32 %v5345, %v3759
          %v5474 = vadd.f32 %v5346, %v3955
          %v5475 = vadd.f32 %v5347, %v4151
          %v5476 = vadd.f32 %v5348, %v4347
          %v5477 = vadd.f32 %v5349, %v4543
          %v5478 = vadd.f32 %v5350, %v4739
          %v5479 = vadd.f32 %v5351, %v4935
          %v5480 = vadd.f32 %v5352, %v5131
          %v5481 = vadd.f32 %v5353, %v3762
          %v5482 = vadd.f32 %v5354, %v3958
          %v5483 = vadd.f32 %v5355, %v4154
          %v5484 = vadd.f32 %v5356, %v4350
          %v5485 = vadd.f32 %v5357, %v4546
          %v5486 = vadd.f32 %v5358, %v4742
          %v5487 = vadd.f32 %v5359, %v4938
          %v5488 = vadd.f32 %v5360, %v5134
          %v5489 = vadd.f32 %v5361, %v3764
          %v5490 = vadd.f32 %v5362, %v3960
          %v5491 = vadd.f32 %v5363, %v4156
          %v5492 = vadd.f32 %v5364, %v4352
          %v5493 = vadd.f32 %v5365, %v4548
          %v5494 = vadd.f32 %v5366, %v4744
          %v5495 = vadd.f32 %v5367, %v4940
          %v5496 = vadd.f32 %v5368, %v5136
          %v5497 = vadd.f32 %v5369, %v3767
          %v5498 = vadd.f32 %v5370, %v3963
          %v5499 = vadd.f32 %v5371, %v4159
          %v5500 = vadd.f32 %v5372, %v4355
          %v5501 = vadd.f32 %v5373, %v4551
          %v5502 = vadd.f32 %v5374, %v4747
          %v5503 = vadd.f32 %v5375, %v4943
          %v5504 = vadd.f32 %v5376, %v5139
          %v5505 = vadd.f32 %v5377, %v3769
          %v5506 = vadd.f32 %v5378, %v3965
          %v5507 = vadd.f32 %v5379, %v4161
          %v5508 = vadd.f32 %v5380, %v4357
          %v5509 = vadd.f32 %v5381, %v4553
          %v5510 = vadd.f32 %v5382, %v4749
          %v5511 = vadd.f32 %v5383, %v4945
          %v5512 = vadd.f32 %v5384, %v5141
          %v5513 = vadd.f32 %v5385, %v3772
          %v5514 = vadd.f32 %v5386, %v3968
          %v5515 = vadd.f32 %v5387, %v4164
          %v5516 = vadd.f32 %v5388, %v4360
          %v5517 = vadd.f32 %v5389, %v4556
          %v5518 = vadd.f32 %v5390, %v4752
          %v5519 = vadd.f32 %v5391, %v4948
          %v5520 = vadd.f32 %v5392, %v5144
          %v5521 = vadd.f32 %v5393, %v3774
          %v5522 = vadd.f32 %v5394, %v3970
          %v5523 = vadd.f32 %v5395, %v4166
          %v5524 = vadd.f32 %v5396, %v4362
          %v5525 = vadd.f32 %v5397, %v4558
          %v5526 = vadd.f32 %v5398, %v4754
          %v5527 = vadd.f32 %v5399, %v4950
          %v5528 = vadd.f32 %v5400, %v5146
          %v5529 = vadd.f32 %v5401, %v3777
          %v5530 = vadd.f32 %v5402, %v3973
          %v5531 = vadd.f32 %v5403, %v4169
          %v5532 = vadd.f32 %v5404, %v4365
          %v5533 = vadd.f32 %v5405, %v4561
          %v5534 = vadd.f32 %v5406, %v4757
          %v5535 = vadd.f32 %v5407, %v4953
          %v5536 = vadd.f32 %v5408, %v5149
          %v5537 = vadd.f32 %v5409, %v3779
          %v5538 = vadd.f32 %v5410, %v3975
          %v5539 = vadd.f32 %v5411, %v4171
          %v5540 = vadd.f32 %v5412, %v4367
          %v5541 = vadd.f32 %v5413, %v4563
          %v5542 = vadd.f32 %v5414, %v4759
          %v5543 = vadd.f32 %v5415, %v4955
          %v5544 = vadd.f32 %v5416, %v5151
          %5545 = vst [vmem:[%s212] sm:$0xff] %v5417
          %5546 = vst [vmem:[%s212 + $0x8] sm:$0xff] %v5418
          %5547 = vst [vmem:[%s212 + $0x10] sm:$0xff] %v5419
          %5548 = vst [vmem:[%s212 + $0x18] sm:$0xff] %v5420
          %5549 = vst [vmem:[%s212 + $0x20] sm:$0xff] %v5421
          %5550 = vst [vmem:[%s212 + $0x28] sm:$0xff] %v5422
          %5551 = vst [vmem:[%s212 + $0x30] sm:$0xff] %v5423
          %5552 = vst [vmem:[%s212 + $0x38] sm:$0xff] %v5424
          %5553 = vst [vmem:[%s212 + $0x40] sm:$0xff] %v5425
          %5554 = vst [vmem:[%s212 + $0x48] sm:$0xff] %v5426
          %5555 = vst [vmem:[%s212 + $0x50] sm:$0xff] %v5427
          %5556 = vst [vmem:[%s212 + $0x58] sm:$0xff] %v5428
          %5557 = vst [vmem:[%s212 + $0x60] sm:$0xff] %v5429
          %5558 = vst [vmem:[%s212 + $0x68] sm:$0xff] %v5430
          %5559 = vst [vmem:[%s212 + $0x70] sm:$0xff] %v5431
          %5560 = vst [vmem:[%s212 + $0x78] sm:$0xff] %v5432
          %5561 = vst [vmem:[%s212 + $0x80] sm:$0xff] %v5433
          %5562 = vst [vmem:[%s212 + $0x88] sm:$0xff] %v5434
          %5563 = vst [vmem:[%s212 + $0x90] sm:$0xff] %v5435
          %5564 = vst [vmem:[%s212 + $0x98] sm:$0xff] %v5436
          %5565 = vst [vmem:[%s212 + $0xa0] sm:$0xff] %v5437
          %5566 = vst [vmem:[%s212 + $0xa8] sm:$0xff] %v5438
          %5567 = vst [vmem:[%s212 + $0xb0] sm:$0xff] %v5439
          %5568 = vst [vmem:[%s212 + $0xb8] sm:$0xff] %v5440
          %5569 = vst [vmem:[%s212 + $0xc0] sm:$0xff] %v5441
          %5570 = vst [vmem:[%s212 + $0xc8] sm:$0xff] %v5442
          %5571 = vst [vmem:[%s212 + $0xd0] sm:$0xff] %v5443
          %5572 = vst [vmem:[%s212 + $0xd8] sm:$0xff] %v5444
          %5573 = vst [vmem:[%s212 + $0xe0] sm:$0xff] %v5445
          %5574 = vst [vmem:[%s212 + $0xe8] sm:$0xff] %v5446
          %5575 = vst [vmem:[%s212 + $0xf0] sm:$0xff] %v5447
          %5576 = vst [vmem:[%s212 + $0xf8] sm:$0xff] %v5448
          %5577 = vst [vmem:[%s212 + $0x100] sm:$0xff] %v5449
          %5578 = vst [vmem:[%s212 + $0x108] sm:$0xff] %v5450
          %5579 = vst [vmem:[%s212 + $0x110] sm:$0xff] %v5451
          %5580 = vst [vmem:[%s212 + $0x118] sm:$0xff] %v5452
          %5581 = vst [vmem:[%s212 + $0x120] sm:$0xff] %v5453
          %5582 = vst [vmem:[%s212 + $0x128] sm:$0xff] %v5454
          %5583 = vst [vmem:[%s212 + $0x130] sm:$0xff] %v5455
          %5584 = vst [vmem:[%s212 + $0x138] sm:$0xff] %v5456
          %5585 = vst [vmem:[%s212 + $0x140] sm:$0xff] %v5457
          %5586 = vst [vmem:[%s212 + $0x148] sm:$0xff] %v5458
          %5587 = vst [vmem:[%s212 + $0x150] sm:$0xff] %v5459
          %5588 = vst [vmem:[%s212 + $0x158] sm:$0xff] %v5460
          %5589 = vst [vmem:[%s212 + $0x160] sm:$0xff] %v5461
          %5590 = vst [vmem:[%s212 + $0x168] sm:$0xff] %v5462
          %5591 = vst [vmem:[%s212 + $0x170] sm:$0xff] %v5463
          %5592 = vst [vmem:[%s212 + $0x178] sm:$0xff] %v5464
          %5593 = vst [vmem:[%s212 + $0x180] sm:$0xff] %v5465
          %5594 = vst [vmem:[%s212 + $0x188] sm:$0xff] %v5466
          %5595 = vst [vmem:[%s212 + $0x190] sm:$0xff] %v5467
          %5596 = vst [vmem:[%s212 + $0x198] sm:$0xff] %v5468
          %5597 = vst [vmem:[%s212 + $0x1a0] sm:$0xff] %v5469
          %5598 = vst [vmem:[%s212 + $0x1a8] sm:$0xff] %v5470
          %5599 = vst [vmem:[%s212 + $0x1b0] sm:$0xff] %v5471
          %5600 = vst [vmem:[%s212 + $0x1b8] sm:$0xff] %v5472
          %5601 = vst [vmem:[%s212 + $0x1c0] sm:$0xff] %v5473
          %5602 = vst [vmem:[%s212 + $0x1c8] sm:$0xff] %v5474
          %5603 = vst [vmem:[%s212 + $0x1d0] sm:$0xff] %v5475
          %5604 = vst [vmem:[%s212 + $0x1d8] sm:$0xff] %v5476
          %5605 = vst [vmem:[%s212 + $0x1e0] sm:$0xff] %v5477
          %5606 = vst [vmem:[%s212 + $0x1e8] sm:$0xff] %v5478
          %5607 = vst [vmem:[%s212 + $0x1f0] sm:$0xff] %v5479
          %5608 = vst [vmem:[%s212 + $0x1f8] sm:$0xff] %v5480
          %5609 = vst [vmem:[%s212 + $0x200] sm:$0xff] %v5481
          %5610 = vst [vmem:[%s212 + $0x208] sm:$0xff] %v5482
          %5611 = vst [vmem:[%s212 + $0x210] sm:$0xff] %v5483
          %5612 = vst [vmem:[%s212 + $0x218] sm:$0xff] %v5484
          %5613 = vst [vmem:[%s212 + $0x220] sm:$0xff] %v5485
          %5614 = vst [vmem:[%s212 + $0x228] sm:$0xff] %v5486
          %5615 = vst [vmem:[%s212 + $0x230] sm:$0xff] %v5487
          %5616 = vst [vmem:[%s212 + $0x238] sm:$0xff] %v5488
          %5617 = vst [vmem:[%s212 + $0x240] sm:$0xff] %v5489
          %5618 = vst [vmem:[%s212 + $0x248] sm:$0xff] %v5490
          %5619 = vst [vmem:[%s212 + $0x250] sm:$0xff] %v5491
          %5620 = vst [vmem:[%s212 + $0x258] sm:$0xff] %v5492
          %5621 = vst [vmem:[%s212 + $0x260] sm:$0xff] %v5493
          %5622 = vst [vmem:[%s212 + $0x268] sm:$0xff] %v5494
          %5623 = vst [vmem:[%s212 + $0x270] sm:$0xff] %v5495
          %5624 = vst [vmem:[%s212 + $0x278] sm:$0xff] %v5496
          %5625 = vst [vmem:[%s212 + $0x280] sm:$0xff] %v5497
          %5626 = vst [vmem:[%s212 + $0x288] sm:$0xff] %v5498
          %5627 = vst [vmem:[%s212 + $0x290] sm:$0xff] %v5499
          %5628 = vst [vmem:[%s212 + $0x298] sm:$0xff] %v5500
          %5629 = vst [vmem:[%s212 + $0x2a0] sm:$0xff] %v5501
          %5630 = vst [vmem:[%s212 + $0x2a8] sm:$0xff] %v5502
          %5631 = vst [vmem:[%s212 + $0x2b0] sm:$0xff] %v5503
          %5632 = vst [vmem:[%s212 + $0x2b8] sm:$0xff] %v5504
          %5633 = vst [vmem:[%s212 + $0x2c0] sm:$0xff] %v5505
          %5634 = vst [vmem:[%s212 + $0x2c8] sm:$0xff] %v5506
          %5635 = vst [vmem:[%s212 + $0x2d0] sm:$0xff] %v5507
          %5636 = vst [vmem:[%s212 + $0x2d8] sm:$0xff] %v5508
          %5637 = vst [vmem:[%s212 + $0x2e0] sm:$0xff] %v5509
          %5638 = vst [vmem:[%s212 + $0x2e8] sm:$0xff] %v5510
          %5639 = vst [vmem:[%s212 + $0x2f0] sm:$0xff] %v5511
          %5640 = vst [vmem:[%s212 + $0x2f8] sm:$0xff] %v5512
          %5641 = vst [vmem:[%s212 + $0x300] sm:$0xff] %v5513
          %5642 = vst [vmem:[%s212 + $0x308] sm:$0xff] %v5514
          %5643 = vst [vmem:[%s212 + $0x310] sm:$0xff] %v5515
          %5644 = vst [vmem:[%s212 + $0x318] sm:$0xff] %v5516
          %5645 = vst [vmem:[%s212 + $0x320] sm:$0xff] %v5517
          %5646 = vst [vmem:[%s212 + $0x328] sm:$0xff] %v5518
          %5647 = vst [vmem:[%s212 + $0x330] sm:$0xff] %v5519
          %5648 = vst [vmem:[%s212 + $0x338] sm:$0xff] %v5520
          %5649 = vst [vmem:[%s212 + $0x340] sm:$0xff] %v5521
          %5650 = vst [vmem:[%s212 + $0x348] sm:$0xff] %v5522
          %5651 = vst [vmem:[%s212 + $0x350] sm:$0xff] %v5523
          %5652 = vst [vmem:[%s212 + $0x358] sm:$0xff] %v5524
          %5653 = vst [vmem:[%s212 + $0x360] sm:$0xff] %v5525
          %5654 = vst [vmem:[%s212 + $0x368] sm:$0xff] %v5526
          %5655 = vst [vmem:[%s212 + $0x370] sm:$0xff] %v5527
          %5656 = vst [vmem:[%s212 + $0x378] sm:$0xff] %v5528
          %5657 = vst [vmem:[%s212 + $0x380] sm:$0xff] %v5529
          %5658 = vst [vmem:[%s212 + $0x388] sm:$0xff] %v5530
          %5659 = vst [vmem:[%s212 + $0x390] sm:$0xff] %v5531
          %5660 = vst [vmem:[%s212 + $0x398] sm:$0xff] %v5532
          %5661 = vst [vmem:[%s212 + $0x3a0] sm:$0xff] %v5533
          %5662 = vst [vmem:[%s212 + $0x3a8] sm:$0xff] %v5534
          %5663 = vst [vmem:[%s212 + $0x3b0] sm:$0xff] %v5535
          %5664 = vst [vmem:[%s212 + $0x3b8] sm:$0xff] %v5536
          %5665 = vst [vmem:[%s212 + $0x3c0] sm:$0xff] %v5537
          %5666 = vst [vmem:[%s212 + $0x3c8] sm:$0xff] %v5538
          %5667 = vst [vmem:[%s212 + $0x3d0] sm:$0xff] %v5539
          %5668 = vst [vmem:[%s212 + $0x3d8] sm:$0xff] %v5540
          %5669 = vst [vmem:[%s212 + $0x3e0] sm:$0xff] %v5541
          %5670 = vst [vmem:[%s212 + $0x3e8] sm:$0xff] %v5542
          %5671 = vst [vmem:[%s212 + $0x3f0] sm:$0xff] %v5543
          %5672 = vst [vmem:[%s212 + $0x3f8] sm:$0xff] %v5544
        $region44: #{tpu_custom_call.1} parent=27 // pred_fallthru
          _
        %s5673 = sand.u32 %s103, 1
        %s5674 = scalar_lea.sflag [#allocation4], %s5673
        %s5675 = sand.u32 %s103, 1
        %s5676 = smul.addr %s5675, 1024
        %s5677 = scalar_lea.vmem [#allocation7], %s5676
        // Predicated region
        $region45: #{tpu_custom_call.1} parent=27 // pred_check
          %p5678 = pneg %p113
        $region46: #{tpu_custom_call.1} parent=27 // pred_check_branch
          %5680 = sbr.rel (%p5678) target = $region48
        $region47: #{tpu_custom_call.1} parent=27 // pred_region
          %s5681 = sadd.s32 %s25, %s26
          %s5682 = smul.u32 16, %s5681
          %5684 = vsyncadd %s5674, 0
          %s5685 = smul.addr %s5682, 8
          %s5686 = smul.addr %s5685, 8
          %s5687 = scalar_lea.hbm %s2, %s5686
          %s5688 = sshll.u32 %s5677, 4
          %s5689 = int_to_ptr.vmem [resolvable:$true] %s5688
          %s5690 = sshll.u32 %s5687, 4
          %s5691 = int_to_ptr.hbm [resolvable:$true] %s5690
          %5696 = dma.vmem_to_hbm [thread:$0]  %s5689, 16384, %s5691, %s5674, 1024, 1024, 64
        $region48: #{tpu_custom_call.1} parent=27 // pred_fallthru
          _
      $region28: #{tpu_custom_call.1} parent=5 // pred_fallthru
        _
      %p5697 = scmp.le.s32.totalorder 2, %s15
      // Predicated region
      $region49: #{tpu_custom_call.1} parent=5 // pred_check
        %p5698 = pneg %p5697
      $region50: #{tpu_custom_call.1} parent=5 // pred_check_branch
        %5700 = sbr.rel (%p5698) target = $region52
      $region51: #{tpu_custom_call.1} parent=5 // pred_region
        %s5701 = ssub.s32 %s15, 2
        // Predicated region
        $region53: #{tpu_custom_call.1} parent=51 // pred_check
          %p5702 = pneg %p119
        $region54: #{tpu_custom_call.1} parent=51 // pred_check_branch
          %5704 = sbr.rel (%p5702) target = $region56
        $region55: #{tpu_custom_call.1} parent=51 // pred_region
          %s5705 = sand.u32 %s104, 1
          %s5706 = scalar_lea.sflag [#allocation4], %s5705
          %s5707 = sand.u32 %s104, 1
          %s5708 = smul.addr %s5707, 1024
          %s5709 = scalar_lea.vmem [#allocation7], %s5708
          %5711 = dma.done %s5706, 16384
        $region56: #{tpu_custom_call.1} parent=51 // pred_fallthru
          _
      $region52: #{tpu_custom_call.1} parent=5 // pred_fallthru
        _
    $region6: #{tpu_custom_call.1} parent=1 // loop_footer
      %s19 = sadd.s32 1, %s15
    $region7: #{tpu_custom_call.1} parent=1 // loop_footer_branch
      %14 = sbr.rel target = $region3
    $region8: #{tpu_custom_call.1} parent=1 // loop_exit
      _
    %5712 = vsyncpa [#allocation3], 1
    %s5713 = scalar_lea.sflag [#allocation3], 1
    %5714 = vsyncpa %s5713, 1
    %5715 = vsyncpa [#allocation6], 1
    %5716 = vsyncpa [#allocation4], 1
    %s5717 = scalar_lea.sflag [#allocation4], 1
    %5718 = vsyncpa %s5717, 1

</llo_original>
